<compile_context>
chip_gen: v7x
topology: tpu7x:2x2x1
jax: 0.10.0
libtpu: 0.0.40
codegen_flags: <defaults>
</compile_context>

<pallas_src>
import functools

import jax
import jax.numpy as jnp
from jax import lax
from jax.experimental import pallas as pl
from jax.experimental.pallas import tpu as pltpu

F32 = jnp.float32


# ----------------------------------------------------------------------------
# Fused MHSA kernel: one grid step == one batch element; heads unrolled inside.
# ----------------------------------------------------------------------------
def _mhsa_kernel(x_ref, wqkv_ref, bqkv_ref, pos_ref, o_ref, *, heads):
    x = x_ref[0]                               # (C, N), compute dtype
    C, N = x.shape
    dh = C // heads
    cdtype = x.dtype                           # bf16 (fast path) or f32

    # Fused Q/K/V 1x1-conv projection: (3C, C) @ (C, N) -> (3C, N), f32 accum,
    # conv bias folded into the epilogue.  Output is lane-dense (N on lanes).
    qkv = jnp.dot(wqkv_ref[...], x, preferred_element_type=jnp.float32)
    qkv = qkv + bqkv_ref[...]                  # (3C, 1) f32 broadcast

    pos = pos_ref[...]                         # (C, N) = (heads*dh, N)

    # heads is a small static constant -> fully unrolled; all slices static and
    # sublane-aligned (dh = 16).
    for h in range(heads):
        q = qkv[h * dh:(h + 1) * dh, :].astype(cdtype)              # (dh, N)
        k = qkv[C + h * dh:C + (h + 1) * dh, :].astype(cdtype)      # (dh, N)
        v = qkv[2 * C + h * dh:2 * C + (h + 1) * dh, :].astype(cdtype)
        p = pos[h * dh:(h + 1) * dh, :]                             # (dh, N)

        # energy[i, j] = <q[:, i], k[:, j]> + <p[:, i], q[:, j]>
        # (position term multiplies Q, not K; no 1/sqrt(dh) scaling — both
        #  intentionally preserved from the PyTorch reference.)
        cc = lax.dot_general(q, k, (((0,), (0,)), ((), ())),
                             preferred_element_type=jnp.float32)    # (N, N)
        cp = lax.dot_general(p, q, (((0,), (0,)), ((), ())),
                             preferred_element_type=jnp.float32)    # (N, N)
        energy = cc + cp

        # softmax(dim=-1) in f32; normalise with reciprocal + multiply instead
        # of an (N, N) divide.
        m = jnp.max(energy, axis=-1, keepdims=True)
        e = jnp.exp(energy - m)
        inv = pl.reciprocal(jnp.sum(e, axis=-1, keepdims=True), approx=True)
        attn = e * inv                                              # (N, N)

        # ctx[d, i] = sum_j v[d, j] * attn[i, j]  -> already (dh, N); no .T on
        # the critical path before the (lane-dense) store.
        ctx = lax.dot_general(v, attn.astype(cdtype),
                              (((1,), (1,)), ((), ())),
                              preferred_element_type=jnp.float32)   # (dh, N)
        o_ref[0, h * dh:(h + 1) * dh, :] = ctx.astype(o_ref.dtype)


def mhsa_forward(x, params, *, heads, mxu_dtype=jnp.bfloat16):
    """x: (B, C, W, H) float -> (B, C, W, H), same semantics as MHSA.forward.

    mxu_dtype is the dtype of the MXU matmul *operands* (accumulation is always
    f32 via preferred_element_type).  bfloat16 is the fast path on v6e / v7x;
    float32 reproduces the torch-f32 forward bit-faithfully.
    """
    B, C, W, H = x.shape
    assert C % heads == 0
    N = W * H
    # TODO(synk): for N not a multiple of 128, or N large enough that the
    # (N, N) scores no longer fit VMEM (notably v7x's 64 MiB), switch to a
    # padded / KV-tiled online-softmax (flash-style) inner loop.

    # NCHW -> (B, C, N): a free reshape — no transpose, no extra HBM round trip.
    x2 = x.reshape(B, C, N).astype(mxu_dtype)

    # Pack Q/K/V 1x1-conv weights into one (3C, C) slab (rows [0,C)=Q,
    # [C,2C)=K, [2C,3C)=V) and the biases into a single (3C, 1) column.
    wqkv = jnp.concatenate(
        [params["wq"], params["wk"], params["wv"]], axis=0).astype(mxu_dtype)
    bqkv = jnp.concatenate(
        [params["bq"], params["bk"], params["bv"]],
        axis=0).reshape(3 * C, 1).astype(F32)

    # (rel_h + rel_w): (1, heads, dh, W, H) -> (C, N); row c = head*dh + d.
    pos = (params["rel_h"] + params["rel_w"]).reshape(C, N).astype(mxu_dtype)

    kernel = functools.partial(_mhsa_kernel, heads=heads)
    out = pl.pallas_call(
        kernel,
        out_shape=jax.ShapeDtypeStruct((B, C, N), F32),
        grid=(B,),                                   # B>=2 -> both v7x TCs busy
        in_specs=[
            pl.BlockSpec((1, C, N), lambda b: (b, 0, 0)),   # activations
            pl.BlockSpec((3 * C, C), lambda b: (0, 0)),     # fused QKV weights
            pl.BlockSpec((3 * C, 1), lambda b: (0, 0)),     # fused QKV bias
            pl.BlockSpec((C, N), lambda b: (0, 0)),         # position term
        ],
        out_specs=pl.BlockSpec((1, C, N), lambda b: (b, 0, 0)),
        compiler_params=pltpu.CompilerParams(
            dimension_semantics=("parallel",)),
    )(x2, wqkv, bqkv, pos)

    # (B, C, N) -> (B, C, W, H): pure reshape (c = head*dh + d).
    return out.reshape(B, C, W, H)


# ----------------------------------------------------------------------------
# Pure-JAX reference (mirrors the PyTorch forward 1:1).  operand_dtype lets us
# also build a bf16-operand reference that applies the same rounding as the
# kernel's fast path (accumulation stays f32 in both).
# ----------------------------------------------------------------------------
def mhsa_reference(x, params, *, heads, operand_dtype=jnp.float32):
    B, C, W, H = x.shape
    dh = C // heads
    N = W * H
    hi = lax.Precision.HIGHEST

    xr = x.reshape(B, C, N).astype(operand_dtype)

    def proj(w, b):
        y = jnp.einsum("oc,bcn->bon", w.astype(operand_dtype), xr,
                       precision=hi, preferred_element_type=F32)
        return (y + b.astype(F32)[None, :, None]).reshape(B, heads, dh, N)

    q = proj(params["wq"], params["bq"]).astype(operand_dtype)
    k = proj(params["wk"], params["bk"]).astype(operand_dtype)
    v = proj(params["wv"], params["bv"]).astype(operand_dtype)

    cc = jnp.einsum("bhdi,bhdj->bhij", q, k, precision=hi,
                    preferred_element_type=F32)
    pos = (params["rel_h"] + params["rel_w"]).reshape(heads, dh, N)
    cp = jnp.einsum("hdi,bhdj->bhij", pos.astype(operand_dtype), q,
                    precision=hi, preferred_element_type=F32)
    attn = jax.nn.softmax(cc + cp, axis=-1)
    out = jnp.einsum("bhdj,bhij->bhdi", v, attn.astype(operand_dtype),
                     precision=hi, preferred_element_type=F32)
    return out.reshape(B, C, W, H)


# ----------------------------------------------------------------------------
if __name__ == "__main__":
    # Small shapes consistent with MHSA(n_dims=64, width=16, height=16, heads=4)
    B, C, W, H, heads = 2, 64, 16, 16, 4
    dh = C // heads

    key = jax.random.PRNGKey(0)
    ks = jax.random.split(key, 9)
    params = {
        "wq": jax.random.normal(ks[0], (C, C), F32) / jnp.sqrt(C),
        "wk": jax.random.normal(ks[1], (C, C), F32) / jnp.sqrt(C),
        "wv": jax.random.normal(ks[2], (C, C), F32) / jnp.sqrt(C),
        "bq": jax.random.normal(ks[3], (C,), F32) * 0.02,
        "bk": jax.random.normal(ks[4], (C,), F32) * 0.02,
        "bv": jax.random.normal(ks[5], (C,), F32) * 0.02,
        "rel_h": jax.random.normal(ks[6], (1, heads, dh, 1, H), F32),
        "rel_w": jax.random.normal(ks[7], (1, heads, dh, W, 1), F32),
    }
    x = jax.random.normal(ks[8], (B, C, W, H), F32)

    ref_f32 = mhsa_reference(x, params, heads=heads)

    # f32-operand path: faithful to the (f32) PyTorch forward -> tight check.
    fwd_f32 = jax.jit(functools.partial(mhsa_forward, heads=heads,
                                        mxu_dtype=jnp.float32))
    out_f32 = jax.block_until_ready(fwd_f32(x, params))
    assert out_f32.shape == (B, C, W, H), out_f32.shape
    assert bool(jnp.all(jnp.isfinite(out_f32)))
    err_f32 = float(jnp.max(jnp.abs(out_f32 - ref_f32)))
    assert err_f32 < 2e-2, f"f32 path max abs err {err_f32}"

    # bf16-operand fast path (recommended on v6e/v7x): compare against a
    # reference with the same operand rounding (f32 accumulation in both),
    # plus a loose sanity bound against the full-f32 reference.
    fwd_bf16 = jax.jit(functools.partial(mhsa_forward, heads=heads,
                                         mxu_dtype=jnp.bfloat16))
    out_bf16 = jax.block_until_ready(fwd_bf16(x, params))
    assert out_bf16.shape == (B, C, W, H), out_bf16.shape
    assert bool(jnp.all(jnp.isfinite(out_bf16)))
    ref_bf16 = mhsa_reference(x, params, heads=heads,
                              operand_dtype=jnp.bfloat16)
    err_matched = float(jnp.max(jnp.abs(out_bf16 - ref_bf16)))
    assert err_matched < 5e-2, f"bf16 path vs matched ref max abs err {err_matched}"
    err_sanity = float(jnp.max(jnp.abs(out_bf16 - ref_f32)))
    assert err_sanity < 0.5, f"bf16 path vs f32 ref sanity err {err_sanity}"

    print("KERNEL_OK")
</pallas_src>

<mosaic_0001>
module attributes {stable_mosaic.version = 11 : i64} {
  func.func @_mhsa_kernel(%arg0: i32, %arg1: memref<1x64x256xf32, #tpu.memory_space<vmem>>, %arg2: memref<192x64xf32, #tpu.memory_space<vmem>>, %arg3: memref<192x1xf32, #tpu.memory_space<vmem>>, %arg4: memref<64x256xf32, #tpu.memory_space<vmem>>, %arg5: memref<1x64x256xf32, #tpu.memory_space<vmem>>) attributes {dimension_semantics = [#tpu.dimension_semantics<parallel>], iteration_bounds = array<i64: 2>, scalar_prefetch = 0 : i64, scratch_operands = 0 : i64, tpu.core_type = #tpu.core_type<tc>, window_params = [{transform_indices = @transform_0, window_bounds = array<i64: 1, 64, 256>}, {pipeline_mode = #tpu.pipeline_mode<synchronous>, transform_indices = @transform_1, window_bounds = array<i64: 192, 64>}, {pipeline_mode = #tpu.pipeline_mode<synchronous>, transform_indices = @transform_2, window_bounds = array<i64: 192, 1>}, {pipeline_mode = #tpu.pipeline_mode<synchronous>, transform_indices = @transform_3, window_bounds = array<i64: 64, 256>}, {transform_indices = @transform_4, window_bounds = array<i64: 1, 64, 256>}]} {
    %c0 = arith.constant 0 : index
    %c0_0 = arith.constant 0 : index
    %c0_1 = arith.constant 0 : index
    %0 = vector.load %arg1[%c0, %c0_0, %c0_1] : memref<1x64x256xf32, #tpu.memory_space<vmem>>, vector<1x64x256xf32>
    %1 = vector.shape_cast %0 : vector<1x64x256xf32> to vector<64x256xf32>
    %c0_2 = arith.constant 0 : index
    %c0_3 = arith.constant 0 : index
    %2 = vector.load %arg2[%c0_2, %c0_3] : memref<192x64xf32, #tpu.memory_space<vmem>>, vector<192x64xf32>
    %cst = arith.constant dense<0.000000e+00> : vector<192x256xf32>
    %3 = tpu.matmul %2, %1, %cst {dimension_numbers = #tpu.dot_dimension_numbers<[1], [0], [0], [1], [0, 0, 1, 1], [], []>} : vector<192x64xf32>, vector<64x256xf32>, vector<192x256xf32> -> vector<192x256xf32>
    %c0_4 = arith.constant 0 : index
    %c0_5 = arith.constant 0 : index
    %4 = vector.load %arg3[%c0_4, %c0_5] : memref<192x1xf32, #tpu.memory_space<vmem>>, vector<192x1xf32>
    %5 = vector.broadcast %4 : vector<192x1xf32> to vector<192x256xf32>
    %6 = arith.addf %3, %5 : vector<192x256xf32>
    %c0_6 = arith.constant 0 : index
    %c0_7 = arith.constant 0 : index
    %7 = vector.load %arg4[%c0_6, %c0_7] : memref<64x256xf32, #tpu.memory_space<vmem>>, vector<64x256xf32>
    %8 = vector.extract_strided_slice %6 {offsets = [0, 0], sizes = [16, 256], strides = [1, 1]} : vector<192x256xf32> to vector<16x256xf32>
    %9 = vector.extract_strided_slice %6 {offsets = [64, 0], sizes = [16, 256], strides = [1, 1]} : vector<192x256xf32> to vector<16x256xf32>
    %10 = vector.extract_strided_slice %6 {offsets = [128, 0], sizes = [16, 256], strides = [1, 1]} : vector<192x256xf32> to vector<16x256xf32>
    %11 = vector.extract_strided_slice %7 {offsets = [0, 0], sizes = [16, 256], strides = [1, 1]} : vector<64x256xf32> to vector<16x256xf32>
    %cst_8 = arith.constant dense<0.000000e+00> : vector<256x256xf32>
    %12 = tpu.matmul %8, %9, %cst_8 {dimension_numbers = #tpu.dot_dimension_numbers<[0], [0], [1], [1], [0, 1, 1, 1], [], []>} : vector<16x256xf32>, vector<16x256xf32>, vector<256x256xf32> -> vector<256x256xf32>
    %cst_9 = arith.constant dense<0.000000e+00> : vector<256x256xf32>
    %13 = tpu.matmul %11, %8, %cst_9 {dimension_numbers = #tpu.dot_dimension_numbers<[0], [0], [1], [1], [0, 1, 1, 1], [], []>} : vector<16x256xf32>, vector<16x256xf32>, vector<256x256xf32> -> vector<256x256xf32>
    %14 = arith.addf %12, %13 : vector<256x256xf32>
    %cst_10 = arith.constant dense<0xFF800000> : vector<256xf32>
    %15 = vector.multi_reduction <maximumf>, %14, %cst_10 [1] : vector<256x256xf32> to vector<256xf32>
    %16 = vector.shape_cast %15 : vector<256xf32> to vector<256x1xf32>
    %17 = vector.broadcast %16 : vector<256x1xf32> to vector<256x256xf32>
    %18 = arith.subf %14, %17 : vector<256x256xf32>
    %19 = math.exp %18 : vector<256x256xf32>
    %cst_11 = arith.constant dense<0.000000e+00> : vector<256xf32>
    %20 = vector.multi_reduction <add>, %19, %cst_11 [1] : vector<256x256xf32> to vector<256xf32>
    %21 = vector.shape_cast %20 : vector<256xf32> to vector<256x1xf32>
    %22 = tpu.reciprocal %21 {approx = true} : vector<256x1xf32> -> vector<256x1xf32>
    %23 = vector.broadcast %22 : vector<256x1xf32> to vector<256x256xf32>
    %24 = arith.mulf %19, %23 : vector<256x256xf32>
    %cst_12 = arith.constant dense<0.000000e+00> : vector<16x256xf32>
    %25 = tpu.matmul %10, %24, %cst_12 {dimension_numbers = #tpu.dot_dimension_numbers<[1], [1], [0], [0], [0, 0, 1, 0], [], []>} : vector<16x256xf32>, vector<256x256xf32>, vector<16x256xf32> -> vector<16x256xf32>
    %c0_13 = arith.constant 0 : index
    %c0_14 = arith.constant 0 : index
    %c0_15 = arith.constant 0 : index
    %26 = vector.load %arg5[%c0_13, %c0_14, %c0_15] : memref<1x64x256xf32, #tpu.memory_space<vmem>>, vector<1x16x256xf32>
    %27 = vector.shape_cast %26 : vector<1x16x256xf32> to vector<16x256xf32>
    %28 = vector.shape_cast %25 : vector<16x256xf32> to vector<1x16x256xf32>
    tpu.vector_store %arg5[%c0_13, %c0_14, %c0_15], %28 {strides = array<i32>} : memref<1x64x256xf32, #tpu.memory_space<vmem>>, vector<1x16x256xf32>,
    %29 = vector.extract_strided_slice %6 {offsets = [16, 0], sizes = [16, 256], strides = [1, 1]} : vector<192x256xf32> to vector<16x256xf32>
    %30 = vector.extract_strided_slice %6 {offsets = [80, 0], sizes = [16, 256], strides = [1, 1]} : vector<192x256xf32> to vector<16x256xf32>
    %31 = vector.extract_strided_slice %6 {offsets = [144, 0], sizes = [16, 256], strides = [1, 1]} : vector<192x256xf32> to vector<16x256xf32>
    %32 = vector.extract_strided_slice %7 {offsets = [16, 0], sizes = [16, 256], strides = [1, 1]} : vector<64x256xf32> to vector<16x256xf32>
    %cst_16 = arith.constant dense<0.000000e+00> : vector<256x256xf32>
    %33 = tpu.matmul %29, %30, %cst_16 {dimension_numbers = #tpu.dot_dimension_numbers<[0], [0], [1], [1], [0, 1, 1, 1], [], []>} : vector<16x256xf32>, vector<16x256xf32>, vector<256x256xf32> -> vector<256x256xf32>
    %cst_17 = arith.constant dense<0.000000e+00> : vector<256x256xf32>
    %34 = tpu.matmul %32, %29, %cst_17 {dimension_numbers = #tpu.dot_dimension_numbers<[0], [0], [1], [1], [0, 1, 1, 1], [], []>} : vector<16x256xf32>, vector<16x256xf32>, vector<256x256xf32> -> vector<256x256xf32>
    %35 = arith.addf %33, %34 : vector<256x256xf32>
    %cst_18 = arith.constant dense<0xFF800000> : vector<256xf32>
    %36 = vector.multi_reduction <maximumf>, %35, %cst_18 [1] : vector<256x256xf32> to vector<256xf32>
    %37 = vector.shape_cast %36 : vector<256xf32> to vector<256x1xf32>
    %38 = vector.broadcast %37 : vector<256x1xf32> to vector<256x256xf32>
    %39 = arith.subf %35, %38 : vector<256x256xf32>
    %40 = math.exp %39 : vector<256x256xf32>
    %cst_19 = arith.constant dense<0.000000e+00> : vector<256xf32>
    %41 = vector.multi_reduction <add>, %40, %cst_19 [1] : vector<256x256xf32> to vector<256xf32>
    %42 = vector.shape_cast %41 : vector<256xf32> to vector<256x1xf32>
    %43 = tpu.reciprocal %42 {approx = true} : vector<256x1xf32> -> vector<256x1xf32>
    %44 = vector.broadcast %43 : vector<256x1xf32> to vector<256x256xf32>
    %45 = arith.mulf %40, %44 : vector<256x256xf32>
    %cst_20 = arith.constant dense<0.000000e+00> : vector<16x256xf32>
    %46 = tpu.matmul %31, %45, %cst_20 {dimension_numbers = #tpu.dot_dimension_numbers<[1], [1], [0], [0], [0, 0, 1, 0], [], []>} : vector<16x256xf32>, vector<256x256xf32>, vector<16x256xf32> -> vector<16x256xf32>
    %c0_21 = arith.constant 0 : index
    %c16 = arith.constant 16 : index
    %c0_22 = arith.constant 0 : index
    %47 = vector.load %arg5[%c0_21, %c16, %c0_22] : memref<1x64x256xf32, #tpu.memory_space<vmem>>, vector<1x16x256xf32>
    %48 = vector.shape_cast %47 : vector<1x16x256xf32> to vector<16x256xf32>
    %49 = vector.shape_cast %46 : vector<16x256xf32> to vector<1x16x256xf32>
    tpu.vector_store %arg5[%c0_21, %c16, %c0_22], %49 {strides = array<i32>} : memref<1x64x256xf32, #tpu.memory_space<vmem>>, vector<1x16x256xf32>,
    %50 = vector.extract_strided_slice %6 {offsets = [32, 0], sizes = [16, 256], strides = [1, 1]} : vector<192x256xf32> to vector<16x256xf32>
    %51 = vector.extract_strided_slice %6 {offsets = [96, 0], sizes = [16, 256], strides = [1, 1]} : vector<192x256xf32> to vector<16x256xf32>
    %52 = vector.extract_strided_slice %6 {offsets = [160, 0], sizes = [16, 256], strides = [1, 1]} : vector<192x256xf32> to vector<16x256xf32>
    %53 = vector.extract_strided_slice %7 {offsets = [32, 0], sizes = [16, 256], strides = [1, 1]} : vector<64x256xf32> to vector<16x256xf32>
    %cst_23 = arith.constant dense<0.000000e+00> : vector<256x256xf32>
    %54 = tpu.matmul %50, %51, %cst_23 {dimension_numbers = #tpu.dot_dimension_numbers<[0], [0], [1], [1], [0, 1, 1, 1], [], []>} : vector<16x256xf32>, vector<16x256xf32>, vector<256x256xf32> -> vector<256x256xf32>
    %cst_24 = arith.constant dense<0.000000e+00> : vector<256x256xf32>
    %55 = tpu.matmul %53, %50, %cst_24 {dimension_numbers = #tpu.dot_dimension_numbers<[0], [0], [1], [1], [0, 1, 1, 1], [], []>} : vector<16x256xf32>, vector<16x256xf32>, vector<256x256xf32> -> vector<256x256xf32>
    %56 = arith.addf %54, %55 : vector<256x256xf32>
    %cst_25 = arith.constant dense<0xFF800000> : vector<256xf32>
    %57 = vector.multi_reduction <maximumf>, %56, %cst_25 [1] : vector<256x256xf32> to vector<256xf32>
    %58 = vector.shape_cast %57 : vector<256xf32> to vector<256x1xf32>
    %59 = vector.broadcast %58 : vector<256x1xf32> to vector<256x256xf32>
    %60 = arith.subf %56, %59 : vector<256x256xf32>
    %61 = math.exp %60 : vector<256x256xf32>
    %cst_26 = arith.constant dense<0.000000e+00> : vector<256xf32>
    %62 = vector.multi_reduction <add>, %61, %cst_26 [1] : vector<256x256xf32> to vector<256xf32>
    %63 = vector.shape_cast %62 : vector<256xf32> to vector<256x1xf32>
    %64 = tpu.reciprocal %63 {approx = true} : vector<256x1xf32> -> vector<256x1xf32>
    %65 = vector.broadcast %64 : vector<256x1xf32> to vector<256x256xf32>
    %66 = arith.mulf %61, %65 : vector<256x256xf32>
    %cst_27 = arith.constant dense<0.000000e+00> : vector<16x256xf32>
    %67 = tpu.matmul %52, %66, %cst_27 {dimension_numbers = #tpu.dot_dimension_numbers<[1], [1], [0], [0], [0, 0, 1, 0], [], []>} : vector<16x256xf32>, vector<256x256xf32>, vector<16x256xf32> -> vector<16x256xf32>
    %c0_28 = arith.constant 0 : index
    %c32 = arith.constant 32 : index
    %c0_29 = arith.constant 0 : index
    %68 = vector.load %arg5[%c0_28, %c32, %c0_29] : memref<1x64x256xf32, #tpu.memory_space<vmem>>, vector<1x16x256xf32>
    %69 = vector.shape_cast %68 : vector<1x16x256xf32> to vector<16x256xf32>
    %70 = vector.shape_cast %67 : vector<16x256xf32> to vector<1x16x256xf32>
    tpu.vector_store %arg5[%c0_28, %c32, %c0_29], %70 {strides = array<i32>} : memref<1x64x256xf32, #tpu.memory_space<vmem>>, vector<1x16x256xf32>,
    %71 = vector.extract_strided_slice %6 {offsets = [48, 0], sizes = [16, 256], strides = [1, 1]} : vector<192x256xf32> to vector<16x256xf32>
    %72 = vector.extract_strided_slice %6 {offsets = [112, 0], sizes = [16, 256], strides = [1, 1]} : vector<192x256xf32> to vector<16x256xf32>
    %73 = vector.extract_strided_slice %6 {offsets = [176, 0], sizes = [16, 256], strides = [1, 1]} : vector<192x256xf32> to vector<16x256xf32>
    %74 = vector.extract_strided_slice %7 {offsets = [48, 0], sizes = [16, 256], strides = [1, 1]} : vector<64x256xf32> to vector<16x256xf32>
    %cst_30 = arith.constant dense<0.000000e+00> : vector<256x256xf32>
    %75 = tpu.matmul %71, %72, %cst_30 {dimension_numbers = #tpu.dot_dimension_numbers<[0], [0], [1], [1], [0, 1, 1, 1], [], []>} : vector<16x256xf32>, vector<16x256xf32>, vector<256x256xf32> -> vector<256x256xf32>
    %cst_31 = arith.constant dense<0.000000e+00> : vector<256x256xf32>
    %76 = tpu.matmul %74, %71, %cst_31 {dimension_numbers = #tpu.dot_dimension_numbers<[0], [0], [1], [1], [0, 1, 1, 1], [], []>} : vector<16x256xf32>, vector<16x256xf32>, vector<256x256xf32> -> vector<256x256xf32>
    %77 = arith.addf %75, %76 : vector<256x256xf32>
    %cst_32 = arith.constant dense<0xFF800000> : vector<256xf32>
    %78 = vector.multi_reduction <maximumf>, %77, %cst_32 [1] : vector<256x256xf32> to vector<256xf32>
    %79 = vector.shape_cast %78 : vector<256xf32> to vector<256x1xf32>
    %80 = vector.broadcast %79 : vector<256x1xf32> to vector<256x256xf32>
    %81 = arith.subf %77, %80 : vector<256x256xf32>
    %82 = math.exp %81 : vector<256x256xf32>
    %cst_33 = arith.constant dense<0.000000e+00> : vector<256xf32>
    %83 = vector.multi_reduction <add>, %82, %cst_33 [1] : vector<256x256xf32> to vector<256xf32>
    %84 = vector.shape_cast %83 : vector<256xf32> to vector<256x1xf32>
    %85 = tpu.reciprocal %84 {approx = true} : vector<256x1xf32> -> vector<256x1xf32>
    %86 = vector.broadcast %85 : vector<256x1xf32> to vector<256x256xf32>
    %87 = arith.mulf %82, %86 : vector<256x256xf32>
    %cst_34 = arith.constant dense<0.000000e+00> : vector<16x256xf32>
    %88 = tpu.matmul %73, %87, %cst_34 {dimension_numbers = #tpu.dot_dimension_numbers<[1], [1], [0], [0], [0, 0, 1, 0], [], []>} : vector<16x256xf32>, vector<256x256xf32>, vector<16x256xf32> -> vector<16x256xf32>
    %c0_35 = arith.constant 0 : index
    %c48 = arith.constant 48 : index
    %c0_36 = arith.constant 0 : index
    %89 = vector.load %arg5[%c0_35, %c48, %c0_36] : memref<1x64x256xf32, #tpu.memory_space<vmem>>, vector<1x16x256xf32>
    %90 = vector.shape_cast %89 : vector<1x16x256xf32> to vector<16x256xf32>
    %91 = vector.shape_cast %88 : vector<16x256xf32> to vector<1x16x256xf32>
    tpu.vector_store %arg5[%c0_35, %c48, %c0_36], %91 {strides = array<i32>} : memref<1x64x256xf32, #tpu.memory_space<vmem>>, vector<1x16x256xf32>,
    return
  }
  func.func @transform_0(%arg0: i32) -> (i32, i32, i32) {
    %c0_i32 = arith.constant 0 : i32
    %c0_i32_0 = arith.constant 0 : i32
    %c0_i32_1 = arith.constant 0 : i32
    return %arg0, %c0_i32, %c0_i32_0 : i32, i32, i32
  }
  func.func @transform_1(%arg0: i32) -> (i32, i32) {
    %c0_i32 = arith.constant 0 : i32
    %c0_i32_0 = arith.constant 0 : i32
    %c0_i32_1 = arith.constant 0 : i32
    return %c0_i32, %c0_i32_0 : i32, i32
  }
  func.func @transform_2(%arg0: i32) -> (i32, i32) {
    %c0_i32 = arith.constant 0 : i32
    %c0_i32_0 = arith.constant 0 : i32
    %c0_i32_1 = arith.constant 0 : i32
    return %c0_i32, %c0_i32_0 : i32, i32
  }
  func.func @transform_3(%arg0: i32) -> (i32, i32) {
    %c0_i32 = arith.constant 0 : i32
    %c0_i32_0 = arith.constant 0 : i32
    %c0_i32_1 = arith.constant 0 : i32
    return %c0_i32, %c0_i32_0 : i32, i32
  }
  func.func @transform_4(%arg0: i32) -> (i32, i32, i32) {
    %c0_i32 = arith.constant 0 : i32
    %c0_i32_0 = arith.constant 0 : i32
    %c0_i32_1 = arith.constant 0 : i32
    return %arg0, %c0_i32, %c0_i32_0 : i32, i32, i32
  }
}

</mosaic_0001>

<llo_original>
// kernel: mhsa_forward.1
$region0: #{mhsa_forward.1}
  #allocation0 [shape = 'u32[]', space=smem, size = 0x4, offset = 0x4, fixed_abs, tag = 'smem constant byte address 0x4 - core index']
  #allocation1 [shape = 'u32[144,128]{1,0:T(1,128)}', space=vmem, size = 0x12000, scoped, tag = 'internal scratch']
  %s0 = inlined_call_operand.vmem [shape: f32[2,64,256], index: 0, kind: input, shape index: {}]
  %s1 = inlined_call_operand.vmem [shape: f32[192,64], index: 1, kind: input, shape index: {}]
  %s2 = inlined_call_operand.vmem [shape: f32[192,1], index: 2, kind: input, shape index: {}]
  %s3 = inlined_call_operand.vmem [shape: f32[64,256], index: 3, kind: input, shape index: {}]
  %s4 = inlined_call_operand.vmem [shape: f32[2,64,256], index: 4, kind: output, shape index: {}]
  %s5 = sld [smem:[#allocation0]]
  $region49: #{mhsa_forward.1} parent=0
    _
  %s7 = ssub.s32 1, %s5
  %s8 = scalar_select 0, %s7, %s5
  loop: start=0, step=1, limit=4
  $region2: #{mhsa_forward.1} parent=0 // loop_pre_header
    _
  $region3: #{mhsa_forward.1} parent=0 // loop_header
    %s10 = sphi 0, %s14
    %p11 = scmp.ge.s32.totalorder %s10, 4
    %s20 = sphi 0, %s22
    %s23 = sphi 0, %s20
    %s24 = sphi 0, %s23
    %s40 = sphi 0, %s24
    %s44 = sphi 0, %s44
    %s46 = sphi 0, %s44
    %s47 = sphi 0, %s46
    %s61 = sphi 0, %s47
    %s65 = sphi 0, %s65
    %s67 = sphi 0, %s65
    %s68 = sphi 0, %s67
    %s82 = sphi 0, %s68
    %s86 = sphi 0, %s86
    %s88 = sphi 0, %s86
    %s89 = sphi 0, %s88
    %s103 = sphi 0, %s89
    %s109 = sphi 0, %s111
    %s112 = sphi 0, %s109
    %s113 = sphi 0, %s112
    %s129 = sphi 0, %s113
  $region4: #{mhsa_forward.1} parent=0 // loop_header_branch
    %13 = sbr.rel (%p11) target = $region8
  $region5: #{mhsa_forward.1} parent=0 // loop_body
    %s15 = ssub.s32 %s10, 1
    %s16 = ssub.s32 %s10, 2
    %s17 = sadd.s32 %s10, 1
    %s18 = ssub.s32 %s10, %s17
    %p19 = scmp.eq.s32.totalorder %s18, 0
    %s21 = sadd.s32 %s20, 1
    %s22 = scalar_select %p19, %s20, %s21
    %p25 = pneg %p19
    %p26 = scmp.eq.s32.totalorder %s10, 1
    %p27 = por %p25, %p26
    %p28 = scmp.ne.s32.totalorder %s20, %s23
    %p29 = scmp.eq.s32.totalorder %s10, 0
    %p30 = por %p28, %p29
    %p31 = scmp.ne.s32.totalorder %s20, %s23
    %p32 = scmp.eq.s32.totalorder %s15, 1
    %p33 = por %p31, %p32
    %p34 = scmp.ne.s32.totalorder %s23, %s24
    %p35 = scmp.eq.s32.totalorder %s15, 0
    %p36 = por %p34, %p35
    %p37 = scmp.ne.s32.totalorder %s23, %s24
    %p38 = scmp.eq.s32.totalorder %s16, 1
    %p39 = por %p37, %p38
    %p41 = scmp.ne.s32.totalorder %s24, %s40
    %p42 = scmp.eq.s32.totalorder %s16, 0
    %p43 = por %p41, %p42
    %s45 = sadd.s32 %s44, 1
    %p48 = scmp.eq.s32.totalorder %s10, 1
    %p49 = scmp.ne.s32.totalorder %s44, %s46
    %p50 = scmp.eq.s32.totalorder %s10, 0
    %p51 = por %p49, %p50
    %p52 = scmp.ne.s32.totalorder %s44, %s46
    %p53 = scmp.eq.s32.totalorder %s15, 1
    %p54 = por %p52, %p53
    %p55 = scmp.ne.s32.totalorder %s46, %s47
    %p56 = scmp.eq.s32.totalorder %s15, 0
    %p57 = por %p55, %p56
    %p58 = scmp.ne.s32.totalorder %s46, %s47
    %p59 = scmp.eq.s32.totalorder %s16, 1
    %p60 = por %p58, %p59
    %p62 = scmp.ne.s32.totalorder %s47, %s61
    %p63 = scmp.eq.s32.totalorder %s16, 0
    %p64 = por %p62, %p63
    %s66 = sadd.s32 %s65, 1
    %p69 = scmp.eq.s32.totalorder %s10, 1
    %p70 = scmp.ne.s32.totalorder %s65, %s67
    %p71 = scmp.eq.s32.totalorder %s10, 0
    %p72 = por %p70, %p71
    %p73 = scmp.ne.s32.totalorder %s65, %s67
    %p74 = scmp.eq.s32.totalorder %s15, 1
    %p75 = por %p73, %p74
    %p76 = scmp.ne.s32.totalorder %s67, %s68
    %p77 = scmp.eq.s32.totalorder %s15, 0
    %p78 = por %p76, %p77
    %p79 = scmp.ne.s32.totalorder %s67, %s68
    %p80 = scmp.eq.s32.totalorder %s16, 1
    %p81 = por %p79, %p80
    %p83 = scmp.ne.s32.totalorder %s68, %s82
    %p84 = scmp.eq.s32.totalorder %s16, 0
    %p85 = por %p83, %p84
    %s87 = sadd.s32 %s86, 1
    %p90 = scmp.eq.s32.totalorder %s10, 1
    %p91 = scmp.ne.s32.totalorder %s86, %s88
    %p92 = scmp.eq.s32.totalorder %s10, 0
    %p93 = por %p91, %p92
    %p94 = scmp.ne.s32.totalorder %s86, %s88
    %p95 = scmp.eq.s32.totalorder %s15, 1
    %p96 = por %p94, %p95
    %p97 = scmp.ne.s32.totalorder %s88, %s89
    %p98 = scmp.eq.s32.totalorder %s15, 0
    %p99 = por %p97, %p98
    %p100 = scmp.ne.s32.totalorder %s88, %s89
    %p101 = scmp.eq.s32.totalorder %s16, 1
    %p102 = por %p100, %p101
    %p104 = scmp.ne.s32.totalorder %s89, %s103
    %p105 = scmp.eq.s32.totalorder %s16, 0
    %p106 = por %p104, %p105
    %s107 = ssub.s32 %s10, %s17
    %p108 = scmp.eq.s32.totalorder %s107, 0
    %s110 = sadd.s32 %s109, 1
    %s111 = scalar_select %p108, %s109, %s110
    %p114 = pneg %p108
    %p115 = scmp.eq.s32.totalorder %s10, 1
    %p116 = por %p114, %p115
    %p117 = scmp.ne.s32.totalorder %s109, %s112
    %p118 = scmp.eq.s32.totalorder %s10, 0
    %p119 = por %p117, %p118
    %p120 = scmp.ne.s32.totalorder %s109, %s112
    %p121 = scmp.eq.s32.totalorder %s15, 1
    %p122 = por %p120, %p121
    %p123 = scmp.ne.s32.totalorder %s112, %s113
    %p124 = scmp.eq.s32.totalorder %s15, 0
    %p125 = por %p123, %p124
    %p126 = scmp.ne.s32.totalorder %s112, %s113
    %p127 = scmp.eq.s32.totalorder %s16, 1
    %p128 = por %p126, %p127
    %p130 = scmp.ne.s32.totalorder %s113, %s129
    %p131 = scmp.eq.s32.totalorder %s16, 0
    %p132 = por %p130, %p131
    %p133 = scmp.le.s32.totalorder 1, %s10
    %p134 = scmp.lt.s32.totalorder %s10, 3
    %p135 = pnand %p133, %p134
    %p136 = pneg %p135
    // Predicated region
    $region9: #{mhsa_forward.1} parent=5 // pred_check
      _
    $region10: #{mhsa_forward.1} parent=5 // pred_check_branch
      %138 = sbr.rel (%p135) target = $region12
    $region11: #{mhsa_forward.1} parent=5 // pred_region
      %s139 = ssub.s32 %s10, 1
      // Predicated region
      $region13: #{mhsa_forward.1} parent=11 // pred_check
        %p140 = pneg %p57
      $region14: #{mhsa_forward.1} parent=11 // pred_check_branch
        %142 = sbr.rel (%p140) target = $region16
      $region15: #{mhsa_forward.1} parent=11 // pred_region
        _
      $region16: #{mhsa_forward.1} parent=11 // pred_fallthru
        _
      // Predicated region
      $region17: #{mhsa_forward.1} parent=11 // pred_check
        %p143 = pneg %p78
      $region18: #{mhsa_forward.1} parent=11 // pred_check_branch
        %145 = sbr.rel (%p143) target = $region20
      $region19: #{mhsa_forward.1} parent=11 // pred_region
        _
      $region20: #{mhsa_forward.1} parent=11 // pred_fallthru
        _
      // Predicated region
      $region21: #{mhsa_forward.1} parent=11 // pred_check
        %p146 = pneg %p99
      $region22: #{mhsa_forward.1} parent=11 // pred_check_branch
        %148 = sbr.rel (%p146) target = $region24
      $region23: #{mhsa_forward.1} parent=11 // pred_region
        _
      $region24: #{mhsa_forward.1} parent=11 // pred_fallthru
        _
    $region12: #{mhsa_forward.1} parent=5 // pred_fallthru
      _
    %p149 = scmp.lt.s32.totalorder %s10, 2
    // Predicated region
    $region25: #{mhsa_forward.1} parent=5 // pred_check
      %p150 = pneg %p149
    $region26: #{mhsa_forward.1} parent=5 // pred_check_branch
      %152 = sbr.rel (%p150) target = $region28
    $region27: #{mhsa_forward.1} parent=5 // pred_region
      // Predicated region
      $region29: #{mhsa_forward.1} parent=27 // pred_check
        %p153 = pneg %p30
      $region30: #{mhsa_forward.1} parent=27 // pred_check_branch
        %155 = sbr.rel (%p153) target = $region32
      $region31: #{mhsa_forward.1} parent=27 // pred_region
        %p156 = scmp.lt.s32.totalorder %s10, 1
        %s157 = scalar_select %p156, %s10, 1
        %s158 = smul.addr %s157, 16
        %s159 = smul.addr %s158, 8
        %s160 = scalar_lea.vmem %s0, %s159
      $region32: #{mhsa_forward.1} parent=27 // pred_fallthru
        _
    $region28: #{mhsa_forward.1} parent=5 // pred_fallthru
      _
    %p161 = scmp.le.s32.totalorder 1, %s10
    %p162 = scmp.lt.s32.totalorder %s10, 3
    %p163 = pnand %p161, %p162
    %p164 = pneg %p163
    // Predicated region
    $region33: #{mhsa_forward.1} parent=5 // pred_check
      _
    $region34: #{mhsa_forward.1} parent=5 // pred_check_branch
      %166 = sbr.rel (%p163) target = $region36
    $region35: #{mhsa_forward.1} parent=5 // pred_region
      %s167 = ssub.s32 %s10, 1
      %p168 = scmp.lt.s32.totalorder %s15, 1
      %s169 = scalar_select %p168, %s15, 1
      %s170 = smul.addr %s169, 16
      %s171 = smul.addr %s170, 8
      %s172 = scalar_lea.vmem %s0, %s171
      %p173 = pneg %p36
      %p174 = pneg %p33
      %p175 = pneg %p57
      %p176 = pneg %p54
      %p177 = pneg %p78
      %p178 = pneg %p75
      %p179 = pneg %p99
      %p180 = pneg %p96
      %p181 = pneg %p125
      %p182 = pneg %p122
      %p183 = scmp.lt.s32.totalorder %s15, 1
      %s184 = scalar_select %p183, %s15, 1
      %s185 = smul.addr %s184, 16
      %s186 = smul.addr %s185, 8
      %s187 = scalar_lea.vmem %s4, %s186
      %p188 = scmp.lt.s32.totalorder %s15, 1
      %s189 = scalar_select %p188, %s15, 1
      %s190 = smul.addr %s189, 16
      %s191 = smul.addr %s190, 8
      %s192 = scalar_lea.vmem %s0, %s191
      %p193 = scmp.lt.s32.totalorder %s15, 1
      %s194 = scalar_select %p193, %s15, 1
      %s195 = smul.addr %s194, 16
      %s196 = smul.addr %s195, 8
      %s197 = scalar_lea.vmem %s4, %s196
      %v198 = vld [vmem:[%s192] sm:$0xff]
      %v199 = vld [vmem:[%s192 + $0x8] sm:$0xff]
      %v200 = vld [vmem:[%s192 + $0x10] sm:$0xff]
      %v201 = vld [vmem:[%s192 + $0x18] sm:$0xff]
      %v202 = vld [vmem:[%s192 + $0x20] sm:$0xff]
      %v203 = vld [vmem:[%s192 + $0x28] sm:$0xff]
      %v204 = vld [vmem:[%s192 + $0x30] sm:$0xff]
      %v205 = vld [vmem:[%s192 + $0x38] sm:$0xff]
      %v206 = vld [vmem:[%s192 + $0x40] sm:$0xff]
      %v207 = vld [vmem:[%s192 + $0x48] sm:$0xff]
      %v208 = vld [vmem:[%s192 + $0x50] sm:$0xff]
      %v209 = vld [vmem:[%s192 + $0x58] sm:$0xff]
      %v210 = vld [vmem:[%s192 + $0x60] sm:$0xff]
      %v211 = vld [vmem:[%s192 + $0x68] sm:$0xff]
      %v212 = vld [vmem:[%s192 + $0x70] sm:$0xff]
      %v213 = vld [vmem:[%s192 + $0x78] sm:$0xff]
      %v214 = vld [vmem:[%s1] sm:$0xff]
      %v215 = vld [vmem:[%s1 + $0x8] sm:$0xff]
      %v216 = vld [vmem:[%s1 + $0x10] sm:$0xff]
      %v217 = vld [vmem:[%s1 + $0x18] sm:$0xff]
      %v218 = vld [vmem:[%s1 + $0x20] sm:$0xff]
      %v219 = vld [vmem:[%s1 + $0x28] sm:$0xff]
      %v220 = vld [vmem:[%s1 + $0x30] sm:$0xff]
      %v221 = vld [vmem:[%s1 + $0x38] sm:$0xff]
      %v222 = vld [vmem:[%s1 + $0x40] sm:$0xff]
      %v223 = vld [vmem:[%s1 + $0x48] sm:$0xff]
      %v224 = vld [vmem:[%s1 + $0x50] sm:$0xff]
      %v225 = vld [vmem:[%s1 + $0x58] sm:$0xff]
      %v226 = vld [vmem:[%s1 + $0x60] sm:$0xff]
      %v227 = vld [vmem:[%s1 + $0x68] sm:$0xff]
      %v228 = vld [vmem:[%s1 + $0x70] sm:$0xff]
      %v229 = vld [vmem:[%s1 + $0x78] sm:$0xff]
      %v230 = vld [vmem:[%s1 + $0x80] sm:$0xff]
      %v231 = vld [vmem:[%s1 + $0x88] sm:$0xff]
      %v232 = vld [vmem:[%s1 + $0x90] sm:$0xff]
      %v233 = vld [vmem:[%s1 + $0x98] sm:$0xff]
      %v234 = vld [vmem:[%s1 + $0xa0] sm:$0xff]
      %v235 = vld [vmem:[%s1 + $0xa8] sm:$0xff]
      %v236 = vld [vmem:[%s1 + $0xb0] sm:$0xff]
      %v237 = vld [vmem:[%s1 + $0xb8] sm:$0xff]
      %v238 = vld [vmem:[%s2] sm:$0xff]
      %v239 = vld [vmem:[%s2 + $0x8] sm:$0xff]
      %v240 = vld [vmem:[%s2 + $0x10] sm:$0xff]
      %v241 = vld [vmem:[%s2 + $0x18] sm:$0xff]
      %v242 = vld [vmem:[%s2 + $0x20] sm:$0xff]
      %v243 = vld [vmem:[%s2 + $0x28] sm:$0xff]
      %v244 = vld [vmem:[%s2 + $0x30] sm:$0xff]
      %v245 = vld [vmem:[%s2 + $0x38] sm:$0xff]
      %v246 = vld [vmem:[%s2 + $0x40] sm:$0xff]
      %v247 = vld [vmem:[%s2 + $0x48] sm:$0xff]
      %v248 = vld [vmem:[%s2 + $0x50] sm:$0xff]
      %v249 = vld [vmem:[%s2 + $0x58] sm:$0xff]
      %v250 = vld [vmem:[%s2 + $0x60] sm:$0xff]
      %v251 = vld [vmem:[%s2 + $0x68] sm:$0xff]
      %v252 = vld [vmem:[%s2 + $0x70] sm:$0xff]
      %v253 = vld [vmem:[%s2 + $0x78] sm:$0xff]
      %v254 = vld [vmem:[%s2 + $0x80] sm:$0xff]
      %v255 = vld [vmem:[%s2 + $0x88] sm:$0xff]
      %v256 = vld [vmem:[%s2 + $0x90] sm:$0xff]
      %v257 = vld [vmem:[%s2 + $0x98] sm:$0xff]
      %v258 = vld [vmem:[%s2 + $0xa0] sm:$0xff]
      %v259 = vld [vmem:[%s2 + $0xa8] sm:$0xff]
      %v260 = vld [vmem:[%s2 + $0xb0] sm:$0xff]
      %v261 = vld [vmem:[%s2 + $0xb8] sm:$0xff]
      %263 = vset.pattern.permute.xlu0 0
      %264 = vperm.xlu0 %263, %v238
      %v265 = vpop.permute.xlu0 %264
      %268 = vset.pattern.permute.xlu0 0
      %269 = vperm.xlu0 %268, %v239
      %v270 = vpop.permute.xlu0 %269
      %273 = vset.pattern.permute.xlu0 0
      %274 = vperm.xlu0 %273, %v240
      %v275 = vpop.permute.xlu0 %274
      %278 = vset.pattern.permute.xlu0 0
      %279 = vperm.xlu0 %278, %v241
      %v280 = vpop.permute.xlu0 %279
      %283 = vset.pattern.permute.xlu0 0
      %284 = vperm.xlu0 %283, %v242
      %v285 = vpop.permute.xlu0 %284
      %288 = vset.pattern.permute.xlu0 0
      %289 = vperm.xlu0 %288, %v243
      %v290 = vpop.permute.xlu0 %289
      %293 = vset.pattern.permute.xlu0 0
      %294 = vperm.xlu0 %293, %v244
      %v295 = vpop.permute.xlu0 %294
      %298 = vset.pattern.permute.xlu0 0
      %299 = vperm.xlu0 %298, %v245
      %v300 = vpop.permute.xlu0 %299
      %303 = vset.pattern.permute.xlu0 0
      %304 = vperm.xlu0 %303, %v246
      %v305 = vpop.permute.xlu0 %304
      %308 = vset.pattern.permute.xlu0 0
      %309 = vperm.xlu0 %308, %v247
      %v310 = vpop.permute.xlu0 %309
      %313 = vset.pattern.permute.xlu0 0
      %314 = vperm.xlu0 %313, %v248
      %v315 = vpop.permute.xlu0 %314
      %318 = vset.pattern.permute.xlu0 0
      %319 = vperm.xlu0 %318, %v249
      %v320 = vpop.permute.xlu0 %319
      %323 = vset.pattern.permute.xlu0 0
      %324 = vperm.xlu0 %323, %v250
      %v325 = vpop.permute.xlu0 %324
      %328 = vset.pattern.permute.xlu0 0
      %329 = vperm.xlu0 %328, %v251
      %v330 = vpop.permute.xlu0 %329
      %333 = vset.pattern.permute.xlu0 0
      %334 = vperm.xlu0 %333, %v252
      %v335 = vpop.permute.xlu0 %334
      %338 = vset.pattern.permute.xlu0 0
      %339 = vperm.xlu0 %338, %v253
      %v340 = vpop.permute.xlu0 %339
      %343 = vset.pattern.permute.xlu0 0
      %344 = vperm.xlu0 %343, %v254
      %v345 = vpop.permute.xlu0 %344
      %348 = vset.pattern.permute.xlu0 0
      %349 = vperm.xlu0 %348, %v255
      %v350 = vpop.permute.xlu0 %349
      %353 = vset.pattern.permute.xlu0 0
      %354 = vperm.xlu0 %353, %v256
      %v355 = vpop.permute.xlu0 %354
      %358 = vset.pattern.permute.xlu0 0
      %359 = vperm.xlu0 %358, %v257
      %v360 = vpop.permute.xlu0 %359
      %363 = vset.pattern.permute.xlu0 0
      %364 = vperm.xlu0 %363, %v258
      %v365 = vpop.permute.xlu0 %364
      %368 = vset.pattern.permute.xlu0 0
      %369 = vperm.xlu0 %368, %v259
      %v370 = vpop.permute.xlu0 %369
      %373 = vset.pattern.permute.xlu0 0
      %374 = vperm.xlu0 %373, %v260
      %v375 = vpop.permute.xlu0 %374
      %378 = vset.pattern.permute.xlu0 0
      %379 = vperm.xlu0 %378, %v261
      %v380 = vpop.permute.xlu0 %379
      %vm382 = vcmask 523264
      %v384 = vsel %vm382, %v214, 0
      %v387 = vsel %vm382, %v215, 0
      %v390 = vsel %vm382, %v216, 0
      %v393 = vsel %vm382, %v217, 0
      %v396 = vsel %vm382, %v218, 0
      %v399 = vsel %vm382, %v219, 0
      %v402 = vsel %vm382, %v220, 0
      %v405 = vsel %vm382, %v221, 0
      %v408 = vsel %vm382, %v222, 0
      %v411 = vsel %vm382, %v223, 0
      %v414 = vsel %vm382, %v224, 0
      %v417 = vsel %vm382, %v225, 0
      %v420 = vsel %vm382, %v226, 0
      %v423 = vsel %vm382, %v227, 0
      %v426 = vsel %vm382, %v228, 0
      %v429 = vsel %vm382, %v229, 0
      %v432 = vsel %vm382, %v230, 0
      %v435 = vsel %vm382, %v231, 0
      %v438 = vsel %vm382, %v232, 0
      %v441 = vsel %vm382, %v233, 0
      %v444 = vsel %vm382, %v234, 0
      %v447 = vsel %vm382, %v235, 0
      %v450 = vsel %vm382, %v236, 0
      %v453 = vsel %vm382, %v237, 0
      %455 = vmatprep.subr.mxu0 %v199
      %456 = vmatpush1.msra.mxu0 %v198
      %457 = vmatprep.subr.mxu0 %v201
      %458 = vmatpush1.msra.mxu0 %v200
      %459 = vmatprep.subr.mxu0 %v203
      %460 = vmatpush1.msra.mxu0 %v202
      %461 = vmatprep.subr.mxu0 %v205
      %462 = vmatpush1.msra.mxu0 %v204
      %463 = vmatprep.subr.mxu0 %v207
      %464 = vmatpush1.msra.mxu0 %v206
      %465 = vmatprep.subr.mxu0 %v209
      %466 = vmatpush1.msra.mxu0 %v208
      %467 = vmatprep.subr.mxu0 %v211
      %468 = vmatpush1.msra.mxu0 %v210
      %469 = vmatprep.subr.mxu0 %v213
      %470 = vmatpush1.msra.mxu0 %v212
      %471 = vmatprep.subr.mxu0 0.0
      %472 = vmatpush1.msra.mxu0 0.0
      %473 = vmatprep.subr.mxu0 0.0
      %474 = vmatpush1.msra.mxu0 0.0
      %475 = vmatprep.subr.mxu0 0.0
      %476 = vmatpush1.msra.mxu0 0.0
      %477 = vmatprep.subr.mxu0 0.0
      %478 = vmatpush1.msra.mxu0 0.0
      %479 = vmatprep.subr.mxu0 0.0
      %480 = vmatpush1.msra.mxu0 0.0
      %481 = vmatprep.subr.mxu0 0.0
      %482 = vmatpush1.msra.mxu0 0.0
      %483 = vmatprep.subr.mxu0 0.0
      %484 = vmatpush1.msra.mxu0 0.0
      %485 = vmatprep.subr.mxu0 0.0
      %486 = vmatpush1.msra.mxu0 0.0
      %487 = vmatprep.subr.mxu0 0.0
      %488 = vmatpush1.msra.mxu0 0.0
      %489 = vmatprep.subr.mxu0 0.0
      %490 = vmatpush1.msra.mxu0 0.0
      %491 = vmatprep.subr.mxu0 0.0
      %492 = vmatpush1.msra.mxu0 0.0
      %493 = vmatprep.subr.mxu0 0.0
      %494 = vmatpush1.msra.mxu0 0.0
      %495 = vmatprep.subr.mxu0 0.0
      %496 = vmatpush1.msra.mxu0 0.0
      %497 = vmatprep.subr.mxu0 0.0
      %498 = vmatpush1.msra.mxu0 0.0
      %499 = vmatprep.subr.mxu0 0.0
      %500 = vmatpush1.msra.mxu0 0.0
      %501 = vmatprep.subr.mxu0 0.0
      %502 = vmatpush1.msra.mxu0 0.0
      %503 = vmatprep.subr.mxu0 0.0
      %504 = vmatpush1.msra.mxu0 0.0
      %505 = vmatprep.subr.mxu0 0.0
      %506 = vmatpush1.msra.mxu0 0.0
      %507 = vmatprep.subr.mxu0 0.0
      %508 = vmatpush1.msra.mxu0 0.0
      %509 = vmatprep.subr.mxu0 0.0
      %510 = vmatpush1.msra.mxu0 0.0
      %511 = vmatprep.subr.mxu0 0.0
      %512 = vmatpush1.msra.mxu0 0.0
      %513 = vmatprep.subr.mxu0 0.0
      %514 = vmatpush1.msra.mxu0 0.0
      %515 = vmatprep.subr.mxu0 0.0
      %516 = vmatpush1.msra.mxu0 0.0
      %517 = vmatprep.subr.mxu0 0.0
      %518 = vmatpush1.msra.mxu0 0.0
      %519 = vmatprep.mubr.f32.mxu0 0.0
      %520 = vmatmul.mubr.f32.gmra.mrb[0].mxu0 %v384
      %v521 = vpop.f32.mrb[0].mxu0
      %v522 = vadd.f32 %v265, %v521
      %v523 = vpop.f32.mrb[0].mxu0
      %v524 = vadd.f32 %v265, %v523
      %525 = vmatprep.mubr.f32.mxu0 0.0
      %526 = vmatmul.mubr.f32.gmra.mrb[0].mxu0 %v387
      %v527 = vpop.f32.mrb[0].mxu0
      %v528 = vadd.f32 %v270, %v527
      %v529 = vpop.f32.mrb[0].mxu0
      %v530 = vadd.f32 %v270, %v529
      %531 = vmatprep.mubr.f32.mxu0 0.0
      %532 = vmatmul.mubr.f32.gmra.mrb[0].mxu0 %v390
      %v533 = vpop.f32.mrb[0].mxu0
      %v534 = vadd.f32 %v275, %v533
      %v535 = vpop.f32.mrb[0].mxu0
      %v536 = vadd.f32 %v275, %v535
      %537 = vmatprep.mubr.f32.mxu0 0.0
      %538 = vmatmul.mubr.f32.gmra.mrb[0].mxu0 %v393
      %v539 = vpop.f32.mrb[0].mxu0
      %v540 = vadd.f32 %v280, %v539
      %v541 = vpop.f32.mrb[0].mxu0
      %v542 = vadd.f32 %v280, %v541
      %543 = vmatprep.mubr.f32.mxu0 0.0
      %544 = vmatmul.mubr.f32.gmra.mrb[0].mxu0 %v396
      %v545 = vpop.f32.mrb[0].mxu0
      %v546 = vadd.f32 %v285, %v545
      %v547 = vpop.f32.mrb[0].mxu0
      %v548 = vadd.f32 %v285, %v547
      %549 = vmatprep.mubr.f32.mxu0 0.0
      %550 = vmatmul.mubr.f32.gmra.mrb[0].mxu0 %v399
      %v551 = vpop.f32.mrb[0].mxu0
      %v552 = vadd.f32 %v290, %v551
      %v553 = vpop.f32.mrb[0].mxu0
      %v554 = vadd.f32 %v290, %v553
      %555 = vmatprep.mubr.f32.mxu0 0.0
      %556 = vmatmul.mubr.f32.gmra.mrb[0].mxu0 %v402
      %v557 = vpop.f32.mrb[0].mxu0
      %v558 = vadd.f32 %v295, %v557
      %v559 = vpop.f32.mrb[0].mxu0
      %v560 = vadd.f32 %v295, %v559
      %561 = vmatprep.mubr.f32.mxu0 0.0
      %562 = vmatmul.mubr.f32.gmra.mrb[0].mxu0 %v405
      %v563 = vpop.f32.mrb[0].mxu0
      %v564 = vadd.f32 %v300, %v563
      %v565 = vpop.f32.mrb[0].mxu0
      %v566 = vadd.f32 %v300, %v565
      %567 = vmatprep.mubr.f32.mxu0 0.0
      %568 = vmatmul.mubr.f32.gmra.mrb[0].mxu0 %v408
      %v569 = vpop.f32.mrb[0].mxu0
      %v570 = vadd.f32 %v305, %v569
      %v571 = vpop.f32.mrb[0].mxu0
      %v572 = vadd.f32 %v305, %v571
      %573 = vmatprep.mubr.f32.mxu0 0.0
      %574 = vmatmul.mubr.f32.gmra.mrb[0].mxu0 %v411
      %v575 = vpop.f32.mrb[0].mxu0
      %v576 = vadd.f32 %v310, %v575
      %v577 = vpop.f32.mrb[0].mxu0
      %v578 = vadd.f32 %v310, %v577
      %579 = vmatprep.mubr.f32.mxu0 0.0
      %580 = vmatmul.mubr.f32.gmra.mrb[0].mxu0 %v414
      %v581 = vpop.f32.mrb[0].mxu0
      %v582 = vadd.f32 %v315, %v581
      %v583 = vpop.f32.mrb[0].mxu0
      %v584 = vadd.f32 %v315, %v583
      %585 = vmatprep.mubr.f32.mxu0 0.0
      %586 = vmatmul.mubr.f32.gmra.mrb[0].mxu0 %v417
      %v587 = vpop.f32.mrb[0].mxu0
      %v588 = vadd.f32 %v320, %v587
      %v589 = vpop.f32.mrb[0].mxu0
      %v590 = vadd.f32 %v320, %v589
      %591 = vmatprep.mubr.f32.mxu0 0.0
      %592 = vmatmul.mubr.f32.gmra.mrb[0].mxu0 %v420
      %v593 = vpop.f32.mrb[0].mxu0
      %v594 = vadd.f32 %v325, %v593
      %v595 = vpop.f32.mrb[0].mxu0
      %v596 = vadd.f32 %v325, %v595
      %597 = vmatprep.mubr.f32.mxu0 0.0
      %598 = vmatmul.mubr.f32.gmra.mrb[0].mxu0 %v423
      %v599 = vpop.f32.mrb[0].mxu0
      %v600 = vadd.f32 %v330, %v599
      %v601 = vpop.f32.mrb[0].mxu0
      %v602 = vadd.f32 %v330, %v601
      %603 = vmatprep.mubr.f32.mxu0 0.0
      %604 = vmatmul.mubr.f32.gmra.mrb[0].mxu0 %v426
      %v605 = vpop.f32.mrb[0].mxu0
      %v606 = vadd.f32 %v335, %v605
      %v607 = vpop.f32.mrb[0].mxu0
      %v608 = vadd.f32 %v335, %v607
      %609 = vmatprep.mubr.f32.mxu0 0.0
      %610 = vmatmul.mubr.f32.gmra.mrb[0].mxu0 %v429
      %v611 = vpop.f32.mrb[0].mxu0
      %v612 = vadd.f32 %v340, %v611
      %v613 = vpop.f32.mrb[0].mxu0
      %v614 = vadd.f32 %v340, %v613
      %615 = vmatprep.mubr.f32.mxu0 0.0
      %616 = vmatmul.mubr.f32.gmra.mrb[0].mxu0 %v432
      %v617 = vpop.f32.mrb[0].mxu0
      %v618 = vadd.f32 %v345, %v617
      %v619 = vpop.f32.mrb[0].mxu0
      %v620 = vadd.f32 %v345, %v619
      %621 = vmatprep.mubr.f32.mxu0 0.0
      %622 = vmatmul.mubr.f32.gmra.mrb[0].mxu0 %v435
      %v623 = vpop.f32.mrb[0].mxu0
      %v624 = vadd.f32 %v350, %v623
      %v625 = vpop.f32.mrb[0].mxu0
      %v626 = vadd.f32 %v350, %v625
      %627 = vmatprep.mubr.f32.mxu0 0.0
      %628 = vmatmul.mubr.f32.gmra.mrb[0].mxu0 %v438
      %v629 = vpop.f32.mrb[0].mxu0
      %v630 = vadd.f32 %v355, %v629
      %v631 = vpop.f32.mrb[0].mxu0
      %v632 = vadd.f32 %v355, %v631
      %633 = vmatprep.mubr.f32.mxu0 0.0
      %634 = vmatmul.mubr.f32.gmra.mrb[0].mxu0 %v441
      %v635 = vpop.f32.mrb[0].mxu0
      %v636 = vadd.f32 %v360, %v635
      %v637 = vpop.f32.mrb[0].mxu0
      %v638 = vadd.f32 %v360, %v637
      %639 = vmatprep.mubr.f32.mxu0 0.0
      %640 = vmatmul.mubr.f32.gmra.mrb[0].mxu0 %v444
      %v641 = vpop.f32.mrb[0].mxu0
      %v642 = vadd.f32 %v365, %v641
      %v643 = vpop.f32.mrb[0].mxu0
      %v644 = vadd.f32 %v365, %v643
      %645 = vmatprep.mubr.f32.mxu0 0.0
      %646 = vmatmul.mubr.f32.gmra.mrb[0].mxu0 %v447
      %v647 = vpop.f32.mrb[0].mxu0
      %v648 = vadd.f32 %v370, %v647
      %v649 = vpop.f32.mrb[0].mxu0
      %v650 = vadd.f32 %v370, %v649
      %651 = vmatprep.mubr.f32.mxu0 0.0
      %652 = vmatmul.mubr.f32.gmra.mrb[0].mxu0 %v450
      %v653 = vpop.f32.mrb[0].mxu0
      %v654 = vadd.f32 %v375, %v653
      %v655 = vpop.f32.mrb[0].mxu0
      %v656 = vadd.f32 %v375, %v655
      %657 = vmatprep.mubr.f32.mxu0 0.0
      %658 = vmatmul.mubr.f32.gmra.mrb[0].mxu0 %v453
      %v659 = vpop.f32.mrb[0].mxu0
      %v660 = vadd.f32 %v380, %v659
      %v661 = vpop.f32.mrb[0].mxu0
      %v662 = vadd.f32 %v380, %v661
      %663 = vdwg.mxu0
      %v664 = vld [vmem:[%s3] sm:$0xff]
      %v665 = vld [vmem:[%s3 + $0x8] sm:$0xff]
      %v666 = vld [vmem:[%s3 + $0x10] sm:$0xff]
      %v667 = vld [vmem:[%s3 + $0x18] sm:$0xff]
      %v668 = vld [vmem:[%s3 + $0x20] sm:$0xff]
      %v669 = vld [vmem:[%s3 + $0x28] sm:$0xff]
      %v670 = vld [vmem:[%s3 + $0x30] sm:$0xff]
      %v671 = vld [vmem:[%s3 + $0x38] sm:$0xff]
      %v672 = vld [vmem:[%s3 + $0x40] sm:$0xff]
      %v673 = vld [vmem:[%s3 + $0x48] sm:$0xff]
      %v674 = vld [vmem:[%s3 + $0x50] sm:$0xff]
      %v675 = vld [vmem:[%s3 + $0x58] sm:$0xff]
      %v676 = vld [vmem:[%s3 + $0x60] sm:$0xff]
      %v677 = vld [vmem:[%s3 + $0x68] sm:$0xff]
      %v678 = vld [vmem:[%s3 + $0x70] sm:$0xff]
      %v679 = vld [vmem:[%s3 + $0x78] sm:$0xff]
      %680 = vxpose.xlu0.b32.start [1/16] %v664, 128
      %681 = vxpose.xlu0.b32.cont [2/16] %v666, 128
      %682 = vxpose.xlu0.b32.cont [3/16] 0.0, 128
      %683 = vxpose.xlu0.b32.cont [4/16] 0.0, 128
      %684 = vxpose.xlu0.b32.cont [5/16] 0.0, 128
      %685 = vxpose.xlu0.b32.cont [6/16] 0.0, 128
      %686 = vxpose.xlu0.b32.cont [7/16] 0.0, 128
      %687 = vxpose.xlu0.b32.cont [8/16] 0.0, 128
      %688 = vxpose.xlu0.b32.cont [9/16] 0.0, 128
      %689 = vxpose.xlu0.b32.cont [10/16] 0.0, 128
      %690 = vxpose.xlu0.b32.cont [11/16] 0.0, 128
      %691 = vxpose.xlu0.b32.cont [12/16] 0.0, 128
      %692 = vxpose.xlu0.b32.cont [13/16] 0.0, 128
      %693 = vxpose.xlu0.b32.cont [14/16] 0.0, 128
      %694 = vxpose.xlu0.b32.cont [15/16] 0.0, 128
      %695 = vxpose.xlu0.b32.end [16/16] 0.0, 128
      %v696 = vpop.trf.xlu0
      %v697 = vpop.trf.xlu0
      %v698 = vpop.trf.xlu0
      %v699 = vpop.trf.xlu0
      %v700 = vpop.trf.xlu0
      %v701 = vpop.trf.xlu0
      %v702 = vpop.trf.xlu0
      %v703 = vpop.trf.xlu0
      %v704 = vpop.trf.xlu0
      %v705 = vpop.trf.xlu0
      %v706 = vpop.trf.xlu0
      %v707 = vpop.trf.xlu0
      %v708 = vpop.trf.xlu0
      %v709 = vpop.trf.xlu0
      %v710 = vpop.trf.xlu0
      %v711 = vpop.trf.xlu0
      %712 = vxpose.xlu0.b32.start [1/16] %v665, 128
      %713 = vxpose.xlu0.b32.cont [2/16] %v667, 128
      %714 = vxpose.xlu0.b32.cont [3/16] 0.0, 128
      %715 = vxpose.xlu0.b32.cont [4/16] 0.0, 128
      %716 = vxpose.xlu0.b32.cont [5/16] 0.0, 128
      %717 = vxpose.xlu0.b32.cont [6/16] 0.0, 128
      %718 = vxpose.xlu0.b32.cont [7/16] 0.0, 128
      %719 = vxpose.xlu0.b32.cont [8/16] 0.0, 128
      %720 = vxpose.xlu0.b32.cont [9/16] 0.0, 128
      %721 = vxpose.xlu0.b32.cont [10/16] 0.0, 128
      %722 = vxpose.xlu0.b32.cont [11/16] 0.0, 128
      %723 = vxpose.xlu0.b32.cont [12/16] 0.0, 128
      %724 = vxpose.xlu0.b32.cont [13/16] 0.0, 128
      %725 = vxpose.xlu0.b32.cont [14/16] 0.0, 128
      %726 = vxpose.xlu0.b32.cont [15/16] 0.0, 128
      %727 = vxpose.xlu0.b32.end [16/16] 0.0, 128
      %v728 = vpop.trf.xlu0
      %v729 = vpop.trf.xlu0
      %v730 = vpop.trf.xlu0
      %v731 = vpop.trf.xlu0
      %v732 = vpop.trf.xlu0
      %v733 = vpop.trf.xlu0
      %v734 = vpop.trf.xlu0
      %v735 = vpop.trf.xlu0
      %v736 = vpop.trf.xlu0
      %v737 = vpop.trf.xlu0
      %v738 = vpop.trf.xlu0
      %v739 = vpop.trf.xlu0
      %v740 = vpop.trf.xlu0
      %v741 = vpop.trf.xlu0
      %v742 = vpop.trf.xlu0
      %v743 = vpop.trf.xlu0
      %vm744 = vcmask 130048
      %v746 = vsel %vm744, %v696, 0
      %v749 = vsel %vm744, %v697, 0
      %v752 = vsel %vm744, %v698, 0
      %v755 = vsel %vm744, %v699, 0
      %v758 = vsel %vm744, %v700, 0
      %v761 = vsel %vm744, %v701, 0
      %v764 = vsel %vm744, %v702, 0
      %v767 = vsel %vm744, %v703, 0
      %v770 = vsel %vm744, %v704, 0
      %v773 = vsel %vm744, %v705, 0
      %v776 = vsel %vm744, %v706, 0
      %v779 = vsel %vm744, %v707, 0
      %v782 = vsel %vm744, %v708, 0
      %v785 = vsel %vm744, %v709, 0
      %v788 = vsel %vm744, %v710, 0
      %v791 = vsel %vm744, %v711, 0
      %v794 = vsel %vm744, %v728, 0
      %v797 = vsel %vm744, %v729, 0
      %v800 = vsel %vm744, %v730, 0
      %v803 = vsel %vm744, %v731, 0
      %v806 = vsel %vm744, %v732, 0
      %v809 = vsel %vm744, %v733, 0
      %v812 = vsel %vm744, %v734, 0
      %v815 = vsel %vm744, %v735, 0
      %v818 = vsel %vm744, %v736, 0
      %v821 = vsel %vm744, %v737, 0
      %v824 = vsel %vm744, %v738, 0
      %v827 = vsel %vm744, %v739, 0
      %v830 = vsel %vm744, %v740, 0
      %v833 = vsel %vm744, %v741, 0
      %v836 = vsel %vm744, %v742, 0
      %v839 = vsel %vm744, %v743, 0
      %841 = vmatprep.subr.mxu0 %v524
      %842 = vmatpush1.msra.mxu0 %v522
      %843 = vmatprep.subr.mxu0 %v530
      %844 = vmatpush1.msra.mxu0 %v528
      %845 = vmatprep.subr.mxu0 0.0
      %846 = vmatpush1.msra.mxu0 0.0
      %847 = vmatprep.subr.mxu0 0.0
      %848 = vmatpush1.msra.mxu0 0.0
      %849 = vmatprep.subr.mxu0 0.0
      %850 = vmatpush1.msra.mxu0 0.0
      %851 = vmatprep.subr.mxu0 0.0
      %852 = vmatpush1.msra.mxu0 0.0
      %853 = vmatprep.subr.mxu0 0.0
      %854 = vmatpush1.msra.mxu0 0.0
      %855 = vmatprep.subr.mxu0 0.0
      %856 = vmatpush1.msra.mxu0 0.0
      %857 = vmatprep.subr.mxu0 0.0
      %858 = vmatpush1.msra.mxu0 0.0
      %859 = vmatprep.subr.mxu0 0.0
      %860 = vmatpush1.msra.mxu0 0.0
      %861 = vmatprep.subr.mxu0 0.0
      %862 = vmatpush1.msra.mxu0 0.0
      %863 = vmatprep.subr.mxu0 0.0
      %864 = vmatpush1.msra.mxu0 0.0
      %865 = vmatprep.subr.mxu0 0.0
      %866 = vmatpush1.msra.mxu0 0.0
      %867 = vmatprep.subr.mxu0 0.0
      %868 = vmatpush1.msra.mxu0 0.0
      %869 = vmatprep.subr.mxu0 0.0
      %870 = vmatpush1.msra.mxu0 0.0
      %871 = vmatprep.subr.mxu0 0.0
      %872 = vmatpush1.msra.mxu0 0.0
      %873 = vmatprep.subr.mxu0 0.0
      %874 = vmatpush1.msra.mxu0 0.0
      %875 = vmatprep.subr.mxu0 0.0
      %876 = vmatpush1.msra.mxu0 0.0
      %877 = vmatprep.subr.mxu0 0.0
      %878 = vmatpush1.msra.mxu0 0.0
      %879 = vmatprep.subr.mxu0 0.0
      %880 = vmatpush1.msra.mxu0 0.0
      %881 = vmatprep.subr.mxu0 0.0
      %882 = vmatpush1.msra.mxu0 0.0
      %883 = vmatprep.subr.mxu0 0.0
      %884 = vmatpush1.msra.mxu0 0.0
      %885 = vmatprep.subr.mxu0 0.0
      %886 = vmatpush1.msra.mxu0 0.0
      %887 = vmatprep.subr.mxu0 0.0
      %888 = vmatpush1.msra.mxu0 0.0
      %889 = vmatprep.subr.mxu0 0.0
      %890 = vmatpush1.msra.mxu0 0.0
      %891 = vmatprep.subr.mxu0 0.0
      %892 = vmatpush1.msra.mxu0 0.0
      %893 = vmatprep.subr.mxu0 0.0
      %894 = vmatpush1.msra.mxu0 0.0
      %895 = vmatprep.subr.mxu0 0.0
      %896 = vmatpush1.msra.mxu0 0.0
      %897 = vmatprep.subr.mxu0 0.0
      %898 = vmatpush1.msra.mxu0 0.0
      %899 = vmatprep.subr.mxu0 0.0
      %900 = vmatpush1.msra.mxu0 0.0
      %901 = vmatprep.subr.mxu0 0.0
      %902 = vmatpush1.msra.mxu0 0.0
      %903 = vmatprep.subr.mxu0 0.0
      %904 = vmatpush1.msra.mxu0 0.0
      %905 = vmatprep.mubr.f32.mxu0 0.0
      %906 = vmatmul.mubr.f32.gmra.mrb[0].mxu0 %v746
      %v907 = vpop.f32.mrb[0].mxu0
      %v908 = vadd.f32 0.0, %v907
      %v909 = vpop.f32.mrb[0].mxu0
      %v910 = vadd.f32 0.0, %v909
      %911 = vmatprep.mubr.f32.mxu0 0.0
      %912 = vmatmul.mubr.f32.gmra.mrb[0].mxu0 %v749
      %v913 = vpop.f32.mrb[0].mxu0
      %v914 = vadd.f32 0.0, %v913
      %v915 = vpop.f32.mrb[0].mxu0
      %v916 = vadd.f32 0.0, %v915
      %917 = vmatprep.mubr.f32.mxu0 0.0
      %918 = vmatmul.mubr.f32.gmra.mrb[0].mxu0 %v752
      %v919 = vpop.f32.mrb[0].mxu0
      %v920 = vadd.f32 0.0, %v919
      %v921 = vpop.f32.mrb[0].mxu0
      %v922 = vadd.f32 0.0, %v921
      %923 = vmatprep.mubr.f32.mxu0 0.0
      %924 = vmatmul.mubr.f32.gmra.mrb[0].mxu0 %v755
      %v925 = vpop.f32.mrb[0].mxu0
      %v926 = vadd.f32 0.0, %v925
      %v927 = vpop.f32.mrb[0].mxu0
      %v928 = vadd.f32 0.0, %v927
      %929 = vmatprep.mubr.f32.mxu0 0.0
      %930 = vmatmul.mubr.f32.gmra.mrb[0].mxu0 %v758
      %v931 = vpop.f32.mrb[0].mxu0
      %v932 = vadd.f32 0.0, %v931
      %v933 = vpop.f32.mrb[0].mxu0
      %v934 = vadd.f32 0.0, %v933
      %935 = vmatprep.mubr.f32.mxu0 0.0
      %936 = vmatmul.mubr.f32.gmra.mrb[0].mxu0 %v761
      %v937 = vpop.f32.mrb[0].mxu0
      %v938 = vadd.f32 0.0, %v937
      %v939 = vpop.f32.mrb[0].mxu0
      %v940 = vadd.f32 0.0, %v939
      %941 = vmatprep.mubr.f32.mxu0 0.0
      %942 = vmatmul.mubr.f32.gmra.mrb[0].mxu0 %v764
      %v943 = vpop.f32.mrb[0].mxu0
      %v944 = vadd.f32 0.0, %v943
      %v945 = vpop.f32.mrb[0].mxu0
      %v946 = vadd.f32 0.0, %v945
      %947 = vmatprep.mubr.f32.mxu0 0.0
      %948 = vmatmul.mubr.f32.gmra.mrb[0].mxu0 %v767
      %v949 = vpop.f32.mrb[0].mxu0
      %v950 = vadd.f32 0.0, %v949
      %v951 = vpop.f32.mrb[0].mxu0
      %v952 = vadd.f32 0.0, %v951
      %953 = vmatprep.mubr.f32.mxu0 0.0
      %954 = vmatmul.mubr.f32.gmra.mrb[0].mxu0 %v770
      %v955 = vpop.f32.mrb[0].mxu0
      %v956 = vadd.f32 0.0, %v955
      %v957 = vpop.f32.mrb[0].mxu0
      %v958 = vadd.f32 0.0, %v957
      %959 = vmatprep.mubr.f32.mxu0 0.0
      %960 = vmatmul.mubr.f32.gmra.mrb[0].mxu0 %v773
      %v961 = vpop.f32.mrb[0].mxu0
      %v962 = vadd.f32 0.0, %v961
      %v963 = vpop.f32.mrb[0].mxu0
      %v964 = vadd.f32 0.0, %v963
      %965 = vmatprep.mubr.f32.mxu0 0.0
      %966 = vmatmul.mubr.f32.gmra.mrb[0].mxu0 %v776
      %v967 = vpop.f32.mrb[0].mxu0
      %v968 = vadd.f32 0.0, %v967
      %v969 = vpop.f32.mrb[0].mxu0
      %v970 = vadd.f32 0.0, %v969
      %971 = vmatprep.mubr.f32.mxu0 0.0
      %972 = vmatmul.mubr.f32.gmra.mrb[0].mxu0 %v779
      %v973 = vpop.f32.mrb[0].mxu0
      %v974 = vadd.f32 0.0, %v973
      %v975 = vpop.f32.mrb[0].mxu0
      %v976 = vadd.f32 0.0, %v975
      %977 = vmatprep.mubr.f32.mxu0 0.0
      %978 = vmatmul.mubr.f32.gmra.mrb[0].mxu0 %v782
      %v979 = vpop.f32.mrb[0].mxu0
      %v980 = vadd.f32 0.0, %v979
      %v981 = vpop.f32.mrb[0].mxu0
      %v982 = vadd.f32 0.0, %v981
      %983 = vmatprep.mubr.f32.mxu0 0.0
      %984 = vmatmul.mubr.f32.gmra.mrb[0].mxu0 %v785
      %v985 = vpop.f32.mrb[0].mxu0
      %v986 = vadd.f32 0.0, %v985
      %v987 = vpop.f32.mrb[0].mxu0
      %v988 = vadd.f32 0.0, %v987
      %989 = vmatprep.mubr.f32.mxu0 0.0
      %990 = vmatmul.mubr.f32.gmra.mrb[0].mxu0 %v788
      %v991 = vpop.f32.mrb[0].mxu0
      %v992 = vadd.f32 0.0, %v991
      %v993 = vpop.f32.mrb[0].mxu0
      %v994 = vadd.f32 0.0, %v993
      %995 = vmatprep.mubr.f32.mxu0 0.0
      %996 = vmatmul.mubr.f32.gmra.mrb[0].mxu0 %v791
      %v997 = vpop.f32.mrb[0].mxu0
      %v998 = vadd.f32 0.0, %v997
      %v999 = vpop.f32.mrb[0].mxu0
      %v1000 = vadd.f32 0.0, %v999
      %1001 = vmatprep.mubr.f32.mxu0 0.0
      %1002 = vmatmul.mubr.f32.gmra.mrb[0].mxu0 %v794
      %v1003 = vpop.f32.mrb[0].mxu0
      %v1004 = vadd.f32 0.0, %v1003
      %v1005 = vpop.f32.mrb[0].mxu0
      %v1006 = vadd.f32 0.0, %v1005
      %1007 = vmatprep.mubr.f32.mxu0 0.0
      %1008 = vmatmul.mubr.f32.gmra.mrb[0].mxu0 %v797
      %v1009 = vpop.f32.mrb[0].mxu0
      %v1010 = vadd.f32 0.0, %v1009
      %v1011 = vpop.f32.mrb[0].mxu0
      %v1012 = vadd.f32 0.0, %v1011
      %1013 = vmatprep.mubr.f32.mxu0 0.0
      %1014 = vmatmul.mubr.f32.gmra.mrb[0].mxu0 %v800
      %v1015 = vpop.f32.mrb[0].mxu0
      %v1016 = vadd.f32 0.0, %v1015
      %v1017 = vpop.f32.mrb[0].mxu0
      %v1018 = vadd.f32 0.0, %v1017
      %1019 = vmatprep.mubr.f32.mxu0 0.0
      %1020 = vmatmul.mubr.f32.gmra.mrb[0].mxu0 %v803
      %v1021 = vpop.f32.mrb[0].mxu0
      %v1022 = vadd.f32 0.0, %v1021
      %v1023 = vpop.f32.mrb[0].mxu0
      %v1024 = vadd.f32 0.0, %v1023
      %1025 = vmatprep.mubr.f32.mxu0 0.0
      %1026 = vmatmul.mubr.f32.gmra.mrb[0].mxu0 %v806
      %v1027 = vpop.f32.mrb[0].mxu0
      %v1028 = vadd.f32 0.0, %v1027
      %v1029 = vpop.f32.mrb[0].mxu0
      %v1030 = vadd.f32 0.0, %v1029
      %1031 = vmatprep.mubr.f32.mxu0 0.0
      %1032 = vmatmul.mubr.f32.gmra.mrb[0].mxu0 %v809
      %v1033 = vpop.f32.mrb[0].mxu0
      %v1034 = vadd.f32 0.0, %v1033
      %v1035 = vpop.f32.mrb[0].mxu0
      %v1036 = vadd.f32 0.0, %v1035
      %1037 = vmatprep.mubr.f32.mxu0 0.0
      %1038 = vmatmul.mubr.f32.gmra.mrb[0].mxu0 %v812
      %v1039 = vpop.f32.mrb[0].mxu0
      %v1040 = vadd.f32 0.0, %v1039
      %v1041 = vpop.f32.mrb[0].mxu0
      %v1042 = vadd.f32 0.0, %v1041
      %1043 = vmatprep.mubr.f32.mxu0 0.0
      %1044 = vmatmul.mubr.f32.gmra.mrb[0].mxu0 %v815
      %v1045 = vpop.f32.mrb[0].mxu0
      %v1046 = vadd.f32 0.0, %v1045
      %v1047 = vpop.f32.mrb[0].mxu0
      %v1048 = vadd.f32 0.0, %v1047
      %1049 = vmatprep.mubr.f32.mxu0 0.0
      %1050 = vmatmul.mubr.f32.gmra.mrb[0].mxu0 %v818
      %v1051 = vpop.f32.mrb[0].mxu0
      %v1052 = vadd.f32 0.0, %v1051
      %v1053 = vpop.f32.mrb[0].mxu0
      %v1054 = vadd.f32 0.0, %v1053
      %1055 = vmatprep.mubr.f32.mxu0 0.0
      %1056 = vmatmul.mubr.f32.gmra.mrb[0].mxu0 %v821
      %v1057 = vpop.f32.mrb[0].mxu0
      %v1058 = vadd.f32 0.0, %v1057
      %v1059 = vpop.f32.mrb[0].mxu0
      %v1060 = vadd.f32 0.0, %v1059
      %1061 = vmatprep.mubr.f32.mxu0 0.0
      %1062 = vmatmul.mubr.f32.gmra.mrb[0].mxu0 %v824
      %v1063 = vpop.f32.mrb[0].mxu0
      %v1064 = vadd.f32 0.0, %v1063
      %v1065 = vpop.f32.mrb[0].mxu0
      %v1066 = vadd.f32 0.0, %v1065
      %1067 = vmatprep.mubr.f32.mxu0 0.0
      %1068 = vmatmul.mubr.f32.gmra.mrb[0].mxu0 %v827
      %v1069 = vpop.f32.mrb[0].mxu0
      %v1070 = vadd.f32 0.0, %v1069
      %v1071 = vpop.f32.mrb[0].mxu0
      %v1072 = vadd.f32 0.0, %v1071
      %1073 = vmatprep.mubr.f32.mxu0 0.0
      %1074 = vmatmul.mubr.f32.gmra.mrb[0].mxu0 %v830
      %v1075 = vpop.f32.mrb[0].mxu0
      %v1076 = vadd.f32 0.0, %v1075
      %v1077 = vpop.f32.mrb[0].mxu0
      %v1078 = vadd.f32 0.0, %v1077
      %1079 = vmatprep.mubr.f32.mxu0 0.0
      %1080 = vmatmul.mubr.f32.gmra.mrb[0].mxu0 %v833
      %v1081 = vpop.f32.mrb[0].mxu0
      %v1082 = vadd.f32 0.0, %v1081
      %v1083 = vpop.f32.mrb[0].mxu0
      %v1084 = vadd.f32 0.0, %v1083
      %1085 = vmatprep.mubr.f32.mxu0 0.0
      %1086 = vmatmul.mubr.f32.gmra.mrb[0].mxu0 %v836
      %v1087 = vpop.f32.mrb[0].mxu0
      %v1088 = vadd.f32 0.0, %v1087
      %v1089 = vpop.f32.mrb[0].mxu0
      %v1090 = vadd.f32 0.0, %v1089
      %1091 = vmatprep.mubr.f32.mxu0 0.0
      %1092 = vmatmul.mubr.f32.gmra.mrb[0].mxu0 %v839
      %v1093 = vpop.f32.mrb[0].mxu0
      %v1094 = vadd.f32 0.0, %v1093
      %v1095 = vpop.f32.mrb[0].mxu0
      %v1096 = vadd.f32 0.0, %v1095
      %1097 = vdwg.mxu0
      %1098 = vxpose.xlu0.b32.start [1/16] %v522, 128
      %1099 = vxpose.xlu0.b32.cont [2/16] %v528, 128
      %1100 = vxpose.xlu0.b32.cont [3/16] 0.0, 128
      %1101 = vxpose.xlu0.b32.cont [4/16] 0.0, 128
      %1102 = vxpose.xlu0.b32.cont [5/16] 0.0, 128
      %1103 = vxpose.xlu0.b32.cont [6/16] 0.0, 128
      %1104 = vxpose.xlu0.b32.cont [7/16] 0.0, 128
      %1105 = vxpose.xlu0.b32.cont [8/16] 0.0, 128
      %1106 = vxpose.xlu0.b32.cont [9/16] 0.0, 128
      %1107 = vxpose.xlu0.b32.cont [10/16] 0.0, 128
      %1108 = vxpose.xlu0.b32.cont [11/16] 0.0, 128
      %1109 = vxpose.xlu0.b32.cont [12/16] 0.0, 128
      %1110 = vxpose.xlu0.b32.cont [13/16] 0.0, 128
      %1111 = vxpose.xlu0.b32.cont [14/16] 0.0, 128
      %1112 = vxpose.xlu0.b32.cont [15/16] 0.0, 128
      %1113 = vxpose.xlu0.b32.end [16/16] 0.0, 128
      %v1114 = vpop.trf.xlu0
      %v1115 = vpop.trf.xlu0
      %v1116 = vpop.trf.xlu0
      %v1117 = vpop.trf.xlu0
      %v1118 = vpop.trf.xlu0
      %v1119 = vpop.trf.xlu0
      %v1120 = vpop.trf.xlu0
      %v1121 = vpop.trf.xlu0
      %v1122 = vpop.trf.xlu0
      %v1123 = vpop.trf.xlu0
      %v1124 = vpop.trf.xlu0
      %v1125 = vpop.trf.xlu0
      %v1126 = vpop.trf.xlu0
      %v1127 = vpop.trf.xlu0
      %v1128 = vpop.trf.xlu0
      %v1129 = vpop.trf.xlu0
      %1130 = vxpose.xlu0.b32.start [1/16] %v524, 128
      %1131 = vxpose.xlu0.b32.cont [2/16] %v530, 128
      %1132 = vxpose.xlu0.b32.cont [3/16] 0.0, 128
      %1133 = vxpose.xlu0.b32.cont [4/16] 0.0, 128
      %1134 = vxpose.xlu0.b32.cont [5/16] 0.0, 128
      %1135 = vxpose.xlu0.b32.cont [6/16] 0.0, 128
      %1136 = vxpose.xlu0.b32.cont [7/16] 0.0, 128
      %1137 = vxpose.xlu0.b32.cont [8/16] 0.0, 128
      %1138 = vxpose.xlu0.b32.cont [9/16] 0.0, 128
      %1139 = vxpose.xlu0.b32.cont [10/16] 0.0, 128
      %1140 = vxpose.xlu0.b32.cont [11/16] 0.0, 128
      %1141 = vxpose.xlu0.b32.cont [12/16] 0.0, 128
      %1142 = vxpose.xlu0.b32.cont [13/16] 0.0, 128
      %1143 = vxpose.xlu0.b32.cont [14/16] 0.0, 128
      %1144 = vxpose.xlu0.b32.cont [15/16] 0.0, 128
      %1145 = vxpose.xlu0.b32.end [16/16] 0.0, 128
      %v1146 = vpop.trf.xlu0
      %v1147 = vpop.trf.xlu0
      %v1148 = vpop.trf.xlu0
      %v1149 = vpop.trf.xlu0
      %v1150 = vpop.trf.xlu0
      %v1151 = vpop.trf.xlu0
      %v1152 = vpop.trf.xlu0
      %v1153 = vpop.trf.xlu0
      %v1154 = vpop.trf.xlu0
      %v1155 = vpop.trf.xlu0
      %v1156 = vpop.trf.xlu0
      %v1157 = vpop.trf.xlu0
      %v1158 = vpop.trf.xlu0
      %v1159 = vpop.trf.xlu0
      %v1160 = vpop.trf.xlu0
      %v1161 = vpop.trf.xlu0
      %v1163 = vsel %vm744, %v1114, 0
      %v1166 = vsel %vm744, %v1115, 0
      %v1169 = vsel %vm744, %v1116, 0
      %v1172 = vsel %vm744, %v1117, 0
      %v1175 = vsel %vm744, %v1118, 0
      %v1178 = vsel %vm744, %v1119, 0
      %v1181 = vsel %vm744, %v1120, 0
      %v1184 = vsel %vm744, %v1121, 0
      %v1187 = vsel %vm744, %v1122, 0
      %v1190 = vsel %vm744, %v1123, 0
      %v1193 = vsel %vm744, %v1124, 0
      %v1196 = vsel %vm744, %v1125, 0
      %v1199 = vsel %vm744, %v1126, 0
      %v1202 = vsel %vm744, %v1127, 0
      %v1205 = vsel %vm744, %v1128, 0
      %v1208 = vsel %vm744, %v1129, 0
      %v1211 = vsel %vm744, %v1146, 0
      %v1214 = vsel %vm744, %v1147, 0
      %v1217 = vsel %vm744, %v1148, 0
      %v1220 = vsel %vm744, %v1149, 0
      %v1223 = vsel %vm744, %v1150, 0
      %v1226 = vsel %vm744, %v1151, 0
      %v1229 = vsel %vm744, %v1152, 0
      %v1232 = vsel %vm744, %v1153, 0
      %v1235 = vsel %vm744, %v1154, 0
      %v1238 = vsel %vm744, %v1155, 0
      %v1241 = vsel %vm744, %v1156, 0
      %v1244 = vsel %vm744, %v1157, 0
      %v1247 = vsel %vm744, %v1158, 0
      %v1250 = vsel %vm744, %v1159, 0
      %v1253 = vsel %vm744, %v1160, 0
      %v1256 = vsel %vm744, %v1161, 0
      %1258 = vmatprep.subr.mxu0 %v572
      %1259 = vmatpush1.msra.mxu0 %v570
      %1260 = vmatprep.subr.mxu0 %v578
      %1261 = vmatpush1.msra.mxu0 %v576
      %1262 = vmatprep.subr.mxu0 0.0
      %1263 = vmatpush1.msra.mxu0 0.0
      %1264 = vmatprep.subr.mxu0 0.0
      %1265 = vmatpush1.msra.mxu0 0.0
      %1266 = vmatprep.subr.mxu0 0.0
      %1267 = vmatpush1.msra.mxu0 0.0
      %1268 = vmatprep.subr.mxu0 0.0
      %1269 = vmatpush1.msra.mxu0 0.0
      %1270 = vmatprep.subr.mxu0 0.0
      %1271 = vmatpush1.msra.mxu0 0.0
      %1272 = vmatprep.subr.mxu0 0.0
      %1273 = vmatpush1.msra.mxu0 0.0
      %1274 = vmatprep.subr.mxu0 0.0
      %1275 = vmatpush1.msra.mxu0 0.0
      %1276 = vmatprep.subr.mxu0 0.0
      %1277 = vmatpush1.msra.mxu0 0.0
      %1278 = vmatprep.subr.mxu0 0.0
      %1279 = vmatpush1.msra.mxu0 0.0
      %1280 = vmatprep.subr.mxu0 0.0
      %1281 = vmatpush1.msra.mxu0 0.0
      %1282 = vmatprep.subr.mxu0 0.0
      %1283 = vmatpush1.msra.mxu0 0.0
      %1284 = vmatprep.subr.mxu0 0.0
      %1285 = vmatpush1.msra.mxu0 0.0
      %1286 = vmatprep.subr.mxu0 0.0
      %1287 = vmatpush1.msra.mxu0 0.0
      %1288 = vmatprep.subr.mxu0 0.0
      %1289 = vmatpush1.msra.mxu0 0.0
      %1290 = vmatprep.subr.mxu0 0.0
      %1291 = vmatpush1.msra.mxu0 0.0
      %1292 = vmatprep.subr.mxu0 0.0
      %1293 = vmatpush1.msra.mxu0 0.0
      %1294 = vmatprep.subr.mxu0 0.0
      %1295 = vmatpush1.msra.mxu0 0.0
      %1296 = vmatprep.subr.mxu0 0.0
      %1297 = vmatpush1.msra.mxu0 0.0
      %1298 = vmatprep.subr.mxu0 0.0
      %1299 = vmatpush1.msra.mxu0 0.0
      %1300 = vmatprep.subr.mxu0 0.0
      %1301 = vmatpush1.msra.mxu0 0.0
      %1302 = vmatprep.subr.mxu0 0.0
      %1303 = vmatpush1.msra.mxu0 0.0
      %1304 = vmatprep.subr.mxu0 0.0
      %1305 = vmatpush1.msra.mxu0 0.0
      %1306 = vmatprep.subr.mxu0 0.0
      %1307 = vmatpush1.msra.mxu0 0.0
      %1308 = vmatprep.subr.mxu0 0.0
      %1309 = vmatpush1.msra.mxu0 0.0
      %1310 = vmatprep.subr.mxu0 0.0
      %1311 = vmatpush1.msra.mxu0 0.0
      %1312 = vmatprep.subr.mxu0 0.0
      %1313 = vmatpush1.msra.mxu0 0.0
      %1314 = vmatprep.subr.mxu0 0.0
      %1315 = vmatpush1.msra.mxu0 0.0
      %1316 = vmatprep.subr.mxu0 0.0
      %1317 = vmatpush1.msra.mxu0 0.0
      %1318 = vmatprep.subr.mxu0 0.0
      %1319 = vmatpush1.msra.mxu0 0.0
      %1320 = vmatprep.subr.mxu0 0.0
      %1321 = vmatpush1.msra.mxu0 0.0
      %1322 = vmatprep.mubr.f32.mxu0 0.0
      %1323 = vmatmul.mubr.f32.gmra.mrb[0].mxu0 %v1163
      %v1324 = vpop.f32.mrb[0].mxu0
      %v1325 = vadd.f32 %v908, %v1324
      %v1326 = vpop.f32.mrb[0].mxu0
      %v1327 = vadd.f32 %v910, %v1326
      %1328 = vmatprep.mubr.f32.mxu0 0.0
      %1329 = vmatmul.mubr.f32.gmra.mrb[0].mxu0 %v1166
      %v1330 = vpop.f32.mrb[0].mxu0
      %v1331 = vadd.f32 %v914, %v1330
      %v1332 = vpop.f32.mrb[0].mxu0
      %v1333 = vadd.f32 %v916, %v1332
      %1334 = vmatprep.mubr.f32.mxu0 0.0
      %1335 = vmatmul.mubr.f32.gmra.mrb[0].mxu0 %v1169
      %v1336 = vpop.f32.mrb[0].mxu0
      %v1337 = vadd.f32 %v920, %v1336
      %v1338 = vpop.f32.mrb[0].mxu0
      %v1339 = vadd.f32 %v922, %v1338
      %1340 = vmatprep.mubr.f32.mxu0 0.0
      %1341 = vmatmul.mubr.f32.gmra.mrb[0].mxu0 %v1172
      %v1342 = vpop.f32.mrb[0].mxu0
      %v1343 = vadd.f32 %v926, %v1342
      %v1344 = vpop.f32.mrb[0].mxu0
      %v1345 = vadd.f32 %v928, %v1344
      %1346 = vmatprep.mubr.f32.mxu0 0.0
      %1347 = vmatmul.mubr.f32.gmra.mrb[0].mxu0 %v1175
      %v1348 = vpop.f32.mrb[0].mxu0
      %v1349 = vadd.f32 %v932, %v1348
      %v1350 = vpop.f32.mrb[0].mxu0
      %v1351 = vadd.f32 %v934, %v1350
      %1352 = vmatprep.mubr.f32.mxu0 0.0
      %1353 = vmatmul.mubr.f32.gmra.mrb[0].mxu0 %v1178
      %v1354 = vpop.f32.mrb[0].mxu0
      %v1355 = vadd.f32 %v938, %v1354
      %v1356 = vpop.f32.mrb[0].mxu0
      %v1357 = vadd.f32 %v940, %v1356
      %1358 = vmatprep.mubr.f32.mxu0 0.0
      %1359 = vmatmul.mubr.f32.gmra.mrb[0].mxu0 %v1181
      %v1360 = vpop.f32.mrb[0].mxu0
      %v1361 = vadd.f32 %v944, %v1360
      %v1362 = vpop.f32.mrb[0].mxu0
      %v1363 = vadd.f32 %v946, %v1362
      %1364 = vmatprep.mubr.f32.mxu0 0.0
      %1365 = vmatmul.mubr.f32.gmra.mrb[0].mxu0 %v1184
      %v1366 = vpop.f32.mrb[0].mxu0
      %v1367 = vadd.f32 %v950, %v1366
      %v1368 = vpop.f32.mrb[0].mxu0
      %v1369 = vadd.f32 %v952, %v1368
      %1370 = vmatprep.mubr.f32.mxu0 0.0
      %1371 = vmatmul.mubr.f32.gmra.mrb[0].mxu0 %v1187
      %v1372 = vpop.f32.mrb[0].mxu0
      %v1373 = vadd.f32 %v956, %v1372
      %v1374 = vpop.f32.mrb[0].mxu0
      %v1375 = vadd.f32 %v958, %v1374
      %1376 = vmatprep.mubr.f32.mxu0 0.0
      %1377 = vmatmul.mubr.f32.gmra.mrb[0].mxu0 %v1190
      %v1378 = vpop.f32.mrb[0].mxu0
      %v1379 = vadd.f32 %v962, %v1378
      %v1380 = vpop.f32.mrb[0].mxu0
      %v1381 = vadd.f32 %v964, %v1380
      %1382 = vmatprep.mubr.f32.mxu0 0.0
      %1383 = vmatmul.mubr.f32.gmra.mrb[0].mxu0 %v1193
      %v1384 = vpop.f32.mrb[0].mxu0
      %v1385 = vadd.f32 %v968, %v1384
      %v1386 = vpop.f32.mrb[0].mxu0
      %v1387 = vadd.f32 %v970, %v1386
      %1388 = vmatprep.mubr.f32.mxu0 0.0
      %1389 = vmatmul.mubr.f32.gmra.mrb[0].mxu0 %v1196
      %v1390 = vpop.f32.mrb[0].mxu0
      %v1391 = vadd.f32 %v974, %v1390
      %v1392 = vpop.f32.mrb[0].mxu0
      %v1393 = vadd.f32 %v976, %v1392
      %1394 = vmatprep.mubr.f32.mxu0 0.0
      %1395 = vmatmul.mubr.f32.gmra.mrb[0].mxu0 %v1199
      %v1396 = vpop.f32.mrb[0].mxu0
      %v1397 = vadd.f32 %v980, %v1396
      %v1398 = vpop.f32.mrb[0].mxu0
      %v1399 = vadd.f32 %v982, %v1398
      %1400 = vmatprep.mubr.f32.mxu0 0.0
      %1401 = vmatmul.mubr.f32.gmra.mrb[0].mxu0 %v1202
      %v1402 = vpop.f32.mrb[0].mxu0
      %v1403 = vadd.f32 %v986, %v1402
      %v1404 = vpop.f32.mrb[0].mxu0
      %v1405 = vadd.f32 %v988, %v1404
      %1406 = vmatprep.mubr.f32.mxu0 0.0
      %1407 = vmatmul.mubr.f32.gmra.mrb[0].mxu0 %v1205
      %v1408 = vpop.f32.mrb[0].mxu0
      %v1409 = vadd.f32 %v992, %v1408
      %v1410 = vpop.f32.mrb[0].mxu0
      %v1411 = vadd.f32 %v994, %v1410
      %1412 = vmatprep.mubr.f32.mxu0 0.0
      %1413 = vmatmul.mubr.f32.gmra.mrb[0].mxu0 %v1208
      %v1414 = vpop.f32.mrb[0].mxu0
      %v1415 = vadd.f32 %v998, %v1414
      %v1416 = vpop.f32.mrb[0].mxu0
      %v1417 = vadd.f32 %v1000, %v1416
      %1418 = vmatprep.mubr.f32.mxu0 0.0
      %1419 = vmatmul.mubr.f32.gmra.mrb[0].mxu0 %v1211
      %v1420 = vpop.f32.mrb[0].mxu0
      %v1421 = vadd.f32 %v1004, %v1420
      %v1422 = vpop.f32.mrb[0].mxu0
      %v1423 = vadd.f32 %v1006, %v1422
      %1424 = vmatprep.mubr.f32.mxu0 0.0
      %1425 = vmatmul.mubr.f32.gmra.mrb[0].mxu0 %v1214
      %v1426 = vpop.f32.mrb[0].mxu0
      %v1427 = vadd.f32 %v1010, %v1426
      %v1428 = vpop.f32.mrb[0].mxu0
      %v1429 = vadd.f32 %v1012, %v1428
      %1430 = vmatprep.mubr.f32.mxu0 0.0
      %1431 = vmatmul.mubr.f32.gmra.mrb[0].mxu0 %v1217
      %v1432 = vpop.f32.mrb[0].mxu0
      %v1433 = vadd.f32 %v1016, %v1432
      %v1434 = vpop.f32.mrb[0].mxu0
      %v1435 = vadd.f32 %v1018, %v1434
      %1436 = vmatprep.mubr.f32.mxu0 0.0
      %1437 = vmatmul.mubr.f32.gmra.mrb[0].mxu0 %v1220
      %v1438 = vpop.f32.mrb[0].mxu0
      %v1439 = vadd.f32 %v1022, %v1438
      %v1440 = vpop.f32.mrb[0].mxu0
      %v1441 = vadd.f32 %v1024, %v1440
      %1442 = vmatprep.mubr.f32.mxu0 0.0
      %1443 = vmatmul.mubr.f32.gmra.mrb[0].mxu0 %v1223
      %v1444 = vpop.f32.mrb[0].mxu0
      %v1445 = vadd.f32 %v1028, %v1444
      %v1446 = vpop.f32.mrb[0].mxu0
      %v1447 = vadd.f32 %v1030, %v1446
      %1448 = vmatprep.mubr.f32.mxu0 0.0
      %1449 = vmatmul.mubr.f32.gmra.mrb[0].mxu0 %v1226
      %v1450 = vpop.f32.mrb[0].mxu0
      %v1451 = vadd.f32 %v1034, %v1450
      %v1452 = vpop.f32.mrb[0].mxu0
      %v1453 = vadd.f32 %v1036, %v1452
      %1454 = vmatprep.mubr.f32.mxu0 0.0
      %1455 = vmatmul.mubr.f32.gmra.mrb[0].mxu0 %v1229
      %v1456 = vpop.f32.mrb[0].mxu0
      %v1457 = vadd.f32 %v1040, %v1456
      %v1458 = vpop.f32.mrb[0].mxu0
      %v1459 = vadd.f32 %v1042, %v1458
      %1460 = vmatprep.mubr.f32.mxu0 0.0
      %1461 = vmatmul.mubr.f32.gmra.mrb[0].mxu0 %v1232
      %v1462 = vpop.f32.mrb[0].mxu0
      %v1463 = vadd.f32 %v1046, %v1462
      %v1464 = vpop.f32.mrb[0].mxu0
      %v1465 = vadd.f32 %v1048, %v1464
      %1466 = vmatprep.mubr.f32.mxu0 0.0
      %1467 = vmatmul.mubr.f32.gmra.mrb[0].mxu0 %v1235
      %v1468 = vpop.f32.mrb[0].mxu0
      %v1469 = vadd.f32 %v1052, %v1468
      %v1470 = vpop.f32.mrb[0].mxu0
      %v1471 = vadd.f32 %v1054, %v1470
      %1472 = vmatprep.mubr.f32.mxu0 0.0
      %1473 = vmatmul.mubr.f32.gmra.mrb[0].mxu0 %v1238
      %v1474 = vpop.f32.mrb[0].mxu0
      %v1475 = vadd.f32 %v1058, %v1474
      %v1476 = vpop.f32.mrb[0].mxu0
      %v1477 = vadd.f32 %v1060, %v1476
      %1478 = vmatprep.mubr.f32.mxu0 0.0
      %1479 = vmatmul.mubr.f32.gmra.mrb[0].mxu0 %v1241
      %v1480 = vpop.f32.mrb[0].mxu0
      %v1481 = vadd.f32 %v1064, %v1480
      %v1482 = vpop.f32.mrb[0].mxu0
      %v1483 = vadd.f32 %v1066, %v1482
      %1484 = vmatprep.mubr.f32.mxu0 0.0
      %1485 = vmatmul.mubr.f32.gmra.mrb[0].mxu0 %v1244
      %v1486 = vpop.f32.mrb[0].mxu0
      %v1487 = vadd.f32 %v1070, %v1486
      %v1488 = vpop.f32.mrb[0].mxu0
      %v1489 = vadd.f32 %v1072, %v1488
      %1490 = vmatprep.mubr.f32.mxu0 0.0
      %1491 = vmatmul.mubr.f32.gmra.mrb[0].mxu0 %v1247
      %v1492 = vpop.f32.mrb[0].mxu0
      %v1493 = vadd.f32 %v1076, %v1492
      %v1494 = vpop.f32.mrb[0].mxu0
      %v1495 = vadd.f32 %v1078, %v1494
      %1496 = vmatprep.mubr.f32.mxu0 0.0
      %1497 = vmatmul.mubr.f32.gmra.mrb[0].mxu0 %v1250
      %v1498 = vpop.f32.mrb[0].mxu0
      %v1499 = vadd.f32 %v1082, %v1498
      %v1500 = vpop.f32.mrb[0].mxu0
      %v1501 = vadd.f32 %v1084, %v1500
      %1502 = vmatprep.mubr.f32.mxu0 0.0
      %1503 = vmatmul.mubr.f32.gmra.mrb[0].mxu0 %v1253
      %v1504 = vpop.f32.mrb[0].mxu0
      %v1505 = vadd.f32 %v1088, %v1504
      %v1506 = vpop.f32.mrb[0].mxu0
      %v1507 = vadd.f32 %v1090, %v1506
      %1508 = vmatprep.mubr.f32.mxu0 0.0
      %1509 = vmatmul.mubr.f32.gmra.mrb[0].mxu0 %v1256
      %v1510 = vpop.f32.mrb[0].mxu0
      %v1511 = vadd.f32 %v1094, %v1510
      %v1512 = vpop.f32.mrb[0].mxu0
      %v1513 = vadd.f32 %v1096, %v1512
      %1514 = vdwg.mxu0
      %v1515 = vmax.f32 %v1325, %v1327
      %1516 = vmax.xlane.f32.xlu0 %v1515
      %v1517 = vpop.xlane.xlu0 %1516
      %v1518 = vmax.f32 %v1331, %v1333
      %1519 = vmax.xlane.f32.xlu0 %v1518
      %v1520 = vpop.xlane.xlu0 %1519
      %v1521 = vmax.f32 %v1337, %v1339
      %1522 = vmax.xlane.f32.xlu0 %v1521
      %v1523 = vpop.xlane.xlu0 %1522
      %v1524 = vmax.f32 %v1343, %v1345
      %1525 = vmax.xlane.f32.xlu0 %v1524
      %v1526 = vpop.xlane.xlu0 %1525
      %v1527 = vmax.f32 %v1349, %v1351
      %1528 = vmax.xlane.f32.xlu0 %v1527
      %v1529 = vpop.xlane.xlu0 %1528
      %v1530 = vmax.f32 %v1355, %v1357
      %1531 = vmax.xlane.f32.xlu0 %v1530
      %v1532 = vpop.xlane.xlu0 %1531
      %v1533 = vmax.f32 %v1361, %v1363
      %1534 = vmax.xlane.f32.xlu0 %v1533
      %v1535 = vpop.xlane.xlu0 %1534
      %v1536 = vmax.f32 %v1367, %v1369
      %1537 = vmax.xlane.f32.xlu0 %v1536
      %v1538 = vpop.xlane.xlu0 %1537
      %v1539 = vmax.f32 %v1373, %v1375
      %1540 = vmax.xlane.f32.xlu0 %v1539
      %v1541 = vpop.xlane.xlu0 %1540
      %v1542 = vmax.f32 %v1379, %v1381
      %1543 = vmax.xlane.f32.xlu0 %v1542
      %v1544 = vpop.xlane.xlu0 %1543
      %v1545 = vmax.f32 %v1385, %v1387
      %1546 = vmax.xlane.f32.xlu0 %v1545
      %v1547 = vpop.xlane.xlu0 %1546
      %v1548 = vmax.f32 %v1391, %v1393
      %1549 = vmax.xlane.f32.xlu0 %v1548
      %v1550 = vpop.xlane.xlu0 %1549
      %v1551 = vmax.f32 %v1397, %v1399
      %1552 = vmax.xlane.f32.xlu0 %v1551
      %v1553 = vpop.xlane.xlu0 %1552
      %v1554 = vmax.f32 %v1403, %v1405
      %1555 = vmax.xlane.f32.xlu0 %v1554
      %v1556 = vpop.xlane.xlu0 %1555
      %v1557 = vmax.f32 %v1409, %v1411
      %1558 = vmax.xlane.f32.xlu0 %v1557
      %v1559 = vpop.xlane.xlu0 %1558
      %v1560 = vmax.f32 %v1415, %v1417
      %1561 = vmax.xlane.f32.xlu0 %v1560
      %v1562 = vpop.xlane.xlu0 %1561
      %v1563 = vmax.f32 %v1421, %v1423
      %1564 = vmax.xlane.f32.xlu0 %v1563
      %v1565 = vpop.xlane.xlu0 %1564
      %v1566 = vmax.f32 %v1427, %v1429
      %1567 = vmax.xlane.f32.xlu0 %v1566
      %v1568 = vpop.xlane.xlu0 %1567
      %v1569 = vmax.f32 %v1433, %v1435
      %1570 = vmax.xlane.f32.xlu0 %v1569
      %v1571 = vpop.xlane.xlu0 %1570
      %v1572 = vmax.f32 %v1439, %v1441
      %1573 = vmax.xlane.f32.xlu0 %v1572
      %v1574 = vpop.xlane.xlu0 %1573
      %v1575 = vmax.f32 %v1445, %v1447
      %1576 = vmax.xlane.f32.xlu0 %v1575
      %v1577 = vpop.xlane.xlu0 %1576
      %v1578 = vmax.f32 %v1451, %v1453
      %1579 = vmax.xlane.f32.xlu0 %v1578
      %v1580 = vpop.xlane.xlu0 %1579
      %v1581 = vmax.f32 %v1457, %v1459
      %1582 = vmax.xlane.f32.xlu0 %v1581
      %v1583 = vpop.xlane.xlu0 %1582
      %v1584 = vmax.f32 %v1463, %v1465
      %1585 = vmax.xlane.f32.xlu0 %v1584
      %v1586 = vpop.xlane.xlu0 %1585
      %v1587 = vmax.f32 %v1469, %v1471
      %1588 = vmax.xlane.f32.xlu0 %v1587
      %v1589 = vpop.xlane.xlu0 %1588
      %v1590 = vmax.f32 %v1475, %v1477
      %1591 = vmax.xlane.f32.xlu0 %v1590
      %v1592 = vpop.xlane.xlu0 %1591
      %v1593 = vmax.f32 %v1481, %v1483
      %1594 = vmax.xlane.f32.xlu0 %v1593
      %v1595 = vpop.xlane.xlu0 %1594
      %v1596 = vmax.f32 %v1487, %v1489
      %1597 = vmax.xlane.f32.xlu0 %v1596
      %v1598 = vpop.xlane.xlu0 %1597
      %v1599 = vmax.f32 %v1493, %v1495
      %1600 = vmax.xlane.f32.xlu0 %v1599
      %v1601 = vpop.xlane.xlu0 %1600
      %v1602 = vmax.f32 %v1499, %v1501
      %1603 = vmax.xlane.f32.xlu0 %v1602
      %v1604 = vpop.xlane.xlu0 %1603
      %v1605 = vmax.f32 %v1505, %v1507
      %1606 = vmax.xlane.f32.xlu0 %v1605
      %v1607 = vpop.xlane.xlu0 %1606
      %v1608 = vmax.f32 %v1511, %v1513
      %1609 = vmax.xlane.f32.xlu0 %v1608
      %v1610 = vpop.xlane.xlu0 %1609
      %v1611 = vsub.f32 %v1325, %v1517
      %v1612 = vsub.f32 %v1327, %v1517
      %v1613 = vsub.f32 %v1331, %v1520
      %v1614 = vsub.f32 %v1333, %v1520
      %v1615 = vsub.f32 %v1337, %v1523
      %v1616 = vsub.f32 %v1339, %v1523
      %v1617 = vsub.f32 %v1343, %v1526
      %v1618 = vsub.f32 %v1345, %v1526
      %v1619 = vsub.f32 %v1349, %v1529
      %v1620 = vsub.f32 %v1351, %v1529
      %v1621 = vsub.f32 %v1355, %v1532
      %v1622 = vsub.f32 %v1357, %v1532
      %v1623 = vsub.f32 %v1361, %v1535
      %v1624 = vsub.f32 %v1363, %v1535
      %v1625 = vsub.f32 %v1367, %v1538
      %v1626 = vsub.f32 %v1369, %v1538
      %v1627 = vsub.f32 %v1373, %v1541
      %v1628 = vsub.f32 %v1375, %v1541
      %v1629 = vsub.f32 %v1379, %v1544
      %v1630 = vsub.f32 %v1381, %v1544
      %v1631 = vsub.f32 %v1385, %v1547
      %v1632 = vsub.f32 %v1387, %v1547
      %v1633 = vsub.f32 %v1391, %v1550
      %v1634 = vsub.f32 %v1393, %v1550
      %v1635 = vsub.f32 %v1397, %v1553
      %v1636 = vsub.f32 %v1399, %v1553
      %v1637 = vsub.f32 %v1403, %v1556
      %v1638 = vsub.f32 %v1405, %v1556
      %v1639 = vsub.f32 %v1409, %v1559
      %v1640 = vsub.f32 %v1411, %v1559
      %v1641 = vsub.f32 %v1415, %v1562
      %v1642 = vsub.f32 %v1417, %v1562
      %v1643 = vsub.f32 %v1421, %v1565
      %v1644 = vsub.f32 %v1423, %v1565
      %v1645 = vsub.f32 %v1427, %v1568
      %v1646 = vsub.f32 %v1429, %v1568
      %v1647 = vsub.f32 %v1433, %v1571
      %v1648 = vsub.f32 %v1435, %v1571
      %v1649 = vsub.f32 %v1439, %v1574
      %v1650 = vsub.f32 %v1441, %v1574
      %v1651 = vsub.f32 %v1445, %v1577
      %v1652 = vsub.f32 %v1447, %v1577
      %v1653 = vsub.f32 %v1451, %v1580
      %v1654 = vsub.f32 %v1453, %v1580
      %v1655 = vsub.f32 %v1457, %v1583
      %v1656 = vsub.f32 %v1459, %v1583
      %v1657 = vsub.f32 %v1463, %v1586
      %v1658 = vsub.f32 %v1465, %v1586
      %v1659 = vsub.f32 %v1469, %v1589
      %v1660 = vsub.f32 %v1471, %v1589
      %v1661 = vsub.f32 %v1475, %v1592
      %v1662 = vsub.f32 %v1477, %v1592
      %v1663 = vsub.f32 %v1481, %v1595
      %v1664 = vsub.f32 %v1483, %v1595
      %v1665 = vsub.f32 %v1487, %v1598
      %v1666 = vsub.f32 %v1489, %v1598
      %v1667 = vsub.f32 %v1493, %v1601
      %v1668 = vsub.f32 %v1495, %v1601
      %v1669 = vsub.f32 %v1499, %v1604
      %v1670 = vsub.f32 %v1501, %v1604
      %v1671 = vsub.f32 %v1505, %v1607
      %v1672 = vsub.f32 %v1507, %v1607
      %v1673 = vsub.f32 %v1511, %v1610
      %v1674 = vsub.f32 %v1513, %v1610
      %v1675 = vmul.f32 %v1611, 1.442695
      %v1676 = vpow.pop %v1675
      %v1677 = vmul.f32 %v1612, 1.442695
      %v1678 = vpow.pop %v1677
      %v1679 = vmul.f32 %v1613, 1.442695
      %v1680 = vpow.pop %v1679
      %v1681 = vmul.f32 %v1614, 1.442695
      %v1682 = vpow.pop %v1681
      %v1683 = vmul.f32 %v1615, 1.442695
      %v1684 = vpow.pop %v1683
      %v1685 = vmul.f32 %v1616, 1.442695
      %v1686 = vpow.pop %v1685
      %v1687 = vmul.f32 %v1617, 1.442695
      %v1688 = vpow.pop %v1687
      %v1689 = vmul.f32 %v1618, 1.442695
      %v1690 = vpow.pop %v1689
      %v1691 = vmul.f32 %v1619, 1.442695
      %v1692 = vpow.pop %v1691
      %v1693 = vmul.f32 %v1620, 1.442695
      %v1694 = vpow.pop %v1693
      %v1695 = vmul.f32 %v1621, 1.442695
      %v1696 = vpow.pop %v1695
      %v1697 = vmul.f32 %v1622, 1.442695
      %v1698 = vpow.pop %v1697
      %v1699 = vmul.f32 %v1623, 1.442695
      %v1700 = vpow.pop %v1699
      %v1701 = vmul.f32 %v1624, 1.442695
      %v1702 = vpow.pop %v1701
      %v1703 = vmul.f32 %v1625, 1.442695
      %v1704 = vpow.pop %v1703
      %v1705 = vmul.f32 %v1626, 1.442695
      %v1706 = vpow.pop %v1705
      %v1707 = vmul.f32 %v1627, 1.442695
      %v1708 = vpow.pop %v1707
      %v1709 = vmul.f32 %v1628, 1.442695
      %v1710 = vpow.pop %v1709
      %v1711 = vmul.f32 %v1629, 1.442695
      %v1712 = vpow.pop %v1711
      %v1713 = vmul.f32 %v1630, 1.442695
      %v1714 = vpow.pop %v1713
      %v1715 = vmul.f32 %v1631, 1.442695
      %v1716 = vpow.pop %v1715
      %v1717 = vmul.f32 %v1632, 1.442695
      %v1718 = vpow.pop %v1717
      %v1719 = vmul.f32 %v1633, 1.442695
      %v1720 = vpow.pop %v1719
      %v1721 = vmul.f32 %v1634, 1.442695
      %v1722 = vpow.pop %v1721
      %v1723 = vmul.f32 %v1635, 1.442695
      %v1724 = vpow.pop %v1723
      %v1725 = vmul.f32 %v1636, 1.442695
      %v1726 = vpow.pop %v1725
      %v1727 = vmul.f32 %v1637, 1.442695
      %v1728 = vpow.pop %v1727
      %v1729 = vmul.f32 %v1638, 1.442695
      %v1730 = vpow.pop %v1729
      %v1731 = vmul.f32 %v1639, 1.442695
      %v1732 = vpow.pop %v1731
      %v1733 = vmul.f32 %v1640, 1.442695
      %v1734 = vpow.pop %v1733
      %v1735 = vmul.f32 %v1641, 1.442695
      %v1736 = vpow.pop %v1735
      %v1737 = vmul.f32 %v1642, 1.442695
      %v1738 = vpow.pop %v1737
      %v1739 = vmul.f32 %v1643, 1.442695
      %v1740 = vpow.pop %v1739
      %v1741 = vmul.f32 %v1644, 1.442695
      %v1742 = vpow.pop %v1741
      %v1743 = vmul.f32 %v1645, 1.442695
      %v1744 = vpow.pop %v1743
      %v1745 = vmul.f32 %v1646, 1.442695
      %v1746 = vpow.pop %v1745
      %v1747 = vmul.f32 %v1647, 1.442695
      %v1748 = vpow.pop %v1747
      %v1749 = vmul.f32 %v1648, 1.442695
      %v1750 = vpow.pop %v1749
      %v1751 = vmul.f32 %v1649, 1.442695
      %v1752 = vpow.pop %v1751
      %v1753 = vmul.f32 %v1650, 1.442695
      %v1754 = vpow.pop %v1753
      %v1755 = vmul.f32 %v1651, 1.442695
      %v1756 = vpow.pop %v1755
      %v1757 = vmul.f32 %v1652, 1.442695
      %v1758 = vpow.pop %v1757
      %v1759 = vmul.f32 %v1653, 1.442695
      %v1760 = vpow.pop %v1759
      %v1761 = vmul.f32 %v1654, 1.442695
      %v1762 = vpow.pop %v1761
      %v1763 = vmul.f32 %v1655, 1.442695
      %v1764 = vpow.pop %v1763
      %v1765 = vmul.f32 %v1656, 1.442695
      %v1766 = vpow.pop %v1765
      %v1767 = vmul.f32 %v1657, 1.442695
      %v1768 = vpow.pop %v1767
      %v1769 = vmul.f32 %v1658, 1.442695
      %v1770 = vpow.pop %v1769
      %v1771 = vmul.f32 %v1659, 1.442695
      %v1772 = vpow.pop %v1771
      %v1773 = vmul.f32 %v1660, 1.442695
      %v1774 = vpow.pop %v1773
      %v1775 = vmul.f32 %v1661, 1.442695
      %v1776 = vpow.pop %v1775
      %v1777 = vmul.f32 %v1662, 1.442695
      %v1778 = vpow.pop %v1777
      %v1779 = vmul.f32 %v1663, 1.442695
      %v1780 = vpow.pop %v1779
      %v1781 = vmul.f32 %v1664, 1.442695
      %v1782 = vpow.pop %v1781
      %v1783 = vmul.f32 %v1665, 1.442695
      %v1784 = vpow.pop %v1783
      %v1785 = vmul.f32 %v1666, 1.442695
      %v1786 = vpow.pop %v1785
      %v1787 = vmul.f32 %v1667, 1.442695
      %v1788 = vpow.pop %v1787
      %v1789 = vmul.f32 %v1668, 1.442695
      %v1790 = vpow.pop %v1789
      %v1791 = vmul.f32 %v1669, 1.442695
      %v1792 = vpow.pop %v1791
      %v1793 = vmul.f32 %v1670, 1.442695
      %v1794 = vpow.pop %v1793
      %v1795 = vmul.f32 %v1671, 1.442695
      %v1796 = vpow.pop %v1795
      %v1797 = vmul.f32 %v1672, 1.442695
      %v1798 = vpow.pop %v1797
      %v1799 = vmul.f32 %v1673, 1.442695
      %v1800 = vpow.pop %v1799
      %v1801 = vmul.f32 %v1674, 1.442695
      %v1802 = vpow.pop %v1801
      %v1803 = vadd.f32 %v1676, %v1678
      %1804 = vadd.xlane.f32.xlu0 %v1803
      %v1805 = vpop.xlane.xlu0 %1804
      %v1806 = vadd.f32 %v1680, %v1682
      %1807 = vadd.xlane.f32.xlu0 %v1806
      %v1808 = vpop.xlane.xlu0 %1807
      %v1809 = vadd.f32 %v1684, %v1686
      %1810 = vadd.xlane.f32.xlu0 %v1809
      %v1811 = vpop.xlane.xlu0 %1810
      %v1812 = vadd.f32 %v1688, %v1690
      %1813 = vadd.xlane.f32.xlu0 %v1812
      %v1814 = vpop.xlane.xlu0 %1813
      %v1815 = vadd.f32 %v1692, %v1694
      %1816 = vadd.xlane.f32.xlu0 %v1815
      %v1817 = vpop.xlane.xlu0 %1816
      %v1818 = vadd.f32 %v1696, %v1698
      %1819 = vadd.xlane.f32.xlu0 %v1818
      %v1820 = vpop.xlane.xlu0 %1819
      %v1821 = vadd.f32 %v1700, %v1702
      %1822 = vadd.xlane.f32.xlu0 %v1821
      %v1823 = vpop.xlane.xlu0 %1822
      %v1824 = vadd.f32 %v1704, %v1706
      %1825 = vadd.xlane.f32.xlu0 %v1824
      %v1826 = vpop.xlane.xlu0 %1825
      %v1827 = vadd.f32 %v1708, %v1710
      %1828 = vadd.xlane.f32.xlu0 %v1827
      %v1829 = vpop.xlane.xlu0 %1828
      %v1830 = vadd.f32 %v1712, %v1714
      %1831 = vadd.xlane.f32.xlu0 %v1830
      %v1832 = vpop.xlane.xlu0 %1831
      %v1833 = vadd.f32 %v1716, %v1718
      %1834 = vadd.xlane.f32.xlu0 %v1833
      %v1835 = vpop.xlane.xlu0 %1834
      %v1836 = vadd.f32 %v1720, %v1722
      %1837 = vadd.xlane.f32.xlu0 %v1836
      %v1838 = vpop.xlane.xlu0 %1837
      %v1839 = vadd.f32 %v1724, %v1726
      %1840 = vadd.xlane.f32.xlu0 %v1839
      %v1841 = vpop.xlane.xlu0 %1840
      %v1842 = vadd.f32 %v1728, %v1730
      %1843 = vadd.xlane.f32.xlu0 %v1842
      %v1844 = vpop.xlane.xlu0 %1843
      %v1845 = vadd.f32 %v1732, %v1734
      %1846 = vadd.xlane.f32.xlu0 %v1845
      %v1847 = vpop.xlane.xlu0 %1846
      %v1848 = vadd.f32 %v1736, %v1738
      %1849 = vadd.xlane.f32.xlu0 %v1848
      %v1850 = vpop.xlane.xlu0 %1849
      %v1851 = vadd.f32 %v1740, %v1742
      %1852 = vadd.xlane.f32.xlu0 %v1851
      %v1853 = vpop.xlane.xlu0 %1852
      %v1854 = vadd.f32 %v1744, %v1746
      %1855 = vadd.xlane.f32.xlu0 %v1854
      %v1856 = vpop.xlane.xlu0 %1855
      %v1857 = vadd.f32 %v1748, %v1750
      %1858 = vadd.xlane.f32.xlu0 %v1857
      %v1859 = vpop.xlane.xlu0 %1858
      %v1860 = vadd.f32 %v1752, %v1754
      %1861 = vadd.xlane.f32.xlu0 %v1860
      %v1862 = vpop.xlane.xlu0 %1861
      %v1863 = vadd.f32 %v1756, %v1758
      %1864 = vadd.xlane.f32.xlu0 %v1863
      %v1865 = vpop.xlane.xlu0 %1864
      %v1866 = vadd.f32 %v1760, %v1762
      %1867 = vadd.xlane.f32.xlu0 %v1866
      %v1868 = vpop.xlane.xlu0 %1867
      %v1869 = vadd.f32 %v1764, %v1766
      %1870 = vadd.xlane.f32.xlu0 %v1869
      %v1871 = vpop.xlane.xlu0 %1870
      %v1872 = vadd.f32 %v1768, %v1770
      %1873 = vadd.xlane.f32.xlu0 %v1872
      %v1874 = vpop.xlane.xlu0 %1873
      %v1875 = vadd.f32 %v1772, %v1774
      %1876 = vadd.xlane.f32.xlu0 %v1875
      %v1877 = vpop.xlane.xlu0 %1876
      %v1878 = vadd.f32 %v1776, %v1778
      %1879 = vadd.xlane.f32.xlu0 %v1878
      %v1880 = vpop.xlane.xlu0 %1879
      %v1881 = vadd.f32 %v1780, %v1782
      %1882 = vadd.xlane.f32.xlu0 %v1881
      %v1883 = vpop.xlane.xlu0 %1882
      %v1884 = vadd.f32 %v1784, %v1786
      %1885 = vadd.xlane.f32.xlu0 %v1884
      %v1886 = vpop.xlane.xlu0 %1885
      %v1887 = vadd.f32 %v1788, %v1790
      %1888 = vadd.xlane.f32.xlu0 %v1887
      %v1889 = vpop.xlane.xlu0 %1888
      %v1890 = vadd.f32 %v1792, %v1794
      %1891 = vadd.xlane.f32.xlu0 %v1890
      %v1892 = vpop.xlane.xlu0 %1891
      %v1893 = vadd.f32 %v1796, %v1798
      %1894 = vadd.xlane.f32.xlu0 %v1893
      %v1895 = vpop.xlane.xlu0 %1894
      %v1896 = vadd.f32 %v1800, %v1802
      %1897 = vadd.xlane.f32.xlu0 %v1896
      %v1898 = vpop.xlane.xlu0 %1897
      %v1899 = vrcp.pop %v1805
      %v1900 = vrcp.pop %v1808
      %v1901 = vrcp.pop %v1811
      %v1902 = vrcp.pop %v1814
      %v1903 = vrcp.pop %v1817
      %v1904 = vrcp.pop %v1820
      %v1905 = vrcp.pop %v1823
      %v1906 = vrcp.pop %v1826
      %v1907 = vrcp.pop %v1829
      %v1908 = vrcp.pop %v1832
      %v1909 = vrcp.pop %v1835
      %v1910 = vrcp.pop %v1838
      %v1911 = vrcp.pop %v1841
      %v1912 = vrcp.pop %v1844
      %v1913 = vrcp.pop %v1847
      %v1914 = vrcp.pop %v1850
      %v1915 = vrcp.pop %v1853
      %v1916 = vrcp.pop %v1856
      %v1917 = vrcp.pop %v1859
      %v1918 = vrcp.pop %v1862
      %v1919 = vrcp.pop %v1865
      %v1920 = vrcp.pop %v1868
      %v1921 = vrcp.pop %v1871
      %v1922 = vrcp.pop %v1874
      %v1923 = vrcp.pop %v1877
      %v1924 = vrcp.pop %v1880
      %v1925 = vrcp.pop %v1883
      %v1926 = vrcp.pop %v1886
      %v1927 = vrcp.pop %v1889
      %v1928 = vrcp.pop %v1892
      %v1929 = vrcp.pop %v1895
      %v1930 = vrcp.pop %v1898
      %v1931 = vmul.f32 %v1676, %v1899
      %v1932 = vmul.f32 %v1678, %v1899
      %v1933 = vmul.f32 %v1680, %v1900
      %v1934 = vmul.f32 %v1682, %v1900
      %v1935 = vmul.f32 %v1684, %v1901
      %v1936 = vmul.f32 %v1686, %v1901
      %v1937 = vmul.f32 %v1688, %v1902
      %v1938 = vmul.f32 %v1690, %v1902
      %v1939 = vmul.f32 %v1692, %v1903
      %v1940 = vmul.f32 %v1694, %v1903
      %v1941 = vmul.f32 %v1696, %v1904
      %v1942 = vmul.f32 %v1698, %v1904
      %v1943 = vmul.f32 %v1700, %v1905
      %v1944 = vmul.f32 %v1702, %v1905
      %v1945 = vmul.f32 %v1704, %v1906
      %v1946 = vmul.f32 %v1706, %v1906
      %v1947 = vmul.f32 %v1708, %v1907
      %v1948 = vmul.f32 %v1710, %v1907
      %v1949 = vmul.f32 %v1712, %v1908
      %v1950 = vmul.f32 %v1714, %v1908
      %v1951 = vmul.f32 %v1716, %v1909
      %v1952 = vmul.f32 %v1718, %v1909
      %v1953 = vmul.f32 %v1720, %v1910
      %v1954 = vmul.f32 %v1722, %v1910
      %v1955 = vmul.f32 %v1724, %v1911
      %v1956 = vmul.f32 %v1726, %v1911
      %v1957 = vmul.f32 %v1728, %v1912
      %v1958 = vmul.f32 %v1730, %v1912
      %v1959 = vmul.f32 %v1732, %v1913
      %v1960 = vmul.f32 %v1734, %v1913
      %v1961 = vmul.f32 %v1736, %v1914
      %v1962 = vmul.f32 %v1738, %v1914
      %v1963 = vmul.f32 %v1740, %v1915
      %v1964 = vmul.f32 %v1742, %v1915
      %v1965 = vmul.f32 %v1744, %v1916
      %v1966 = vmul.f32 %v1746, %v1916
      %v1967 = vmul.f32 %v1748, %v1917
      %v1968 = vmul.f32 %v1750, %v1917
      %v1969 = vmul.f32 %v1752, %v1918
      %v1970 = vmul.f32 %v1754, %v1918
      %v1971 = vmul.f32 %v1756, %v1919
      %v1972 = vmul.f32 %v1758, %v1919
      %v1973 = vmul.f32 %v1760, %v1920
      %v1974 = vmul.f32 %v1762, %v1920
      %v1975 = vmul.f32 %v1764, %v1921
      %v1976 = vmul.f32 %v1766, %v1921
      %v1977 = vmul.f32 %v1768, %v1922
      %v1978 = vmul.f32 %v1770, %v1922
      %v1979 = vmul.f32 %v1772, %v1923
      %v1980 = vmul.f32 %v1774, %v1923
      %v1981 = vmul.f32 %v1776, %v1924
      %v1982 = vmul.f32 %v1778, %v1924
      %v1983 = vmul.f32 %v1780, %v1925
      %v1984 = vmul.f32 %v1782, %v1925
      %v1985 = vmul.f32 %v1784, %v1926
      %v1986 = vmul.f32 %v1786, %v1926
      %v1987 = vmul.f32 %v1788, %v1927
      %v1988 = vmul.f32 %v1790, %v1927
      %v1989 = vmul.f32 %v1792, %v1928
      %v1990 = vmul.f32 %v1794, %v1928
      %v1991 = vmul.f32 %v1796, %v1929
      %v1992 = vmul.f32 %v1798, %v1929
      %v1993 = vmul.f32 %v1800, %v1930
      %v1994 = vmul.f32 %v1802, %v1930
      %1995 = vmatprep.subr.mxu0 %v1932
      %1996 = vmatpush1.xpose.msra.mxu0 %v1931
      %1997 = vmatprep.subr.mxu0 %v1934
      %1998 = vmatpush1.xpose.msra.mxu0 %v1933
      %1999 = vmatprep.subr.mxu0 %v1936
      %2000 = vmatpush1.xpose.msra.mxu0 %v1935
      %2001 = vmatprep.subr.mxu0 %v1938
      %2002 = vmatpush1.xpose.msra.mxu0 %v1937
      %2003 = vmatprep.subr.mxu0 %v1940
      %2004 = vmatpush1.xpose.msra.mxu0 %v1939
      %2005 = vmatprep.subr.mxu0 %v1942
      %2006 = vmatpush1.xpose.msra.mxu0 %v1941
      %2007 = vmatprep.subr.mxu0 %v1944
      %2008 = vmatpush1.xpose.msra.mxu0 %v1943
      %2009 = vmatprep.subr.mxu0 %v1946
      %2010 = vmatpush1.xpose.msra.mxu0 %v1945
      %2011 = vmatprep.subr.mxu0 %v1948
      %2012 = vmatpush1.xpose.msra.mxu0 %v1947
      %2013 = vmatprep.subr.mxu0 %v1950
      %2014 = vmatpush1.xpose.msra.mxu0 %v1949
      %2015 = vmatprep.subr.mxu0 %v1952
      %2016 = vmatpush1.xpose.msra.mxu0 %v1951
      %2017 = vmatprep.subr.mxu0 %v1954
      %2018 = vmatpush1.xpose.msra.mxu0 %v1953
      %2019 = vmatprep.subr.mxu0 %v1956
      %2020 = vmatpush1.xpose.msra.mxu0 %v1955
      %2021 = vmatprep.subr.mxu0 %v1958
      %2022 = vmatpush1.xpose.msra.mxu0 %v1957
      %2023 = vmatprep.subr.mxu0 %v1960
      %2024 = vmatpush1.xpose.msra.mxu0 %v1959
      %2025 = vmatprep.subr.mxu0 %v1962
      %2026 = vmatpush1.xpose.msra.mxu0 %v1961
      %2027 = vmatprep.subr.mxu0 %v1964
      %2028 = vmatpush1.xpose.msra.mxu0 %v1963
      %2029 = vmatprep.subr.mxu0 %v1966
      %2030 = vmatpush1.xpose.msra.mxu0 %v1965
      %2031 = vmatprep.subr.mxu0 %v1968
      %2032 = vmatpush1.xpose.msra.mxu0 %v1967
      %2033 = vmatprep.subr.mxu0 %v1970
      %2034 = vmatpush1.xpose.msra.mxu0 %v1969
      %2035 = vmatprep.subr.mxu0 %v1972
      %2036 = vmatpush1.xpose.msra.mxu0 %v1971
      %2037 = vmatprep.subr.mxu0 %v1974
      %2038 = vmatpush1.xpose.msra.mxu0 %v1973
      %2039 = vmatprep.subr.mxu0 %v1976
      %2040 = vmatpush1.xpose.msra.mxu0 %v1975
      %2041 = vmatprep.subr.mxu0 %v1978
      %2042 = vmatpush1.xpose.msra.mxu0 %v1977
      %2043 = vmatprep.subr.mxu0 %v1980
      %2044 = vmatpush1.xpose.msra.mxu0 %v1979
      %2045 = vmatprep.subr.mxu0 %v1982
      %2046 = vmatpush1.xpose.msra.mxu0 %v1981
      %2047 = vmatprep.subr.mxu0 %v1984
      %2048 = vmatpush1.xpose.msra.mxu0 %v1983
      %2049 = vmatprep.subr.mxu0 %v1986
      %2050 = vmatpush1.xpose.msra.mxu0 %v1985
      %2051 = vmatprep.subr.mxu0 %v1988
      %2052 = vmatpush1.xpose.msra.mxu0 %v1987
      %2053 = vmatprep.subr.mxu0 %v1990
      %2054 = vmatpush1.xpose.msra.mxu0 %v1989
      %2055 = vmatprep.subr.mxu0 %v1992
      %2056 = vmatpush1.xpose.msra.mxu0 %v1991
      %2057 = vmatprep.subr.mxu0 %v1994
      %2058 = vmatpush1.xpose.msra.mxu0 %v1993
      %2059 = vmatprep.mubr.f32.mxu0 %v620
      %2060 = vmatmul.mubr.f32.gmra.mrb[0].mxu0 %v618
      %v2061 = vpop.f32.mrb[0].mxu0
      %v2062 = vadd.f32 0.0, %v2061
      %v2063 = vpop.f32.mrb[0].mxu0
      %v2064 = vadd.f32 0.0, %v2063
      %2065 = vmatprep.mubr.f32.mxu0 %v626
      %2066 = vmatmul.mubr.f32.gmra.mrb[0].mxu0 %v624
      %v2067 = vpop.f32.mrb[0].mxu0
      %v2068 = vadd.f32 0.0, %v2067
      %v2069 = vpop.f32.mrb[0].mxu0
      %v2070 = vadd.f32 0.0, %v2069
      %2071 = vdwg.mxu0
      %2072 = vst [vmem:[%s197] sm:$0xff] %v2062
      %2073 = vst [vmem:[%s197 + $0x8] sm:$0xff] %v2064
      %2074 = vst [vmem:[%s197 + $0x10] sm:$0xff] %v2068
      %2075 = vst [vmem:[%s197 + $0x18] sm:$0xff] %v2070
      %2076 = vxpose.xlu0.b32.start [1/16] %v668, 128
      %2077 = vxpose.xlu0.b32.cont [2/16] %v670, 128
      %2078 = vxpose.xlu0.b32.cont [3/16] 0.0, 128
      %2079 = vxpose.xlu0.b32.cont [4/16] 0.0, 128
      %2080 = vxpose.xlu0.b32.cont [5/16] 0.0, 128
      %2081 = vxpose.xlu0.b32.cont [6/16] 0.0, 128
      %2082 = vxpose.xlu0.b32.cont [7/16] 0.0, 128
      %2083 = vxpose.xlu0.b32.cont [8/16] 0.0, 128
      %2084 = vxpose.xlu0.b32.cont [9/16] 0.0, 128
      %2085 = vxpose.xlu0.b32.cont [10/16] 0.0, 128
      %2086 = vxpose.xlu0.b32.cont [11/16] 0.0, 128
      %2087 = vxpose.xlu0.b32.cont [12/16] 0.0, 128
      %2088 = vxpose.xlu0.b32.cont [13/16] 0.0, 128
      %2089 = vxpose.xlu0.b32.cont [14/16] 0.0, 128
      %2090 = vxpose.xlu0.b32.cont [15/16] 0.0, 128
      %2091 = vxpose.xlu0.b32.end [16/16] 0.0, 128
      %v2092 = vpop.trf.xlu0
      %v2093 = vpop.trf.xlu0
      %v2094 = vpop.trf.xlu0
      %v2095 = vpop.trf.xlu0
      %v2096 = vpop.trf.xlu0
      %v2097 = vpop.trf.xlu0
      %v2098 = vpop.trf.xlu0
      %v2099 = vpop.trf.xlu0
      %v2100 = vpop.trf.xlu0
      %v2101 = vpop.trf.xlu0
      %v2102 = vpop.trf.xlu0
      %v2103 = vpop.trf.xlu0
      %v2104 = vpop.trf.xlu0
      %v2105 = vpop.trf.xlu0
      %v2106 = vpop.trf.xlu0
      %v2107 = vpop.trf.xlu0
      %2108 = vxpose.xlu0.b32.start [1/16] %v669, 128
      %2109 = vxpose.xlu0.b32.cont [2/16] %v671, 128
      %2110 = vxpose.xlu0.b32.cont [3/16] 0.0, 128
      %2111 = vxpose.xlu0.b32.cont [4/16] 0.0, 128
      %2112 = vxpose.xlu0.b32.cont [5/16] 0.0, 128
      %2113 = vxpose.xlu0.b32.cont [6/16] 0.0, 128
      %2114 = vxpose.xlu0.b32.cont [7/16] 0.0, 128
      %2115 = vxpose.xlu0.b32.cont [8/16] 0.0, 128
      %2116 = vxpose.xlu0.b32.cont [9/16] 0.0, 128
      %2117 = vxpose.xlu0.b32.cont [10/16] 0.0, 128
      %2118 = vxpose.xlu0.b32.cont [11/16] 0.0, 128
      %2119 = vxpose.xlu0.b32.cont [12/16] 0.0, 128
      %2120 = vxpose.xlu0.b32.cont [13/16] 0.0, 128
      %2121 = vxpose.xlu0.b32.cont [14/16] 0.0, 128
      %2122 = vxpose.xlu0.b32.cont [15/16] 0.0, 128
      %2123 = vxpose.xlu0.b32.end [16/16] 0.0, 128
      %v2124 = vpop.trf.xlu0
      %v2125 = vpop.trf.xlu0
      %v2126 = vpop.trf.xlu0
      %v2127 = vpop.trf.xlu0
      %v2128 = vpop.trf.xlu0
      %v2129 = vpop.trf.xlu0
      %v2130 = vpop.trf.xlu0
      %v2131 = vpop.trf.xlu0
      %v2132 = vpop.trf.xlu0
      %v2133 = vpop.trf.xlu0
      %v2134 = vpop.trf.xlu0
      %v2135 = vpop.trf.xlu0
      %v2136 = vpop.trf.xlu0
      %v2137 = vpop.trf.xlu0
      %v2138 = vpop.trf.xlu0
      %v2139 = vpop.trf.xlu0
      %v2141 = vsel %vm744, %v2092, 0
      %v2144 = vsel %vm744, %v2093, 0
      %v2147 = vsel %vm744, %v2094, 0
      %v2150 = vsel %vm744, %v2095, 0
      %v2153 = vsel %vm744, %v2096, 0
      %v2156 = vsel %vm744, %v2097, 0
      %v2159 = vsel %vm744, %v2098, 0
      %v2162 = vsel %vm744, %v2099, 0
      %v2165 = vsel %vm744, %v2100, 0
      %v2168 = vsel %vm744, %v2101, 0
      %v2171 = vsel %vm744, %v2102, 0
      %v2174 = vsel %vm744, %v2103, 0
      %v2177 = vsel %vm744, %v2104, 0
      %v2180 = vsel %vm744, %v2105, 0
      %v2183 = vsel %vm744, %v2106, 0
      %v2186 = vsel %vm744, %v2107, 0
      %v2189 = vsel %vm744, %v2124, 0
      %v2192 = vsel %vm744, %v2125, 0
      %v2195 = vsel %vm744, %v2126, 0
      %v2198 = vsel %vm744, %v2127, 0
      %v2201 = vsel %vm744, %v2128, 0
      %v2204 = vsel %vm744, %v2129, 0
      %v2207 = vsel %vm744, %v2130, 0
      %v2210 = vsel %vm744, %v2131, 0
      %v2213 = vsel %vm744, %v2132, 0
      %v2216 = vsel %vm744, %v2133, 0
      %v2219 = vsel %vm744, %v2134, 0
      %v2222 = vsel %vm744, %v2135, 0
      %v2225 = vsel %vm744, %v2136, 0
      %v2228 = vsel %vm744, %v2137, 0
      %v2231 = vsel %vm744, %v2138, 0
      %v2234 = vsel %vm744, %v2139, 0
      %2236 = vmatprep.subr.mxu0 %v536
      %2237 = vmatpush1.msra.mxu0 %v534
      %2238 = vmatprep.subr.mxu0 %v542
      %2239 = vmatpush1.msra.mxu0 %v540
      %2240 = vmatprep.subr.mxu0 0.0
      %2241 = vmatpush1.msra.mxu0 0.0
      %2242 = vmatprep.subr.mxu0 0.0
      %2243 = vmatpush1.msra.mxu0 0.0
      %2244 = vmatprep.subr.mxu0 0.0
      %2245 = vmatpush1.msra.mxu0 0.0
      %2246 = vmatprep.subr.mxu0 0.0
      %2247 = vmatpush1.msra.mxu0 0.0
      %2248 = vmatprep.subr.mxu0 0.0
      %2249 = vmatpush1.msra.mxu0 0.0
      %2250 = vmatprep.subr.mxu0 0.0
      %2251 = vmatpush1.msra.mxu0 0.0
      %2252 = vmatprep.subr.mxu0 0.0
      %2253 = vmatpush1.msra.mxu0 0.0
      %2254 = vmatprep.subr.mxu0 0.0
      %2255 = vmatpush1.msra.mxu0 0.0
      %2256 = vmatprep.subr.mxu0 0.0
      %2257 = vmatpush1.msra.mxu0 0.0
      %2258 = vmatprep.subr.mxu0 0.0
      %2259 = vmatpush1.msra.mxu0 0.0
      %2260 = vmatprep.subr.mxu0 0.0
      %2261 = vmatpush1.msra.mxu0 0.0
      %2262 = vmatprep.subr.mxu0 0.0
      %2263 = vmatpush1.msra.mxu0 0.0
      %2264 = vmatprep.subr.mxu0 0.0
      %2265 = vmatpush1.msra.mxu0 0.0
      %2266 = vmatprep.subr.mxu0 0.0
      %2267 = vmatpush1.msra.mxu0 0.0
      %2268 = vmatprep.subr.mxu0 0.0
      %2269 = vmatpush1.msra.mxu0 0.0
      %2270 = vmatprep.subr.mxu0 0.0
      %2271 = vmatpush1.msra.mxu0 0.0
      %2272 = vmatprep.subr.mxu0 0.0
      %2273 = vmatpush1.msra.mxu0 0.0
      %2274 = vmatprep.subr.mxu0 0.0
      %2275 = vmatpush1.msra.mxu0 0.0
      %2276 = vmatprep.subr.mxu0 0.0
      %2277 = vmatpush1.msra.mxu0 0.0
      %2278 = vmatprep.subr.mxu0 0.0
      %2279 = vmatpush1.msra.mxu0 0.0
      %2280 = vmatprep.subr.mxu0 0.0
      %2281 = vmatpush1.msra.mxu0 0.0
      %2282 = vmatprep.subr.mxu0 0.0
      %2283 = vmatpush1.msra.mxu0 0.0
      %2284 = vmatprep.subr.mxu0 0.0
      %2285 = vmatpush1.msra.mxu0 0.0
      %2286 = vmatprep.subr.mxu0 0.0
      %2287 = vmatpush1.msra.mxu0 0.0
      %2288 = vmatprep.subr.mxu0 0.0
      %2289 = vmatpush1.msra.mxu0 0.0
      %2290 = vmatprep.subr.mxu0 0.0
      %2291 = vmatpush1.msra.mxu0 0.0
      %2292 = vmatprep.subr.mxu0 0.0
      %2293 = vmatpush1.msra.mxu0 0.0
      %2294 = vmatprep.subr.mxu0 0.0
      %2295 = vmatpush1.msra.mxu0 0.0
      %2296 = vmatprep.subr.mxu0 0.0
      %2297 = vmatpush1.msra.mxu0 0.0
      %2298 = vmatprep.subr.mxu0 0.0
      %2299 = vmatpush1.msra.mxu0 0.0
      %2300 = vmatprep.mubr.f32.mxu0 0.0
      %2301 = vmatmul.mubr.f32.gmra.mrb[0].mxu0 %v2141
      %v2302 = vpop.f32.mrb[0].mxu0
      %v2303 = vadd.f32 0.0, %v2302
      %v2304 = vpop.f32.mrb[0].mxu0
      %v2305 = vadd.f32 0.0, %v2304
      %2306 = vmatprep.mubr.f32.mxu0 0.0
      %2307 = vmatmul.mubr.f32.gmra.mrb[0].mxu0 %v2144
      %v2308 = vpop.f32.mrb[0].mxu0
      %v2309 = vadd.f32 0.0, %v2308
      %v2310 = vpop.f32.mrb[0].mxu0
      %v2311 = vadd.f32 0.0, %v2310
      %2312 = vmatprep.mubr.f32.mxu0 0.0
      %2313 = vmatmul.mubr.f32.gmra.mrb[0].mxu0 %v2147
      %v2314 = vpop.f32.mrb[0].mxu0
      %v2315 = vadd.f32 0.0, %v2314
      %v2316 = vpop.f32.mrb[0].mxu0
      %v2317 = vadd.f32 0.0, %v2316
      %2318 = vmatprep.mubr.f32.mxu0 0.0
      %2319 = vmatmul.mubr.f32.gmra.mrb[0].mxu0 %v2150
      %v2320 = vpop.f32.mrb[0].mxu0
      %v2321 = vadd.f32 0.0, %v2320
      %v2322 = vpop.f32.mrb[0].mxu0
      %v2323 = vadd.f32 0.0, %v2322
      %2324 = vmatprep.mubr.f32.mxu0 0.0
      %2325 = vmatmul.mubr.f32.gmra.mrb[0].mxu0 %v2153
      %v2326 = vpop.f32.mrb[0].mxu0
      %v2327 = vadd.f32 0.0, %v2326
      %v2328 = vpop.f32.mrb[0].mxu0
      %v2329 = vadd.f32 0.0, %v2328
      %2330 = vmatprep.mubr.f32.mxu0 0.0
      %2331 = vmatmul.mubr.f32.gmra.mrb[0].mxu0 %v2156
      %v2332 = vpop.f32.mrb[0].mxu0
      %v2333 = vadd.f32 0.0, %v2332
      %v2334 = vpop.f32.mrb[0].mxu0
      %v2335 = vadd.f32 0.0, %v2334
      %2336 = vmatprep.mubr.f32.mxu0 0.0
      %2337 = vmatmul.mubr.f32.gmra.mrb[0].mxu0 %v2159
      %v2338 = vpop.f32.mrb[0].mxu0
      %v2339 = vadd.f32 0.0, %v2338
      %v2340 = vpop.f32.mrb[0].mxu0
      %v2341 = vadd.f32 0.0, %v2340
      %2342 = vmatprep.mubr.f32.mxu0 0.0
      %2343 = vmatmul.mubr.f32.gmra.mrb[0].mxu0 %v2162
      %v2344 = vpop.f32.mrb[0].mxu0
      %v2345 = vadd.f32 0.0, %v2344
      %v2346 = vpop.f32.mrb[0].mxu0
      %v2347 = vadd.f32 0.0, %v2346
      %2348 = vmatprep.mubr.f32.mxu0 0.0
      %2349 = vmatmul.mubr.f32.gmra.mrb[0].mxu0 %v2165
      %v2350 = vpop.f32.mrb[0].mxu0
      %v2351 = vadd.f32 0.0, %v2350
      %v2352 = vpop.f32.mrb[0].mxu0
      %v2353 = vadd.f32 0.0, %v2352
      %2354 = vmatprep.mubr.f32.mxu0 0.0
      %2355 = vmatmul.mubr.f32.gmra.mrb[0].mxu0 %v2168
      %v2356 = vpop.f32.mrb[0].mxu0
      %v2357 = vadd.f32 0.0, %v2356
      %v2358 = vpop.f32.mrb[0].mxu0
      %v2359 = vadd.f32 0.0, %v2358
      %2360 = vmatprep.mubr.f32.mxu0 0.0
      %2361 = vmatmul.mubr.f32.gmra.mrb[0].mxu0 %v2171
      %v2362 = vpop.f32.mrb[0].mxu0
      %v2363 = vadd.f32 0.0, %v2362
      %v2364 = vpop.f32.mrb[0].mxu0
      %v2365 = vadd.f32 0.0, %v2364
      %2366 = vmatprep.mubr.f32.mxu0 0.0
      %2367 = vmatmul.mubr.f32.gmra.mrb[0].mxu0 %v2174
      %v2368 = vpop.f32.mrb[0].mxu0
      %v2369 = vadd.f32 0.0, %v2368
      %v2370 = vpop.f32.mrb[0].mxu0
      %v2371 = vadd.f32 0.0, %v2370
      %2372 = vmatprep.mubr.f32.mxu0 0.0
      %2373 = vmatmul.mubr.f32.gmra.mrb[0].mxu0 %v2177
      %v2374 = vpop.f32.mrb[0].mxu0
      %v2375 = vadd.f32 0.0, %v2374
      %v2376 = vpop.f32.mrb[0].mxu0
      %v2377 = vadd.f32 0.0, %v2376
      %2378 = vmatprep.mubr.f32.mxu0 0.0
      %2379 = vmatmul.mubr.f32.gmra.mrb[0].mxu0 %v2180
      %v2380 = vpop.f32.mrb[0].mxu0
      %v2381 = vadd.f32 0.0, %v2380
      %v2382 = vpop.f32.mrb[0].mxu0
      %v2383 = vadd.f32 0.0, %v2382
      %2384 = vmatprep.mubr.f32.mxu0 0.0
      %2385 = vmatmul.mubr.f32.gmra.mrb[0].mxu0 %v2183
      %v2386 = vpop.f32.mrb[0].mxu0
      %v2387 = vadd.f32 0.0, %v2386
      %v2388 = vpop.f32.mrb[0].mxu0
      %v2389 = vadd.f32 0.0, %v2388
      %2390 = vmatprep.mubr.f32.mxu0 0.0
      %2391 = vmatmul.mubr.f32.gmra.mrb[0].mxu0 %v2186
      %v2392 = vpop.f32.mrb[0].mxu0
      %v2393 = vadd.f32 0.0, %v2392
      %v2394 = vpop.f32.mrb[0].mxu0
      %v2395 = vadd.f32 0.0, %v2394
      %2396 = vmatprep.mubr.f32.mxu0 0.0
      %2397 = vmatmul.mubr.f32.gmra.mrb[0].mxu0 %v2189
      %v2398 = vpop.f32.mrb[0].mxu0
      %v2399 = vadd.f32 0.0, %v2398
      %v2400 = vpop.f32.mrb[0].mxu0
      %v2401 = vadd.f32 0.0, %v2400
      %2402 = vmatprep.mubr.f32.mxu0 0.0
      %2403 = vmatmul.mubr.f32.gmra.mrb[0].mxu0 %v2192
      %v2404 = vpop.f32.mrb[0].mxu0
      %v2405 = vadd.f32 0.0, %v2404
      %v2406 = vpop.f32.mrb[0].mxu0
      %v2407 = vadd.f32 0.0, %v2406
      %2408 = vmatprep.mubr.f32.mxu0 0.0
      %2409 = vmatmul.mubr.f32.gmra.mrb[0].mxu0 %v2195
      %v2410 = vpop.f32.mrb[0].mxu0
      %v2411 = vadd.f32 0.0, %v2410
      %v2412 = vpop.f32.mrb[0].mxu0
      %v2413 = vadd.f32 0.0, %v2412
      %2414 = vmatprep.mubr.f32.mxu0 0.0
      %2415 = vmatmul.mubr.f32.gmra.mrb[0].mxu0 %v2198
      %v2416 = vpop.f32.mrb[0].mxu0
      %v2417 = vadd.f32 0.0, %v2416
      %v2418 = vpop.f32.mrb[0].mxu0
      %v2419 = vadd.f32 0.0, %v2418
      %2420 = vmatprep.mubr.f32.mxu0 0.0
      %2421 = vmatmul.mubr.f32.gmra.mrb[0].mxu0 %v2201
      %v2422 = vpop.f32.mrb[0].mxu0
      %v2423 = vadd.f32 0.0, %v2422
      %v2424 = vpop.f32.mrb[0].mxu0
      %v2425 = vadd.f32 0.0, %v2424
      %2426 = vmatprep.mubr.f32.mxu0 0.0
      %2427 = vmatmul.mubr.f32.gmra.mrb[0].mxu0 %v2204
      %v2428 = vpop.f32.mrb[0].mxu0
      %v2429 = vadd.f32 0.0, %v2428
      %v2430 = vpop.f32.mrb[0].mxu0
      %v2431 = vadd.f32 0.0, %v2430
      %2432 = vmatprep.mubr.f32.mxu0 0.0
      %2433 = vmatmul.mubr.f32.gmra.mrb[0].mxu0 %v2207
      %v2434 = vpop.f32.mrb[0].mxu0
      %v2435 = vadd.f32 0.0, %v2434
      %v2436 = vpop.f32.mrb[0].mxu0
      %v2437 = vadd.f32 0.0, %v2436
      %2438 = vmatprep.mubr.f32.mxu0 0.0
      %2439 = vmatmul.mubr.f32.gmra.mrb[0].mxu0 %v2210
      %v2440 = vpop.f32.mrb[0].mxu0
      %v2441 = vadd.f32 0.0, %v2440
      %v2442 = vpop.f32.mrb[0].mxu0
      %v2443 = vadd.f32 0.0, %v2442
      %2444 = vmatprep.mubr.f32.mxu0 0.0
      %2445 = vmatmul.mubr.f32.gmra.mrb[0].mxu0 %v2213
      %v2446 = vpop.f32.mrb[0].mxu0
      %v2447 = vadd.f32 0.0, %v2446
      %v2448 = vpop.f32.mrb[0].mxu0
      %v2449 = vadd.f32 0.0, %v2448
      %2450 = vmatprep.mubr.f32.mxu0 0.0
      %2451 = vmatmul.mubr.f32.gmra.mrb[0].mxu0 %v2216
      %v2452 = vpop.f32.mrb[0].mxu0
      %v2453 = vadd.f32 0.0, %v2452
      %v2454 = vpop.f32.mrb[0].mxu0
      %v2455 = vadd.f32 0.0, %v2454
      %2456 = vmatprep.mubr.f32.mxu0 0.0
      %2457 = vmatmul.mubr.f32.gmra.mrb[0].mxu0 %v2219
      %v2458 = vpop.f32.mrb[0].mxu0
      %v2459 = vadd.f32 0.0, %v2458
      %v2460 = vpop.f32.mrb[0].mxu0
      %v2461 = vadd.f32 0.0, %v2460
      %2462 = vmatprep.mubr.f32.mxu0 0.0
      %2463 = vmatmul.mubr.f32.gmra.mrb[0].mxu0 %v2222
      %v2464 = vpop.f32.mrb[0].mxu0
      %v2465 = vadd.f32 0.0, %v2464
      %v2466 = vpop.f32.mrb[0].mxu0
      %v2467 = vadd.f32 0.0, %v2466
      %2468 = vmatprep.mubr.f32.mxu0 0.0
      %2469 = vmatmul.mubr.f32.gmra.mrb[0].mxu0 %v2225
      %v2470 = vpop.f32.mrb[0].mxu0
      %v2471 = vadd.f32 0.0, %v2470
      %v2472 = vpop.f32.mrb[0].mxu0
      %v2473 = vadd.f32 0.0, %v2472
      %2474 = vmatprep.mubr.f32.mxu0 0.0
      %2475 = vmatmul.mubr.f32.gmra.mrb[0].mxu0 %v2228
      %v2476 = vpop.f32.mrb[0].mxu0
      %v2477 = vadd.f32 0.0, %v2476
      %v2478 = vpop.f32.mrb[0].mxu0
      %v2479 = vadd.f32 0.0, %v2478
      %2480 = vmatprep.mubr.f32.mxu0 0.0
      %2481 = vmatmul.mubr.f32.gmra.mrb[0].mxu0 %v2231
      %v2482 = vpop.f32.mrb[0].mxu0
      %v2483 = vadd.f32 0.0, %v2482
      %v2484 = vpop.f32.mrb[0].mxu0
      %v2485 = vadd.f32 0.0, %v2484
      %2486 = vmatprep.mubr.f32.mxu0 0.0
      %2487 = vmatmul.mubr.f32.gmra.mrb[0].mxu0 %v2234
      %v2488 = vpop.f32.mrb[0].mxu0
      %v2489 = vadd.f32 0.0, %v2488
      %v2490 = vpop.f32.mrb[0].mxu0
      %v2491 = vadd.f32 0.0, %v2490
      %2492 = vdwg.mxu0
      %2493 = vxpose.xlu0.b32.start [1/16] %v534, 128
      %2494 = vxpose.xlu0.b32.cont [2/16] %v540, 128
      %2495 = vxpose.xlu0.b32.cont [3/16] 0.0, 128
      %2496 = vxpose.xlu0.b32.cont [4/16] 0.0, 128
      %2497 = vxpose.xlu0.b32.cont [5/16] 0.0, 128
      %2498 = vxpose.xlu0.b32.cont [6/16] 0.0, 128
      %2499 = vxpose.xlu0.b32.cont [7/16] 0.0, 128
      %2500 = vxpose.xlu0.b32.cont [8/16] 0.0, 128
      %2501 = vxpose.xlu0.b32.cont [9/16] 0.0, 128
      %2502 = vxpose.xlu0.b32.cont [10/16] 0.0, 128
      %2503 = vxpose.xlu0.b32.cont [11/16] 0.0, 128
      %2504 = vxpose.xlu0.b32.cont [12/16] 0.0, 128
      %2505 = vxpose.xlu0.b32.cont [13/16] 0.0, 128
      %2506 = vxpose.xlu0.b32.cont [14/16] 0.0, 128
      %2507 = vxpose.xlu0.b32.cont [15/16] 0.0, 128
      %2508 = vxpose.xlu0.b32.end [16/16] 0.0, 128
      %v2509 = vpop.trf.xlu0
      %v2510 = vpop.trf.xlu0
      %v2511 = vpop.trf.xlu0
      %v2512 = vpop.trf.xlu0
      %v2513 = vpop.trf.xlu0
      %v2514 = vpop.trf.xlu0
      %v2515 = vpop.trf.xlu0
      %v2516 = vpop.trf.xlu0
      %v2517 = vpop.trf.xlu0
      %v2518 = vpop.trf.xlu0
      %v2519 = vpop.trf.xlu0
      %v2520 = vpop.trf.xlu0
      %v2521 = vpop.trf.xlu0
      %v2522 = vpop.trf.xlu0
      %v2523 = vpop.trf.xlu0
      %v2524 = vpop.trf.xlu0
      %2525 = vxpose.xlu0.b32.start [1/16] %v536, 128
      %2526 = vxpose.xlu0.b32.cont [2/16] %v542, 128
      %2527 = vxpose.xlu0.b32.cont [3/16] 0.0, 128
      %2528 = vxpose.xlu0.b32.cont [4/16] 0.0, 128
      %2529 = vxpose.xlu0.b32.cont [5/16] 0.0, 128
      %2530 = vxpose.xlu0.b32.cont [6/16] 0.0, 128
      %2531 = vxpose.xlu0.b32.cont [7/16] 0.0, 128
      %2532 = vxpose.xlu0.b32.cont [8/16] 0.0, 128
      %2533 = vxpose.xlu0.b32.cont [9/16] 0.0, 128
      %2534 = vxpose.xlu0.b32.cont [10/16] 0.0, 128
      %2535 = vxpose.xlu0.b32.cont [11/16] 0.0, 128
      %2536 = vxpose.xlu0.b32.cont [12/16] 0.0, 128
      %2537 = vxpose.xlu0.b32.cont [13/16] 0.0, 128
      %2538 = vxpose.xlu0.b32.cont [14/16] 0.0, 128
      %2539 = vxpose.xlu0.b32.cont [15/16] 0.0, 128
      %2540 = vxpose.xlu0.b32.end [16/16] 0.0, 128
      %v2541 = vpop.trf.xlu0
      %v2542 = vpop.trf.xlu0
      %v2543 = vpop.trf.xlu0
      %v2544 = vpop.trf.xlu0
      %v2545 = vpop.trf.xlu0
      %v2546 = vpop.trf.xlu0
      %v2547 = vpop.trf.xlu0
      %v2548 = vpop.trf.xlu0
      %v2549 = vpop.trf.xlu0
      %v2550 = vpop.trf.xlu0
      %v2551 = vpop.trf.xlu0
      %v2552 = vpop.trf.xlu0
      %v2553 = vpop.trf.xlu0
      %v2554 = vpop.trf.xlu0
      %v2555 = vpop.trf.xlu0
      %v2556 = vpop.trf.xlu0
      %v2558 = vsel %vm744, %v2509, 0
      %v2561 = vsel %vm744, %v2510, 0
      %v2564 = vsel %vm744, %v2511, 0
      %v2567 = vsel %vm744, %v2512, 0
      %v2570 = vsel %vm744, %v2513, 0
      %v2573 = vsel %vm744, %v2514, 0
      %v2576 = vsel %vm744, %v2515, 0
      %v2579 = vsel %vm744, %v2516, 0
      %v2582 = vsel %vm744, %v2517, 0
      %v2585 = vsel %vm744, %v2518, 0
      %v2588 = vsel %vm744, %v2519, 0
      %v2591 = vsel %vm744, %v2520, 0
      %v2594 = vsel %vm744, %v2521, 0
      %v2597 = vsel %vm744, %v2522, 0
      %v2600 = vsel %vm744, %v2523, 0
      %v2603 = vsel %vm744, %v2524, 0
      %v2606 = vsel %vm744, %v2541, 0
      %v2609 = vsel %vm744, %v2542, 0
      %v2612 = vsel %vm744, %v2543, 0
      %v2615 = vsel %vm744, %v2544, 0
      %v2618 = vsel %vm744, %v2545, 0
      %v2621 = vsel %vm744, %v2546, 0
      %v2624 = vsel %vm744, %v2547, 0
      %v2627 = vsel %vm744, %v2548, 0
      %v2630 = vsel %vm744, %v2549, 0
      %v2633 = vsel %vm744, %v2550, 0
      %v2636 = vsel %vm744, %v2551, 0
      %v2639 = vsel %vm744, %v2552, 0
      %v2642 = vsel %vm744, %v2553, 0
      %v2645 = vsel %vm744, %v2554, 0
      %v2648 = vsel %vm744, %v2555, 0
      %v2651 = vsel %vm744, %v2556, 0
      %2653 = vmatprep.subr.mxu0 %v584
      %2654 = vmatpush1.msra.mxu0 %v582
      %2655 = vmatprep.subr.mxu0 %v590
      %2656 = vmatpush1.msra.mxu0 %v588
      %2657 = vmatprep.subr.mxu0 0.0
      %2658 = vmatpush1.msra.mxu0 0.0
      %2659 = vmatprep.subr.mxu0 0.0
      %2660 = vmatpush1.msra.mxu0 0.0
      %2661 = vmatprep.subr.mxu0 0.0
      %2662 = vmatpush1.msra.mxu0 0.0
      %2663 = vmatprep.subr.mxu0 0.0
      %2664 = vmatpush1.msra.mxu0 0.0
      %2665 = vmatprep.subr.mxu0 0.0
      %2666 = vmatpush1.msra.mxu0 0.0
      %2667 = vmatprep.subr.mxu0 0.0
      %2668 = vmatpush1.msra.mxu0 0.0
      %2669 = vmatprep.subr.mxu0 0.0
      %2670 = vmatpush1.msra.mxu0 0.0
      %2671 = vmatprep.subr.mxu0 0.0
      %2672 = vmatpush1.msra.mxu0 0.0
      %2673 = vmatprep.subr.mxu0 0.0
      %2674 = vmatpush1.msra.mxu0 0.0
      %2675 = vmatprep.subr.mxu0 0.0
      %2676 = vmatpush1.msra.mxu0 0.0
      %2677 = vmatprep.subr.mxu0 0.0
      %2678 = vmatpush1.msra.mxu0 0.0
      %2679 = vmatprep.subr.mxu0 0.0
      %2680 = vmatpush1.msra.mxu0 0.0
      %2681 = vmatprep.subr.mxu0 0.0
      %2682 = vmatpush1.msra.mxu0 0.0
      %2683 = vmatprep.subr.mxu0 0.0
      %2684 = vmatpush1.msra.mxu0 0.0
      %2685 = vmatprep.subr.mxu0 0.0
      %2686 = vmatpush1.msra.mxu0 0.0
      %2687 = vmatprep.subr.mxu0 0.0
      %2688 = vmatpush1.msra.mxu0 0.0
      %2689 = vmatprep.subr.mxu0 0.0
      %2690 = vmatpush1.msra.mxu0 0.0
      %2691 = vmatprep.subr.mxu0 0.0
      %2692 = vmatpush1.msra.mxu0 0.0
      %2693 = vmatprep.subr.mxu0 0.0
      %2694 = vmatpush1.msra.mxu0 0.0
      %2695 = vmatprep.subr.mxu0 0.0
      %2696 = vmatpush1.msra.mxu0 0.0
      %2697 = vmatprep.subr.mxu0 0.0
      %2698 = vmatpush1.msra.mxu0 0.0
      %2699 = vmatprep.subr.mxu0 0.0
      %2700 = vmatpush1.msra.mxu0 0.0
      %2701 = vmatprep.subr.mxu0 0.0
      %2702 = vmatpush1.msra.mxu0 0.0
      %2703 = vmatprep.subr.mxu0 0.0
      %2704 = vmatpush1.msra.mxu0 0.0
      %2705 = vmatprep.subr.mxu0 0.0
      %2706 = vmatpush1.msra.mxu0 0.0
      %2707 = vmatprep.subr.mxu0 0.0
      %2708 = vmatpush1.msra.mxu0 0.0
      %2709 = vmatprep.subr.mxu0 0.0
      %2710 = vmatpush1.msra.mxu0 0.0
      %2711 = vmatprep.subr.mxu0 0.0
      %2712 = vmatpush1.msra.mxu0 0.0
      %2713 = vmatprep.subr.mxu0 0.0
      %2714 = vmatpush1.msra.mxu0 0.0
      %2715 = vmatprep.subr.mxu0 0.0
      %2716 = vmatpush1.msra.mxu0 0.0
      %2717 = vmatprep.mubr.f32.mxu0 0.0
      %2718 = vmatmul.mubr.f32.gmra.mrb[0].mxu0 %v2558
      %v2719 = vpop.f32.mrb[0].mxu0
      %v2720 = vadd.f32 %v2303, %v2719
      %v2721 = vpop.f32.mrb[0].mxu0
      %v2722 = vadd.f32 %v2305, %v2721
      %2723 = vmatprep.mubr.f32.mxu0 0.0
      %2724 = vmatmul.mubr.f32.gmra.mrb[0].mxu0 %v2561
      %v2725 = vpop.f32.mrb[0].mxu0
      %v2726 = vadd.f32 %v2309, %v2725
      %v2727 = vpop.f32.mrb[0].mxu0
      %v2728 = vadd.f32 %v2311, %v2727
      %2729 = vmatprep.mubr.f32.mxu0 0.0
      %2730 = vmatmul.mubr.f32.gmra.mrb[0].mxu0 %v2564
      %v2731 = vpop.f32.mrb[0].mxu0
      %v2732 = vadd.f32 %v2315, %v2731
      %v2733 = vpop.f32.mrb[0].mxu0
      %v2734 = vadd.f32 %v2317, %v2733
      %2735 = vmatprep.mubr.f32.mxu0 0.0
      %2736 = vmatmul.mubr.f32.gmra.mrb[0].mxu0 %v2567
      %v2737 = vpop.f32.mrb[0].mxu0
      %v2738 = vadd.f32 %v2321, %v2737
      %v2739 = vpop.f32.mrb[0].mxu0
      %v2740 = vadd.f32 %v2323, %v2739
      %2741 = vmatprep.mubr.f32.mxu0 0.0
      %2742 = vmatmul.mubr.f32.gmra.mrb[0].mxu0 %v2570
      %v2743 = vpop.f32.mrb[0].mxu0
      %v2744 = vadd.f32 %v2327, %v2743
      %v2745 = vpop.f32.mrb[0].mxu0
      %v2746 = vadd.f32 %v2329, %v2745
      %2747 = vmatprep.mubr.f32.mxu0 0.0
      %2748 = vmatmul.mubr.f32.gmra.mrb[0].mxu0 %v2573
      %v2749 = vpop.f32.mrb[0].mxu0
      %v2750 = vadd.f32 %v2333, %v2749
      %v2751 = vpop.f32.mrb[0].mxu0
      %v2752 = vadd.f32 %v2335, %v2751
      %2753 = vmatprep.mubr.f32.mxu0 0.0
      %2754 = vmatmul.mubr.f32.gmra.mrb[0].mxu0 %v2576
      %v2755 = vpop.f32.mrb[0].mxu0
      %v2756 = vadd.f32 %v2339, %v2755
      %v2757 = vpop.f32.mrb[0].mxu0
      %v2758 = vadd.f32 %v2341, %v2757
      %2759 = vmatprep.mubr.f32.mxu0 0.0
      %2760 = vmatmul.mubr.f32.gmra.mrb[0].mxu0 %v2579
      %v2761 = vpop.f32.mrb[0].mxu0
      %v2762 = vadd.f32 %v2345, %v2761
      %v2763 = vpop.f32.mrb[0].mxu0
      %v2764 = vadd.f32 %v2347, %v2763
      %2765 = vmatprep.mubr.f32.mxu0 0.0
      %2766 = vmatmul.mubr.f32.gmra.mrb[0].mxu0 %v2582
      %v2767 = vpop.f32.mrb[0].mxu0
      %v2768 = vadd.f32 %v2351, %v2767
      %v2769 = vpop.f32.mrb[0].mxu0
      %v2770 = vadd.f32 %v2353, %v2769
      %2771 = vmatprep.mubr.f32.mxu0 0.0
      %2772 = vmatmul.mubr.f32.gmra.mrb[0].mxu0 %v2585
      %v2773 = vpop.f32.mrb[0].mxu0
      %v2774 = vadd.f32 %v2357, %v2773
      %v2775 = vpop.f32.mrb[0].mxu0
      %v2776 = vadd.f32 %v2359, %v2775
      %2777 = vmatprep.mubr.f32.mxu0 0.0
      %2778 = vmatmul.mubr.f32.gmra.mrb[0].mxu0 %v2588
      %v2779 = vpop.f32.mrb[0].mxu0
      %v2780 = vadd.f32 %v2363, %v2779
      %v2781 = vpop.f32.mrb[0].mxu0
      %v2782 = vadd.f32 %v2365, %v2781
      %2783 = vmatprep.mubr.f32.mxu0 0.0
      %2784 = vmatmul.mubr.f32.gmra.mrb[0].mxu0 %v2591
      %v2785 = vpop.f32.mrb[0].mxu0
      %v2786 = vadd.f32 %v2369, %v2785
      %v2787 = vpop.f32.mrb[0].mxu0
      %v2788 = vadd.f32 %v2371, %v2787
      %2789 = vmatprep.mubr.f32.mxu0 0.0
      %2790 = vmatmul.mubr.f32.gmra.mrb[0].mxu0 %v2594
      %v2791 = vpop.f32.mrb[0].mxu0
      %v2792 = vadd.f32 %v2375, %v2791
      %v2793 = vpop.f32.mrb[0].mxu0
      %v2794 = vadd.f32 %v2377, %v2793
      %2795 = vmatprep.mubr.f32.mxu0 0.0
      %2796 = vmatmul.mubr.f32.gmra.mrb[0].mxu0 %v2597
      %v2797 = vpop.f32.mrb[0].mxu0
      %v2798 = vadd.f32 %v2381, %v2797
      %v2799 = vpop.f32.mrb[0].mxu0
      %v2800 = vadd.f32 %v2383, %v2799
      %2801 = vmatprep.mubr.f32.mxu0 0.0
      %2802 = vmatmul.mubr.f32.gmra.mrb[0].mxu0 %v2600
      %v2803 = vpop.f32.mrb[0].mxu0
      %v2804 = vadd.f32 %v2387, %v2803
      %v2805 = vpop.f32.mrb[0].mxu0
      %v2806 = vadd.f32 %v2389, %v2805
      %2807 = vmatprep.mubr.f32.mxu0 0.0
      %2808 = vmatmul.mubr.f32.gmra.mrb[0].mxu0 %v2603
      %v2809 = vpop.f32.mrb[0].mxu0
      %v2810 = vadd.f32 %v2393, %v2809
      %v2811 = vpop.f32.mrb[0].mxu0
      %v2812 = vadd.f32 %v2395, %v2811
      %2813 = vmatprep.mubr.f32.mxu0 0.0
      %2814 = vmatmul.mubr.f32.gmra.mrb[0].mxu0 %v2606
      %v2815 = vpop.f32.mrb[0].mxu0
      %v2816 = vadd.f32 %v2399, %v2815
      %v2817 = vpop.f32.mrb[0].mxu0
      %v2818 = vadd.f32 %v2401, %v2817
      %2819 = vmatprep.mubr.f32.mxu0 0.0
      %2820 = vmatmul.mubr.f32.gmra.mrb[0].mxu0 %v2609
      %v2821 = vpop.f32.mrb[0].mxu0
      %v2822 = vadd.f32 %v2405, %v2821
      %v2823 = vpop.f32.mrb[0].mxu0
      %v2824 = vadd.f32 %v2407, %v2823
      %2825 = vmatprep.mubr.f32.mxu0 0.0
      %2826 = vmatmul.mubr.f32.gmra.mrb[0].mxu0 %v2612
      %v2827 = vpop.f32.mrb[0].mxu0
      %v2828 = vadd.f32 %v2411, %v2827
      %v2829 = vpop.f32.mrb[0].mxu0
      %v2830 = vadd.f32 %v2413, %v2829
      %2831 = vmatprep.mubr.f32.mxu0 0.0
      %2832 = vmatmul.mubr.f32.gmra.mrb[0].mxu0 %v2615
      %v2833 = vpop.f32.mrb[0].mxu0
      %v2834 = vadd.f32 %v2417, %v2833
      %v2835 = vpop.f32.mrb[0].mxu0
      %v2836 = vadd.f32 %v2419, %v2835
      %2837 = vmatprep.mubr.f32.mxu0 0.0
      %2838 = vmatmul.mubr.f32.gmra.mrb[0].mxu0 %v2618
      %v2839 = vpop.f32.mrb[0].mxu0
      %v2840 = vadd.f32 %v2423, %v2839
      %v2841 = vpop.f32.mrb[0].mxu0
      %v2842 = vadd.f32 %v2425, %v2841
      %2843 = vmatprep.mubr.f32.mxu0 0.0
      %2844 = vmatmul.mubr.f32.gmra.mrb[0].mxu0 %v2621
      %v2845 = vpop.f32.mrb[0].mxu0
      %v2846 = vadd.f32 %v2429, %v2845
      %v2847 = vpop.f32.mrb[0].mxu0
      %v2848 = vadd.f32 %v2431, %v2847
      %2849 = vmatprep.mubr.f32.mxu0 0.0
      %2850 = vmatmul.mubr.f32.gmra.mrb[0].mxu0 %v2624
      %v2851 = vpop.f32.mrb[0].mxu0
      %v2852 = vadd.f32 %v2435, %v2851
      %v2853 = vpop.f32.mrb[0].mxu0
      %v2854 = vadd.f32 %v2437, %v2853
      %2855 = vmatprep.mubr.f32.mxu0 0.0
      %2856 = vmatmul.mubr.f32.gmra.mrb[0].mxu0 %v2627
      %v2857 = vpop.f32.mrb[0].mxu0
      %v2858 = vadd.f32 %v2441, %v2857
      %v2859 = vpop.f32.mrb[0].mxu0
      %v2860 = vadd.f32 %v2443, %v2859
      %2861 = vmatprep.mubr.f32.mxu0 0.0
      %2862 = vmatmul.mubr.f32.gmra.mrb[0].mxu0 %v2630
      %v2863 = vpop.f32.mrb[0].mxu0
      %v2864 = vadd.f32 %v2447, %v2863
      %v2865 = vpop.f32.mrb[0].mxu0
      %v2866 = vadd.f32 %v2449, %v2865
      %2867 = vmatprep.mubr.f32.mxu0 0.0
      %2868 = vmatmul.mubr.f32.gmra.mrb[0].mxu0 %v2633
      %v2869 = vpop.f32.mrb[0].mxu0
      %v2870 = vadd.f32 %v2453, %v2869
      %v2871 = vpop.f32.mrb[0].mxu0
      %v2872 = vadd.f32 %v2455, %v2871
      %2873 = vmatprep.mubr.f32.mxu0 0.0
      %2874 = vmatmul.mubr.f32.gmra.mrb[0].mxu0 %v2636
      %v2875 = vpop.f32.mrb[0].mxu0
      %v2876 = vadd.f32 %v2459, %v2875
      %v2877 = vpop.f32.mrb[0].mxu0
      %v2878 = vadd.f32 %v2461, %v2877
      %2879 = vmatprep.mubr.f32.mxu0 0.0
      %2880 = vmatmul.mubr.f32.gmra.mrb[0].mxu0 %v2639
      %v2881 = vpop.f32.mrb[0].mxu0
      %v2882 = vadd.f32 %v2465, %v2881
      %v2883 = vpop.f32.mrb[0].mxu0
      %v2884 = vadd.f32 %v2467, %v2883
      %2885 = vmatprep.mubr.f32.mxu0 0.0
      %2886 = vmatmul.mubr.f32.gmra.mrb[0].mxu0 %v2642
      %v2887 = vpop.f32.mrb[0].mxu0
      %v2888 = vadd.f32 %v2471, %v2887
      %v2889 = vpop.f32.mrb[0].mxu0
      %v2890 = vadd.f32 %v2473, %v2889
      %2891 = vmatprep.mubr.f32.mxu0 0.0
      %2892 = vmatmul.mubr.f32.gmra.mrb[0].mxu0 %v2645
      %v2893 = vpop.f32.mrb[0].mxu0
      %v2894 = vadd.f32 %v2477, %v2893
      %v2895 = vpop.f32.mrb[0].mxu0
      %v2896 = vadd.f32 %v2479, %v2895
      %2897 = vmatprep.mubr.f32.mxu0 0.0
      %2898 = vmatmul.mubr.f32.gmra.mrb[0].mxu0 %v2648
      %v2899 = vpop.f32.mrb[0].mxu0
      %v2900 = vadd.f32 %v2483, %v2899
      %v2901 = vpop.f32.mrb[0].mxu0
      %v2902 = vadd.f32 %v2485, %v2901
      %2903 = vmatprep.mubr.f32.mxu0 0.0
      %2904 = vmatmul.mubr.f32.gmra.mrb[0].mxu0 %v2651
      %v2905 = vpop.f32.mrb[0].mxu0
      %v2906 = vadd.f32 %v2489, %v2905
      %v2907 = vpop.f32.mrb[0].mxu0
      %v2908 = vadd.f32 %v2491, %v2907
      %2909 = vdwg.mxu0
      %v2910 = vmax.f32 %v2720, %v2722
      %2911 = vmax.xlane.f32.xlu0 %v2910
      %v2912 = vpop.xlane.xlu0 %2911
      %v2913 = vmax.f32 %v2726, %v2728
      %2914 = vmax.xlane.f32.xlu0 %v2913
      %v2915 = vpop.xlane.xlu0 %2914
      %v2916 = vmax.f32 %v2732, %v2734
      %2917 = vmax.xlane.f32.xlu0 %v2916
      %v2918 = vpop.xlane.xlu0 %2917
      %v2919 = vmax.f32 %v2738, %v2740
      %2920 = vmax.xlane.f32.xlu0 %v2919
      %v2921 = vpop.xlane.xlu0 %2920
      %v2922 = vmax.f32 %v2744, %v2746
      %2923 = vmax.xlane.f32.xlu0 %v2922
      %v2924 = vpop.xlane.xlu0 %2923
      %v2925 = vmax.f32 %v2750, %v2752
      %2926 = vmax.xlane.f32.xlu0 %v2925
      %v2927 = vpop.xlane.xlu0 %2926
      %v2928 = vmax.f32 %v2756, %v2758
      %2929 = vmax.xlane.f32.xlu0 %v2928
      %v2930 = vpop.xlane.xlu0 %2929
      %v2931 = vmax.f32 %v2762, %v2764
      %2932 = vmax.xlane.f32.xlu0 %v2931
      %v2933 = vpop.xlane.xlu0 %2932
      %v2934 = vmax.f32 %v2768, %v2770
      %2935 = vmax.xlane.f32.xlu0 %v2934
      %v2936 = vpop.xlane.xlu0 %2935
      %v2937 = vmax.f32 %v2774, %v2776
      %2938 = vmax.xlane.f32.xlu0 %v2937
      %v2939 = vpop.xlane.xlu0 %2938
      %v2940 = vmax.f32 %v2780, %v2782
      %2941 = vmax.xlane.f32.xlu0 %v2940
      %v2942 = vpop.xlane.xlu0 %2941
      %v2943 = vmax.f32 %v2786, %v2788
      %2944 = vmax.xlane.f32.xlu0 %v2943
      %v2945 = vpop.xlane.xlu0 %2944
      %v2946 = vmax.f32 %v2792, %v2794
      %2947 = vmax.xlane.f32.xlu0 %v2946
      %v2948 = vpop.xlane.xlu0 %2947
      %v2949 = vmax.f32 %v2798, %v2800
      %2950 = vmax.xlane.f32.xlu0 %v2949
      %v2951 = vpop.xlane.xlu0 %2950
      %v2952 = vmax.f32 %v2804, %v2806
      %2953 = vmax.xlane.f32.xlu0 %v2952
      %v2954 = vpop.xlane.xlu0 %2953
      %v2955 = vmax.f32 %v2810, %v2812
      %2956 = vmax.xlane.f32.xlu0 %v2955
      %v2957 = vpop.xlane.xlu0 %2956
      %v2958 = vmax.f32 %v2816, %v2818
      %2959 = vmax.xlane.f32.xlu0 %v2958
      %v2960 = vpop.xlane.xlu0 %2959
      %v2961 = vmax.f32 %v2822, %v2824
      %2962 = vmax.xlane.f32.xlu0 %v2961
      %v2963 = vpop.xlane.xlu0 %2962
      %v2964 = vmax.f32 %v2828, %v2830
      %2965 = vmax.xlane.f32.xlu0 %v2964
      %v2966 = vpop.xlane.xlu0 %2965
      %v2967 = vmax.f32 %v2834, %v2836
      %2968 = vmax.xlane.f32.xlu0 %v2967
      %v2969 = vpop.xlane.xlu0 %2968
      %v2970 = vmax.f32 %v2840, %v2842
      %2971 = vmax.xlane.f32.xlu0 %v2970
      %v2972 = vpop.xlane.xlu0 %2971
      %v2973 = vmax.f32 %v2846, %v2848
      %2974 = vmax.xlane.f32.xlu0 %v2973
      %v2975 = vpop.xlane.xlu0 %2974
      %v2976 = vmax.f32 %v2852, %v2854
      %2977 = vmax.xlane.f32.xlu0 %v2976
      %v2978 = vpop.xlane.xlu0 %2977
      %v2979 = vmax.f32 %v2858, %v2860
      %2980 = vmax.xlane.f32.xlu0 %v2979
      %v2981 = vpop.xlane.xlu0 %2980
      %v2982 = vmax.f32 %v2864, %v2866
      %2983 = vmax.xlane.f32.xlu0 %v2982
      %v2984 = vpop.xlane.xlu0 %2983
      %v2985 = vmax.f32 %v2870, %v2872
      %2986 = vmax.xlane.f32.xlu0 %v2985
      %v2987 = vpop.xlane.xlu0 %2986
      %v2988 = vmax.f32 %v2876, %v2878
      %2989 = vmax.xlane.f32.xlu0 %v2988
      %v2990 = vpop.xlane.xlu0 %2989
      %v2991 = vmax.f32 %v2882, %v2884
      %2992 = vmax.xlane.f32.xlu0 %v2991
      %v2993 = vpop.xlane.xlu0 %2992
      %v2994 = vmax.f32 %v2888, %v2890
      %2995 = vmax.xlane.f32.xlu0 %v2994
      %v2996 = vpop.xlane.xlu0 %2995
      %v2997 = vmax.f32 %v2894, %v2896
      %2998 = vmax.xlane.f32.xlu0 %v2997
      %v2999 = vpop.xlane.xlu0 %2998
      %v3000 = vmax.f32 %v2900, %v2902
      %3001 = vmax.xlane.f32.xlu0 %v3000
      %v3002 = vpop.xlane.xlu0 %3001
      %v3003 = vmax.f32 %v2906, %v2908
      %3004 = vmax.xlane.f32.xlu0 %v3003
      %v3005 = vpop.xlane.xlu0 %3004
      %v3006 = vsub.f32 %v2720, %v2912
      %v3007 = vsub.f32 %v2722, %v2912
      %v3008 = vsub.f32 %v2726, %v2915
      %v3009 = vsub.f32 %v2728, %v2915
      %v3010 = vsub.f32 %v2732, %v2918
      %v3011 = vsub.f32 %v2734, %v2918
      %v3012 = vsub.f32 %v2738, %v2921
      %v3013 = vsub.f32 %v2740, %v2921
      %v3014 = vsub.f32 %v2744, %v2924
      %v3015 = vsub.f32 %v2746, %v2924
      %v3016 = vsub.f32 %v2750, %v2927
      %v3017 = vsub.f32 %v2752, %v2927
      %v3018 = vsub.f32 %v2756, %v2930
      %v3019 = vsub.f32 %v2758, %v2930
      %v3020 = vsub.f32 %v2762, %v2933
      %v3021 = vsub.f32 %v2764, %v2933
      %v3022 = vsub.f32 %v2768, %v2936
      %v3023 = vsub.f32 %v2770, %v2936
      %v3024 = vsub.f32 %v2774, %v2939
      %v3025 = vsub.f32 %v2776, %v2939
      %v3026 = vsub.f32 %v2780, %v2942
      %v3027 = vsub.f32 %v2782, %v2942
      %v3028 = vsub.f32 %v2786, %v2945
      %v3029 = vsub.f32 %v2788, %v2945
      %v3030 = vsub.f32 %v2792, %v2948
      %v3031 = vsub.f32 %v2794, %v2948
      %v3032 = vsub.f32 %v2798, %v2951
      %v3033 = vsub.f32 %v2800, %v2951
      %v3034 = vsub.f32 %v2804, %v2954
      %v3035 = vsub.f32 %v2806, %v2954
      %v3036 = vsub.f32 %v2810, %v2957
      %v3037 = vsub.f32 %v2812, %v2957
      %v3038 = vsub.f32 %v2816, %v2960
      %v3039 = vsub.f32 %v2818, %v2960
      %v3040 = vsub.f32 %v2822, %v2963
      %v3041 = vsub.f32 %v2824, %v2963
      %v3042 = vsub.f32 %v2828, %v2966
      %v3043 = vsub.f32 %v2830, %v2966
      %v3044 = vsub.f32 %v2834, %v2969
      %v3045 = vsub.f32 %v2836, %v2969
      %v3046 = vsub.f32 %v2840, %v2972
      %v3047 = vsub.f32 %v2842, %v2972
      %v3048 = vsub.f32 %v2846, %v2975
      %v3049 = vsub.f32 %v2848, %v2975
      %v3050 = vsub.f32 %v2852, %v2978
      %v3051 = vsub.f32 %v2854, %v2978
      %v3052 = vsub.f32 %v2858, %v2981
      %v3053 = vsub.f32 %v2860, %v2981
      %v3054 = vsub.f32 %v2864, %v2984
      %v3055 = vsub.f32 %v2866, %v2984
      %v3056 = vsub.f32 %v2870, %v2987
      %v3057 = vsub.f32 %v2872, %v2987
      %v3058 = vsub.f32 %v2876, %v2990
      %v3059 = vsub.f32 %v2878, %v2990
      %v3060 = vsub.f32 %v2882, %v2993
      %v3061 = vsub.f32 %v2884, %v2993
      %v3062 = vsub.f32 %v2888, %v2996
      %v3063 = vsub.f32 %v2890, %v2996
      %v3064 = vsub.f32 %v2894, %v2999
      %v3065 = vsub.f32 %v2896, %v2999
      %v3066 = vsub.f32 %v2900, %v3002
      %v3067 = vsub.f32 %v2902, %v3002
      %v3068 = vsub.f32 %v2906, %v3005
      %v3069 = vsub.f32 %v2908, %v3005
      %v3070 = vmul.f32 %v3006, 1.442695
      %v3071 = vpow.pop %v3070
      %v3072 = vmul.f32 %v3007, 1.442695
      %v3073 = vpow.pop %v3072
      %v3074 = vmul.f32 %v3008, 1.442695
      %v3075 = vpow.pop %v3074
      %v3076 = vmul.f32 %v3009, 1.442695
      %v3077 = vpow.pop %v3076
      %v3078 = vmul.f32 %v3010, 1.442695
      %v3079 = vpow.pop %v3078
      %v3080 = vmul.f32 %v3011, 1.442695
      %v3081 = vpow.pop %v3080
      %v3082 = vmul.f32 %v3012, 1.442695
      %v3083 = vpow.pop %v3082
      %v3084 = vmul.f32 %v3013, 1.442695
      %v3085 = vpow.pop %v3084
      %v3086 = vmul.f32 %v3014, 1.442695
      %v3087 = vpow.pop %v3086
      %v3088 = vmul.f32 %v3015, 1.442695
      %v3089 = vpow.pop %v3088
      %v3090 = vmul.f32 %v3016, 1.442695
      %v3091 = vpow.pop %v3090
      %v3092 = vmul.f32 %v3017, 1.442695
      %v3093 = vpow.pop %v3092
      %v3094 = vmul.f32 %v3018, 1.442695
      %v3095 = vpow.pop %v3094
      %v3096 = vmul.f32 %v3019, 1.442695
      %v3097 = vpow.pop %v3096
      %v3098 = vmul.f32 %v3020, 1.442695
      %v3099 = vpow.pop %v3098
      %v3100 = vmul.f32 %v3021, 1.442695
      %v3101 = vpow.pop %v3100
      %v3102 = vmul.f32 %v3022, 1.442695
      %v3103 = vpow.pop %v3102
      %v3104 = vmul.f32 %v3023, 1.442695
      %v3105 = vpow.pop %v3104
      %v3106 = vmul.f32 %v3024, 1.442695
      %v3107 = vpow.pop %v3106
      %v3108 = vmul.f32 %v3025, 1.442695
      %v3109 = vpow.pop %v3108
      %v3110 = vmul.f32 %v3026, 1.442695
      %v3111 = vpow.pop %v3110
      %v3112 = vmul.f32 %v3027, 1.442695
      %v3113 = vpow.pop %v3112
      %v3114 = vmul.f32 %v3028, 1.442695
      %v3115 = vpow.pop %v3114
      %v3116 = vmul.f32 %v3029, 1.442695
      %v3117 = vpow.pop %v3116
      %v3118 = vmul.f32 %v3030, 1.442695
      %v3119 = vpow.pop %v3118
      %v3120 = vmul.f32 %v3031, 1.442695
      %v3121 = vpow.pop %v3120
      %v3122 = vmul.f32 %v3032, 1.442695
      %v3123 = vpow.pop %v3122
      %v3124 = vmul.f32 %v3033, 1.442695
      %v3125 = vpow.pop %v3124
      %v3126 = vmul.f32 %v3034, 1.442695
      %v3127 = vpow.pop %v3126
      %v3128 = vmul.f32 %v3035, 1.442695
      %v3129 = vpow.pop %v3128
      %v3130 = vmul.f32 %v3036, 1.442695
      %v3131 = vpow.pop %v3130
      %v3132 = vmul.f32 %v3037, 1.442695
      %v3133 = vpow.pop %v3132
      %v3134 = vmul.f32 %v3038, 1.442695
      %v3135 = vpow.pop %v3134
      %v3136 = vmul.f32 %v3039, 1.442695
      %v3137 = vpow.pop %v3136
      %v3138 = vmul.f32 %v3040, 1.442695
      %v3139 = vpow.pop %v3138
      %v3140 = vmul.f32 %v3041, 1.442695
      %v3141 = vpow.pop %v3140
      %v3142 = vmul.f32 %v3042, 1.442695
      %v3143 = vpow.pop %v3142
      %v3144 = vmul.f32 %v3043, 1.442695
      %v3145 = vpow.pop %v3144
      %v3146 = vmul.f32 %v3044, 1.442695
      %v3147 = vpow.pop %v3146
      %v3148 = vmul.f32 %v3045, 1.442695
      %v3149 = vpow.pop %v3148
      %v3150 = vmul.f32 %v3046, 1.442695
      %v3151 = vpow.pop %v3150
      %v3152 = vmul.f32 %v3047, 1.442695
      %v3153 = vpow.pop %v3152
      %v3154 = vmul.f32 %v3048, 1.442695
      %v3155 = vpow.pop %v3154
      %v3156 = vmul.f32 %v3049, 1.442695
      %v3157 = vpow.pop %v3156
      %v3158 = vmul.f32 %v3050, 1.442695
      %v3159 = vpow.pop %v3158
      %v3160 = vmul.f32 %v3051, 1.442695
      %v3161 = vpow.pop %v3160
      %v3162 = vmul.f32 %v3052, 1.442695
      %v3163 = vpow.pop %v3162
      %v3164 = vmul.f32 %v3053, 1.442695
      %v3165 = vpow.pop %v3164
      %v3166 = vmul.f32 %v3054, 1.442695
      %v3167 = vpow.pop %v3166
      %v3168 = vmul.f32 %v3055, 1.442695
      %v3169 = vpow.pop %v3168
      %v3170 = vmul.f32 %v3056, 1.442695
      %v3171 = vpow.pop %v3170
      %v3172 = vmul.f32 %v3057, 1.442695
      %v3173 = vpow.pop %v3172
      %v3174 = vmul.f32 %v3058, 1.442695
      %v3175 = vpow.pop %v3174
      %v3176 = vmul.f32 %v3059, 1.442695
      %v3177 = vpow.pop %v3176
      %v3178 = vmul.f32 %v3060, 1.442695
      %v3179 = vpow.pop %v3178
      %v3180 = vmul.f32 %v3061, 1.442695
      %v3181 = vpow.pop %v3180
      %v3182 = vmul.f32 %v3062, 1.442695
      %v3183 = vpow.pop %v3182
      %v3184 = vmul.f32 %v3063, 1.442695
      %v3185 = vpow.pop %v3184
      %v3186 = vmul.f32 %v3064, 1.442695
      %v3187 = vpow.pop %v3186
      %v3188 = vmul.f32 %v3065, 1.442695
      %v3189 = vpow.pop %v3188
      %v3190 = vmul.f32 %v3066, 1.442695
      %v3191 = vpow.pop %v3190
      %v3192 = vmul.f32 %v3067, 1.442695
      %v3193 = vpow.pop %v3192
      %v3194 = vmul.f32 %v3068, 1.442695
      %v3195 = vpow.pop %v3194
      %v3196 = vmul.f32 %v3069, 1.442695
      %v3197 = vpow.pop %v3196
      %v3198 = vadd.f32 %v3071, %v3073
      %3199 = vadd.xlane.f32.xlu0 %v3198
      %v3200 = vpop.xlane.xlu0 %3199
      %v3201 = vadd.f32 %v3075, %v3077
      %3202 = vadd.xlane.f32.xlu0 %v3201
      %v3203 = vpop.xlane.xlu0 %3202
      %v3204 = vadd.f32 %v3079, %v3081
      %3205 = vadd.xlane.f32.xlu0 %v3204
      %v3206 = vpop.xlane.xlu0 %3205
      %v3207 = vadd.f32 %v3083, %v3085
      %3208 = vadd.xlane.f32.xlu0 %v3207
      %v3209 = vpop.xlane.xlu0 %3208
      %v3210 = vadd.f32 %v3087, %v3089
      %3211 = vadd.xlane.f32.xlu0 %v3210
      %v3212 = vpop.xlane.xlu0 %3211
      %v3213 = vadd.f32 %v3091, %v3093
      %3214 = vadd.xlane.f32.xlu0 %v3213
      %v3215 = vpop.xlane.xlu0 %3214
      %v3216 = vadd.f32 %v3095, %v3097
      %3217 = vadd.xlane.f32.xlu0 %v3216
      %v3218 = vpop.xlane.xlu0 %3217
      %v3219 = vadd.f32 %v3099, %v3101
      %3220 = vadd.xlane.f32.xlu0 %v3219
      %v3221 = vpop.xlane.xlu0 %3220
      %v3222 = vadd.f32 %v3103, %v3105
      %3223 = vadd.xlane.f32.xlu0 %v3222
      %v3224 = vpop.xlane.xlu0 %3223
      %v3225 = vadd.f32 %v3107, %v3109
      %3226 = vadd.xlane.f32.xlu0 %v3225
      %v3227 = vpop.xlane.xlu0 %3226
      %v3228 = vadd.f32 %v3111, %v3113
      %3229 = vadd.xlane.f32.xlu0 %v3228
      %v3230 = vpop.xlane.xlu0 %3229
      %v3231 = vadd.f32 %v3115, %v3117
      %3232 = vadd.xlane.f32.xlu0 %v3231
      %v3233 = vpop.xlane.xlu0 %3232
      %v3234 = vadd.f32 %v3119, %v3121
      %3235 = vadd.xlane.f32.xlu0 %v3234
      %v3236 = vpop.xlane.xlu0 %3235
      %v3237 = vadd.f32 %v3123, %v3125
      %3238 = vadd.xlane.f32.xlu0 %v3237
      %v3239 = vpop.xlane.xlu0 %3238
      %v3240 = vadd.f32 %v3127, %v3129
      %3241 = vadd.xlane.f32.xlu0 %v3240
      %v3242 = vpop.xlane.xlu0 %3241
      %v3243 = vadd.f32 %v3131, %v3133
      %3244 = vadd.xlane.f32.xlu0 %v3243
      %v3245 = vpop.xlane.xlu0 %3244
      %v3246 = vadd.f32 %v3135, %v3137
      %3247 = vadd.xlane.f32.xlu0 %v3246
      %v3248 = vpop.xlane.xlu0 %3247
      %v3249 = vadd.f32 %v3139, %v3141
      %3250 = vadd.xlane.f32.xlu0 %v3249
      %v3251 = vpop.xlane.xlu0 %3250
      %v3252 = vadd.f32 %v3143, %v3145
      %3253 = vadd.xlane.f32.xlu0 %v3252
      %v3254 = vpop.xlane.xlu0 %3253
      %v3255 = vadd.f32 %v3147, %v3149
      %3256 = vadd.xlane.f32.xlu0 %v3255
      %v3257 = vpop.xlane.xlu0 %3256
      %v3258 = vadd.f32 %v3151, %v3153
      %3259 = vadd.xlane.f32.xlu0 %v3258
      %v3260 = vpop.xlane.xlu0 %3259
      %v3261 = vadd.f32 %v3155, %v3157
      %3262 = vadd.xlane.f32.xlu0 %v3261
      %v3263 = vpop.xlane.xlu0 %3262
      %v3264 = vadd.f32 %v3159, %v3161
      %3265 = vadd.xlane.f32.xlu0 %v3264
      %v3266 = vpop.xlane.xlu0 %3265
      %v3267 = vadd.f32 %v3163, %v3165
      %3268 = vadd.xlane.f32.xlu0 %v3267
      %v3269 = vpop.xlane.xlu0 %3268
      %v3270 = vadd.f32 %v3167, %v3169
      %3271 = vadd.xlane.f32.xlu0 %v3270
      %v3272 = vpop.xlane.xlu0 %3271
      %v3273 = vadd.f32 %v3171, %v3173
      %3274 = vadd.xlane.f32.xlu0 %v3273
      %v3275 = vpop.xlane.xlu0 %3274
      %v3276 = vadd.f32 %v3175, %v3177
      %3277 = vadd.xlane.f32.xlu0 %v3276
      %v3278 = vpop.xlane.xlu0 %3277
      %v3279 = vadd.f32 %v3179, %v3181
      %3280 = vadd.xlane.f32.xlu0 %v3279
      %v3281 = vpop.xlane.xlu0 %3280
      %v3282 = vadd.f32 %v3183, %v3185
      %3283 = vadd.xlane.f32.xlu0 %v3282
      %v3284 = vpop.xlane.xlu0 %3283
      %v3285 = vadd.f32 %v3187, %v3189
      %3286 = vadd.xlane.f32.xlu0 %v3285
      %v3287 = vpop.xlane.xlu0 %3286
      %v3288 = vadd.f32 %v3191, %v3193
      %3289 = vadd.xlane.f32.xlu0 %v3288
      %v3290 = vpop.xlane.xlu0 %3289
      %v3291 = vadd.f32 %v3195, %v3197
      %3292 = vadd.xlane.f32.xlu0 %v3291
      %v3293 = vpop.xlane.xlu0 %3292
      %v3294 = vrcp.pop %v3200
      %v3295 = vrcp.pop %v3203
      %v3296 = vrcp.pop %v3206
      %v3297 = vrcp.pop %v3209
      %v3298 = vrcp.pop %v3212
      %v3299 = vrcp.pop %v3215
      %v3300 = vrcp.pop %v3218
      %v3301 = vrcp.pop %v3221
      %v3302 = vrcp.pop %v3224
      %v3303 = vrcp.pop %v3227
      %v3304 = vrcp.pop %v3230
      %v3305 = vrcp.pop %v3233
      %v3306 = vrcp.pop %v3236
      %v3307 = vrcp.pop %v3239
      %v3308 = vrcp.pop %v3242
      %v3309 = vrcp.pop %v3245
      %v3310 = vrcp.pop %v3248
      %v3311 = vrcp.pop %v3251
      %v3312 = vrcp.pop %v3254
      %v3313 = vrcp.pop %v3257
      %v3314 = vrcp.pop %v3260
      %v3315 = vrcp.pop %v3263
      %v3316 = vrcp.pop %v3266
      %v3317 = vrcp.pop %v3269
      %v3318 = vrcp.pop %v3272
      %v3319 = vrcp.pop %v3275
      %v3320 = vrcp.pop %v3278
      %v3321 = vrcp.pop %v3281
      %v3322 = vrcp.pop %v3284
      %v3323 = vrcp.pop %v3287
      %v3324 = vrcp.pop %v3290
      %v3325 = vrcp.pop %v3293
      %v3326 = vmul.f32 %v3071, %v3294
      %v3327 = vmul.f32 %v3073, %v3294
      %v3328 = vmul.f32 %v3075, %v3295
      %v3329 = vmul.f32 %v3077, %v3295
      %v3330 = vmul.f32 %v3079, %v3296
      %v3331 = vmul.f32 %v3081, %v3296
      %v3332 = vmul.f32 %v3083, %v3297
      %v3333 = vmul.f32 %v3085, %v3297
      %v3334 = vmul.f32 %v3087, %v3298
      %v3335 = vmul.f32 %v3089, %v3298
      %v3336 = vmul.f32 %v3091, %v3299
      %v3337 = vmul.f32 %v3093, %v3299
      %v3338 = vmul.f32 %v3095, %v3300
      %v3339 = vmul.f32 %v3097, %v3300
      %v3340 = vmul.f32 %v3099, %v3301
      %v3341 = vmul.f32 %v3101, %v3301
      %v3342 = vmul.f32 %v3103, %v3302
      %v3343 = vmul.f32 %v3105, %v3302
      %v3344 = vmul.f32 %v3107, %v3303
      %v3345 = vmul.f32 %v3109, %v3303
      %v3346 = vmul.f32 %v3111, %v3304
      %v3347 = vmul.f32 %v3113, %v3304
      %v3348 = vmul.f32 %v3115, %v3305
      %v3349 = vmul.f32 %v3117, %v3305
      %v3350 = vmul.f32 %v3119, %v3306
      %v3351 = vmul.f32 %v3121, %v3306
      %v3352 = vmul.f32 %v3123, %v3307
      %v3353 = vmul.f32 %v3125, %v3307
      %v3354 = vmul.f32 %v3127, %v3308
      %v3355 = vmul.f32 %v3129, %v3308
      %v3356 = vmul.f32 %v3131, %v3309
      %v3357 = vmul.f32 %v3133, %v3309
      %v3358 = vmul.f32 %v3135, %v3310
      %v3359 = vmul.f32 %v3137, %v3310
      %v3360 = vmul.f32 %v3139, %v3311
      %v3361 = vmul.f32 %v3141, %v3311
      %v3362 = vmul.f32 %v3143, %v3312
      %v3363 = vmul.f32 %v3145, %v3312
      %v3364 = vmul.f32 %v3147, %v3313
      %v3365 = vmul.f32 %v3149, %v3313
      %v3366 = vmul.f32 %v3151, %v3314
      %v3367 = vmul.f32 %v3153, %v3314
      %v3368 = vmul.f32 %v3155, %v3315
      %v3369 = vmul.f32 %v3157, %v3315
      %v3370 = vmul.f32 %v3159, %v3316
      %v3371 = vmul.f32 %v3161, %v3316
      %v3372 = vmul.f32 %v3163, %v3317
      %v3373 = vmul.f32 %v3165, %v3317
      %v3374 = vmul.f32 %v3167, %v3318
      %v3375 = vmul.f32 %v3169, %v3318
      %v3376 = vmul.f32 %v3171, %v3319
      %v3377 = vmul.f32 %v3173, %v3319
      %v3378 = vmul.f32 %v3175, %v3320
      %v3379 = vmul.f32 %v3177, %v3320
      %v3380 = vmul.f32 %v3179, %v3321
      %v3381 = vmul.f32 %v3181, %v3321
      %v3382 = vmul.f32 %v3183, %v3322
      %v3383 = vmul.f32 %v3185, %v3322
      %v3384 = vmul.f32 %v3187, %v3323
      %v3385 = vmul.f32 %v3189, %v3323
      %v3386 = vmul.f32 %v3191, %v3324
      %v3387 = vmul.f32 %v3193, %v3324
      %v3388 = vmul.f32 %v3195, %v3325
      %v3389 = vmul.f32 %v3197, %v3325
      %3390 = vmatprep.subr.mxu0 %v3327
      %3391 = vmatpush1.xpose.msra.mxu0 %v3326
      %3392 = vmatprep.subr.mxu0 %v3329
      %3393 = vmatpush1.xpose.msra.mxu0 %v3328
      %3394 = vmatprep.subr.mxu0 %v3331
      %3395 = vmatpush1.xpose.msra.mxu0 %v3330
      %3396 = vmatprep.subr.mxu0 %v3333
      %3397 = vmatpush1.xpose.msra.mxu0 %v3332
      %3398 = vmatprep.subr.mxu0 %v3335
      %3399 = vmatpush1.xpose.msra.mxu0 %v3334
      %3400 = vmatprep.subr.mxu0 %v3337
      %3401 = vmatpush1.xpose.msra.mxu0 %v3336
      %3402 = vmatprep.subr.mxu0 %v3339
      %3403 = vmatpush1.xpose.msra.mxu0 %v3338
      %3404 = vmatprep.subr.mxu0 %v3341
      %3405 = vmatpush1.xpose.msra.mxu0 %v3340
      %3406 = vmatprep.subr.mxu0 %v3343
      %3407 = vmatpush1.xpose.msra.mxu0 %v3342
      %3408 = vmatprep.subr.mxu0 %v3345
      %3409 = vmatpush1.xpose.msra.mxu0 %v3344
      %3410 = vmatprep.subr.mxu0 %v3347
      %3411 = vmatpush1.xpose.msra.mxu0 %v3346
      %3412 = vmatprep.subr.mxu0 %v3349
      %3413 = vmatpush1.xpose.msra.mxu0 %v3348
      %3414 = vmatprep.subr.mxu0 %v3351
      %3415 = vmatpush1.xpose.msra.mxu0 %v3350
      %3416 = vmatprep.subr.mxu0 %v3353
      %3417 = vmatpush1.xpose.msra.mxu0 %v3352
      %3418 = vmatprep.subr.mxu0 %v3355
      %3419 = vmatpush1.xpose.msra.mxu0 %v3354
      %3420 = vmatprep.subr.mxu0 %v3357
      %3421 = vmatpush1.xpose.msra.mxu0 %v3356
      %3422 = vmatprep.subr.mxu0 %v3359
      %3423 = vmatpush1.xpose.msra.mxu0 %v3358
      %3424 = vmatprep.subr.mxu0 %v3361
      %3425 = vmatpush1.xpose.msra.mxu0 %v3360
      %3426 = vmatprep.subr.mxu0 %v3363
      %3427 = vmatpush1.xpose.msra.mxu0 %v3362
      %3428 = vmatprep.subr.mxu0 %v3365
      %3429 = vmatpush1.xpose.msra.mxu0 %v3364
      %3430 = vmatprep.subr.mxu0 %v3367
      %3431 = vmatpush1.xpose.msra.mxu0 %v3366
      %3432 = vmatprep.subr.mxu0 %v3369
      %3433 = vmatpush1.xpose.msra.mxu0 %v3368
      %3434 = vmatprep.subr.mxu0 %v3371
      %3435 = vmatpush1.xpose.msra.mxu0 %v3370
      %3436 = vmatprep.subr.mxu0 %v3373
      %3437 = vmatpush1.xpose.msra.mxu0 %v3372
      %3438 = vmatprep.subr.mxu0 %v3375
      %3439 = vmatpush1.xpose.msra.mxu0 %v3374
      %3440 = vmatprep.subr.mxu0 %v3377
      %3441 = vmatpush1.xpose.msra.mxu0 %v3376
      %3442 = vmatprep.subr.mxu0 %v3379
      %3443 = vmatpush1.xpose.msra.mxu0 %v3378
      %3444 = vmatprep.subr.mxu0 %v3381
      %3445 = vmatpush1.xpose.msra.mxu0 %v3380
      %3446 = vmatprep.subr.mxu0 %v3383
      %3447 = vmatpush1.xpose.msra.mxu0 %v3382
      %3448 = vmatprep.subr.mxu0 %v3385
      %3449 = vmatpush1.xpose.msra.mxu0 %v3384
      %3450 = vmatprep.subr.mxu0 %v3387
      %3451 = vmatpush1.xpose.msra.mxu0 %v3386
      %3452 = vmatprep.subr.mxu0 %v3389
      %3453 = vmatpush1.xpose.msra.mxu0 %v3388
      %3454 = vmatprep.mubr.f32.mxu0 %v632
      %3455 = vmatmul.mubr.f32.gmra.mrb[0].mxu0 %v630
      %v3456 = vpop.f32.mrb[0].mxu0
      %v3457 = vadd.f32 0.0, %v3456
      %v3458 = vpop.f32.mrb[0].mxu0
      %v3459 = vadd.f32 0.0, %v3458
      %3460 = vmatprep.mubr.f32.mxu0 %v638
      %3461 = vmatmul.mubr.f32.gmra.mrb[0].mxu0 %v636
      %v3462 = vpop.f32.mrb[0].mxu0
      %v3463 = vadd.f32 0.0, %v3462
      %v3464 = vpop.f32.mrb[0].mxu0
      %v3465 = vadd.f32 0.0, %v3464
      %3466 = vdwg.mxu0
      %3467 = vst [vmem:[%s197 + $0x20] sm:$0xff] %v3457
      %3468 = vst [vmem:[%s197 + $0x28] sm:$0xff] %v3459
      %3469 = vst [vmem:[%s197 + $0x30] sm:$0xff] %v3463
      %3470 = vst [vmem:[%s197 + $0x38] sm:$0xff] %v3465
      %3471 = vxpose.xlu0.b32.start [1/16] %v672, 128
      %3472 = vxpose.xlu0.b32.cont [2/16] %v674, 128
      %3473 = vxpose.xlu0.b32.cont [3/16] 0.0, 128
      %3474 = vxpose.xlu0.b32.cont [4/16] 0.0, 128
      %3475 = vxpose.xlu0.b32.cont [5/16] 0.0, 128
      %3476 = vxpose.xlu0.b32.cont [6/16] 0.0, 128
      %3477 = vxpose.xlu0.b32.cont [7/16] 0.0, 128
      %3478 = vxpose.xlu0.b32.cont [8/16] 0.0, 128
      %3479 = vxpose.xlu0.b32.cont [9/16] 0.0, 128
      %3480 = vxpose.xlu0.b32.cont [10/16] 0.0, 128
      %3481 = vxpose.xlu0.b32.cont [11/16] 0.0, 128
      %3482 = vxpose.xlu0.b32.cont [12/16] 0.0, 128
      %3483 = vxpose.xlu0.b32.cont [13/16] 0.0, 128
      %3484 = vxpose.xlu0.b32.cont [14/16] 0.0, 128
      %3485 = vxpose.xlu0.b32.cont [15/16] 0.0, 128
      %3486 = vxpose.xlu0.b32.end [16/16] 0.0, 128
      %v3487 = vpop.trf.xlu0
      %v3488 = vpop.trf.xlu0
      %v3489 = vpop.trf.xlu0
      %v3490 = vpop.trf.xlu0
      %v3491 = vpop.trf.xlu0
      %v3492 = vpop.trf.xlu0
      %v3493 = vpop.trf.xlu0
      %v3494 = vpop.trf.xlu0
      %v3495 = vpop.trf.xlu0
      %v3496 = vpop.trf.xlu0
      %v3497 = vpop.trf.xlu0
      %v3498 = vpop.trf.xlu0
      %v3499 = vpop.trf.xlu0
      %v3500 = vpop.trf.xlu0
      %v3501 = vpop.trf.xlu0
      %v3502 = vpop.trf.xlu0
      %3503 = vxpose.xlu0.b32.start [1/16] %v673, 128
      %3504 = vxpose.xlu0.b32.cont [2/16] %v675, 128
      %3505 = vxpose.xlu0.b32.cont [3/16] 0.0, 128
      %3506 = vxpose.xlu0.b32.cont [4/16] 0.0, 128
      %3507 = vxpose.xlu0.b32.cont [5/16] 0.0, 128
      %3508 = vxpose.xlu0.b32.cont [6/16] 0.0, 128
      %3509 = vxpose.xlu0.b32.cont [7/16] 0.0, 128
      %3510 = vxpose.xlu0.b32.cont [8/16] 0.0, 128
      %3511 = vxpose.xlu0.b32.cont [9/16] 0.0, 128
      %3512 = vxpose.xlu0.b32.cont [10/16] 0.0, 128
      %3513 = vxpose.xlu0.b32.cont [11/16] 0.0, 128
      %3514 = vxpose.xlu0.b32.cont [12/16] 0.0, 128
      %3515 = vxpose.xlu0.b32.cont [13/16] 0.0, 128
      %3516 = vxpose.xlu0.b32.cont [14/16] 0.0, 128
      %3517 = vxpose.xlu0.b32.cont [15/16] 0.0, 128
      %3518 = vxpose.xlu0.b32.end [16/16] 0.0, 128
      %v3519 = vpop.trf.xlu0
      %v3520 = vpop.trf.xlu0
      %v3521 = vpop.trf.xlu0
      %v3522 = vpop.trf.xlu0
      %v3523 = vpop.trf.xlu0
      %v3524 = vpop.trf.xlu0
      %v3525 = vpop.trf.xlu0
      %v3526 = vpop.trf.xlu0
      %v3527 = vpop.trf.xlu0
      %v3528 = vpop.trf.xlu0
      %v3529 = vpop.trf.xlu0
      %v3530 = vpop.trf.xlu0
      %v3531 = vpop.trf.xlu0
      %v3532 = vpop.trf.xlu0
      %v3533 = vpop.trf.xlu0
      %v3534 = vpop.trf.xlu0
      %v3536 = vsel %vm744, %v3487, 0
      %v3539 = vsel %vm744, %v3488, 0
      %v3542 = vsel %vm744, %v3489, 0
      %v3545 = vsel %vm744, %v3490, 0
      %v3548 = vsel %vm744, %v3491, 0
      %v3551 = vsel %vm744, %v3492, 0
      %v3554 = vsel %vm744, %v3493, 0
      %v3557 = vsel %vm744, %v3494, 0
      %v3560 = vsel %vm744, %v3495, 0
      %v3563 = vsel %vm744, %v3496, 0
      %v3566 = vsel %vm744, %v3497, 0
      %v3569 = vsel %vm744, %v3498, 0
      %v3572 = vsel %vm744, %v3499, 0
      %v3575 = vsel %vm744, %v3500, 0
      %v3578 = vsel %vm744, %v3501, 0
      %v3581 = vsel %vm744, %v3502, 0
      %v3584 = vsel %vm744, %v3519, 0
      %v3587 = vsel %vm744, %v3520, 0
      %v3590 = vsel %vm744, %v3521, 0
      %v3593 = vsel %vm744, %v3522, 0
      %v3596 = vsel %vm744, %v3523, 0
      %v3599 = vsel %vm744, %v3524, 0
      %v3602 = vsel %vm744, %v3525, 0
      %v3605 = vsel %vm744, %v3526, 0
      %v3608 = vsel %vm744, %v3527, 0
      %v3611 = vsel %vm744, %v3528, 0
      %v3614 = vsel %vm744, %v3529, 0
      %v3617 = vsel %vm744, %v3530, 0
      %v3620 = vsel %vm744, %v3531, 0
      %v3623 = vsel %vm744, %v3532, 0
      %v3626 = vsel %vm744, %v3533, 0
      %v3629 = vsel %vm744, %v3534, 0
      %3631 = vmatprep.subr.mxu0 %v548
      %3632 = vmatpush1.msra.mxu0 %v546
      %3633 = vmatprep.subr.mxu0 %v554
      %3634 = vmatpush1.msra.mxu0 %v552
      %3635 = vmatprep.subr.mxu0 0.0
      %3636 = vmatpush1.msra.mxu0 0.0
      %3637 = vmatprep.subr.mxu0 0.0
      %3638 = vmatpush1.msra.mxu0 0.0
      %3639 = vmatprep.subr.mxu0 0.0
      %3640 = vmatpush1.msra.mxu0 0.0
      %3641 = vmatprep.subr.mxu0 0.0
      %3642 = vmatpush1.msra.mxu0 0.0
      %3643 = vmatprep.subr.mxu0 0.0
      %3644 = vmatpush1.msra.mxu0 0.0
      %3645 = vmatprep.subr.mxu0 0.0
      %3646 = vmatpush1.msra.mxu0 0.0
      %3647 = vmatprep.subr.mxu0 0.0
      %3648 = vmatpush1.msra.mxu0 0.0
      %3649 = vmatprep.subr.mxu0 0.0
      %3650 = vmatpush1.msra.mxu0 0.0
      %3651 = vmatprep.subr.mxu0 0.0
      %3652 = vmatpush1.msra.mxu0 0.0
      %3653 = vmatprep.subr.mxu0 0.0
      %3654 = vmatpush1.msra.mxu0 0.0
      %3655 = vmatprep.subr.mxu0 0.0
      %3656 = vmatpush1.msra.mxu0 0.0
      %3657 = vmatprep.subr.mxu0 0.0
      %3658 = vmatpush1.msra.mxu0 0.0
      %3659 = vmatprep.subr.mxu0 0.0
      %3660 = vmatpush1.msra.mxu0 0.0
      %3661 = vmatprep.subr.mxu0 0.0
      %3662 = vmatpush1.msra.mxu0 0.0
      %3663 = vmatprep.subr.mxu0 0.0
      %3664 = vmatpush1.msra.mxu0 0.0
      %3665 = vmatprep.subr.mxu0 0.0
      %3666 = vmatpush1.msra.mxu0 0.0
      %3667 = vmatprep.subr.mxu0 0.0
      %3668 = vmatpush1.msra.mxu0 0.0
      %3669 = vmatprep.subr.mxu0 0.0
      %3670 = vmatpush1.msra.mxu0 0.0
      %3671 = vmatprep.subr.mxu0 0.0
      %3672 = vmatpush1.msra.mxu0 0.0
      %3673 = vmatprep.subr.mxu0 0.0
      %3674 = vmatpush1.msra.mxu0 0.0
      %3675 = vmatprep.subr.mxu0 0.0
      %3676 = vmatpush1.msra.mxu0 0.0
      %3677 = vmatprep.subr.mxu0 0.0
      %3678 = vmatpush1.msra.mxu0 0.0
      %3679 = vmatprep.subr.mxu0 0.0
      %3680 = vmatpush1.msra.mxu0 0.0
      %3681 = vmatprep.subr.mxu0 0.0
      %3682 = vmatpush1.msra.mxu0 0.0
      %3683 = vmatprep.subr.mxu0 0.0
      %3684 = vmatpush1.msra.mxu0 0.0
      %3685 = vmatprep.subr.mxu0 0.0
      %3686 = vmatpush1.msra.mxu0 0.0
      %3687 = vmatprep.subr.mxu0 0.0
      %3688 = vmatpush1.msra.mxu0 0.0
      %3689 = vmatprep.subr.mxu0 0.0
      %3690 = vmatpush1.msra.mxu0 0.0
      %3691 = vmatprep.subr.mxu0 0.0
      %3692 = vmatpush1.msra.mxu0 0.0
      %3693 = vmatprep.subr.mxu0 0.0
      %3694 = vmatpush1.msra.mxu0 0.0
      %3695 = vmatprep.mubr.f32.mxu0 0.0
      %3696 = vmatmul.mubr.f32.gmra.mrb[0].mxu0 %v3536
      %v3697 = vpop.f32.mrb[0].mxu0
      %v3698 = vadd.f32 0.0, %v3697
      %v3699 = vpop.f32.mrb[0].mxu0
      %v3700 = vadd.f32 0.0, %v3699
      %3701 = vmatprep.mubr.f32.mxu0 0.0
      %3702 = vmatmul.mubr.f32.gmra.mrb[0].mxu0 %v3539
      %v3703 = vpop.f32.mrb[0].mxu0
      %v3704 = vadd.f32 0.0, %v3703
      %v3705 = vpop.f32.mrb[0].mxu0
      %v3706 = vadd.f32 0.0, %v3705
      %3707 = vmatprep.mubr.f32.mxu0 0.0
      %3708 = vmatmul.mubr.f32.gmra.mrb[0].mxu0 %v3542
      %v3709 = vpop.f32.mrb[0].mxu0
      %v3710 = vadd.f32 0.0, %v3709
      %v3711 = vpop.f32.mrb[0].mxu0
      %v3712 = vadd.f32 0.0, %v3711
      %3713 = vmatprep.mubr.f32.mxu0 0.0
      %3714 = vmatmul.mubr.f32.gmra.mrb[0].mxu0 %v3545
      %v3715 = vpop.f32.mrb[0].mxu0
      %v3716 = vadd.f32 0.0, %v3715
      %v3717 = vpop.f32.mrb[0].mxu0
      %v3718 = vadd.f32 0.0, %v3717
      %3719 = vmatprep.mubr.f32.mxu0 0.0
      %3720 = vmatmul.mubr.f32.gmra.mrb[0].mxu0 %v3548
      %v3721 = vpop.f32.mrb[0].mxu0
      %v3722 = vadd.f32 0.0, %v3721
      %v3723 = vpop.f32.mrb[0].mxu0
      %v3724 = vadd.f32 0.0, %v3723
      %3725 = vmatprep.mubr.f32.mxu0 0.0
      %3726 = vmatmul.mubr.f32.gmra.mrb[0].mxu0 %v3551
      %v3727 = vpop.f32.mrb[0].mxu0
      %v3728 = vadd.f32 0.0, %v3727
      %v3729 = vpop.f32.mrb[0].mxu0
      %v3730 = vadd.f32 0.0, %v3729
      %3731 = vmatprep.mubr.f32.mxu0 0.0
      %3732 = vmatmul.mubr.f32.gmra.mrb[0].mxu0 %v3554
      %v3733 = vpop.f32.mrb[0].mxu0
      %v3734 = vadd.f32 0.0, %v3733
      %v3735 = vpop.f32.mrb[0].mxu0
      %v3736 = vadd.f32 0.0, %v3735
      %3737 = vmatprep.mubr.f32.mxu0 0.0
      %3738 = vmatmul.mubr.f32.gmra.mrb[0].mxu0 %v3557
      %v3739 = vpop.f32.mrb[0].mxu0
      %v3740 = vadd.f32 0.0, %v3739
      %v3741 = vpop.f32.mrb[0].mxu0
      %v3742 = vadd.f32 0.0, %v3741
      %3743 = vmatprep.mubr.f32.mxu0 0.0
      %3744 = vmatmul.mubr.f32.gmra.mrb[0].mxu0 %v3560
      %v3745 = vpop.f32.mrb[0].mxu0
      %v3746 = vadd.f32 0.0, %v3745
      %v3747 = vpop.f32.mrb[0].mxu0
      %v3748 = vadd.f32 0.0, %v3747
      %3749 = vmatprep.mubr.f32.mxu0 0.0
      %3750 = vmatmul.mubr.f32.gmra.mrb[0].mxu0 %v3563
      %v3751 = vpop.f32.mrb[0].mxu0
      %v3752 = vadd.f32 0.0, %v3751
      %v3753 = vpop.f32.mrb[0].mxu0
      %v3754 = vadd.f32 0.0, %v3753
      %3755 = vmatprep.mubr.f32.mxu0 0.0
      %3756 = vmatmul.mubr.f32.gmra.mrb[0].mxu0 %v3566
      %v3757 = vpop.f32.mrb[0].mxu0
      %v3758 = vadd.f32 0.0, %v3757
      %v3759 = vpop.f32.mrb[0].mxu0
      %v3760 = vadd.f32 0.0, %v3759
      %3761 = vmatprep.mubr.f32.mxu0 0.0
      %3762 = vmatmul.mubr.f32.gmra.mrb[0].mxu0 %v3569
      %v3763 = vpop.f32.mrb[0].mxu0
      %v3764 = vadd.f32 0.0, %v3763
      %v3765 = vpop.f32.mrb[0].mxu0
      %v3766 = vadd.f32 0.0, %v3765
      %3767 = vmatprep.mubr.f32.mxu0 0.0
      %3768 = vmatmul.mubr.f32.gmra.mrb[0].mxu0 %v3572
      %v3769 = vpop.f32.mrb[0].mxu0
      %v3770 = vadd.f32 0.0, %v3769
      %v3771 = vpop.f32.mrb[0].mxu0
      %v3772 = vadd.f32 0.0, %v3771
      %3773 = vmatprep.mubr.f32.mxu0 0.0
      %3774 = vmatmul.mubr.f32.gmra.mrb[0].mxu0 %v3575
      %v3775 = vpop.f32.mrb[0].mxu0
      %v3776 = vadd.f32 0.0, %v3775
      %v3777 = vpop.f32.mrb[0].mxu0
      %v3778 = vadd.f32 0.0, %v3777
      %3779 = vmatprep.mubr.f32.mxu0 0.0
      %3780 = vmatmul.mubr.f32.gmra.mrb[0].mxu0 %v3578
      %v3781 = vpop.f32.mrb[0].mxu0
      %v3782 = vadd.f32 0.0, %v3781
      %v3783 = vpop.f32.mrb[0].mxu0
      %v3784 = vadd.f32 0.0, %v3783
      %3785 = vmatprep.mubr.f32.mxu0 0.0
      %3786 = vmatmul.mubr.f32.gmra.mrb[0].mxu0 %v3581
      %v3787 = vpop.f32.mrb[0].mxu0
      %v3788 = vadd.f32 0.0, %v3787
      %v3789 = vpop.f32.mrb[0].mxu0
      %v3790 = vadd.f32 0.0, %v3789
      %3791 = vmatprep.mubr.f32.mxu0 0.0
      %3792 = vmatmul.mubr.f32.gmra.mrb[0].mxu0 %v3584
      %v3793 = vpop.f32.mrb[0].mxu0
      %v3794 = vadd.f32 0.0, %v3793
      %v3795 = vpop.f32.mrb[0].mxu0
      %v3796 = vadd.f32 0.0, %v3795
      %3797 = vmatprep.mubr.f32.mxu0 0.0
      %3798 = vmatmul.mubr.f32.gmra.mrb[0].mxu0 %v3587
      %v3799 = vpop.f32.mrb[0].mxu0
      %v3800 = vadd.f32 0.0, %v3799
      %v3801 = vpop.f32.mrb[0].mxu0
      %v3802 = vadd.f32 0.0, %v3801
      %3803 = vmatprep.mubr.f32.mxu0 0.0
      %3804 = vmatmul.mubr.f32.gmra.mrb[0].mxu0 %v3590
      %v3805 = vpop.f32.mrb[0].mxu0
      %v3806 = vadd.f32 0.0, %v3805
      %v3807 = vpop.f32.mrb[0].mxu0
      %v3808 = vadd.f32 0.0, %v3807
      %3809 = vmatprep.mubr.f32.mxu0 0.0
      %3810 = vmatmul.mubr.f32.gmra.mrb[0].mxu0 %v3593
      %v3811 = vpop.f32.mrb[0].mxu0
      %v3812 = vadd.f32 0.0, %v3811
      %v3813 = vpop.f32.mrb[0].mxu0
      %v3814 = vadd.f32 0.0, %v3813
      %3815 = vmatprep.mubr.f32.mxu0 0.0
      %3816 = vmatmul.mubr.f32.gmra.mrb[0].mxu0 %v3596
      %v3817 = vpop.f32.mrb[0].mxu0
      %v3818 = vadd.f32 0.0, %v3817
      %v3819 = vpop.f32.mrb[0].mxu0
      %v3820 = vadd.f32 0.0, %v3819
      %3821 = vmatprep.mubr.f32.mxu0 0.0
      %3822 = vmatmul.mubr.f32.gmra.mrb[0].mxu0 %v3599
      %v3823 = vpop.f32.mrb[0].mxu0
      %v3824 = vadd.f32 0.0, %v3823
      %v3825 = vpop.f32.mrb[0].mxu0
      %v3826 = vadd.f32 0.0, %v3825
      %3827 = vmatprep.mubr.f32.mxu0 0.0
      %3828 = vmatmul.mubr.f32.gmra.mrb[0].mxu0 %v3602
      %v3829 = vpop.f32.mrb[0].mxu0
      %v3830 = vadd.f32 0.0, %v3829
      %v3831 = vpop.f32.mrb[0].mxu0
      %v3832 = vadd.f32 0.0, %v3831
      %3833 = vmatprep.mubr.f32.mxu0 0.0
      %3834 = vmatmul.mubr.f32.gmra.mrb[0].mxu0 %v3605
      %v3835 = vpop.f32.mrb[0].mxu0
      %v3836 = vadd.f32 0.0, %v3835
      %v3837 = vpop.f32.mrb[0].mxu0
      %v3838 = vadd.f32 0.0, %v3837
      %3839 = vmatprep.mubr.f32.mxu0 0.0
      %3840 = vmatmul.mubr.f32.gmra.mrb[0].mxu0 %v3608
      %v3841 = vpop.f32.mrb[0].mxu0
      %v3842 = vadd.f32 0.0, %v3841
      %v3843 = vpop.f32.mrb[0].mxu0
      %v3844 = vadd.f32 0.0, %v3843
      %3845 = vmatprep.mubr.f32.mxu0 0.0
      %3846 = vmatmul.mubr.f32.gmra.mrb[0].mxu0 %v3611
      %v3847 = vpop.f32.mrb[0].mxu0
      %v3848 = vadd.f32 0.0, %v3847
      %v3849 = vpop.f32.mrb[0].mxu0
      %v3850 = vadd.f32 0.0, %v3849
      %3851 = vmatprep.mubr.f32.mxu0 0.0
      %3852 = vmatmul.mubr.f32.gmra.mrb[0].mxu0 %v3614
      %v3853 = vpop.f32.mrb[0].mxu0
      %v3854 = vadd.f32 0.0, %v3853
      %v3855 = vpop.f32.mrb[0].mxu0
      %v3856 = vadd.f32 0.0, %v3855
      %3857 = vmatprep.mubr.f32.mxu0 0.0
      %3858 = vmatmul.mubr.f32.gmra.mrb[0].mxu0 %v3617
      %v3859 = vpop.f32.mrb[0].mxu0
      %v3860 = vadd.f32 0.0, %v3859
      %v3861 = vpop.f32.mrb[0].mxu0
      %v3862 = vadd.f32 0.0, %v3861
      %3863 = vmatprep.mubr.f32.mxu0 0.0
      %3864 = vmatmul.mubr.f32.gmra.mrb[0].mxu0 %v3620
      %v3865 = vpop.f32.mrb[0].mxu0
      %v3866 = vadd.f32 0.0, %v3865
      %v3867 = vpop.f32.mrb[0].mxu0
      %v3868 = vadd.f32 0.0, %v3867
      %3869 = vmatprep.mubr.f32.mxu0 0.0
      %3870 = vmatmul.mubr.f32.gmra.mrb[0].mxu0 %v3623
      %v3871 = vpop.f32.mrb[0].mxu0
      %v3872 = vadd.f32 0.0, %v3871
      %v3873 = vpop.f32.mrb[0].mxu0
      %v3874 = vadd.f32 0.0, %v3873
      %3875 = vmatprep.mubr.f32.mxu0 0.0
      %3876 = vmatmul.mubr.f32.gmra.mrb[0].mxu0 %v3626
      %v3877 = vpop.f32.mrb[0].mxu0
      %v3878 = vadd.f32 0.0, %v3877
      %v3879 = vpop.f32.mrb[0].mxu0
      %v3880 = vadd.f32 0.0, %v3879
      %3881 = vmatprep.mubr.f32.mxu0 0.0
      %3882 = vmatmul.mubr.f32.gmra.mrb[0].mxu0 %v3629
      %v3883 = vpop.f32.mrb[0].mxu0
      %v3884 = vadd.f32 0.0, %v3883
      %v3885 = vpop.f32.mrb[0].mxu0
      %v3886 = vadd.f32 0.0, %v3885
      %3887 = vdwg.mxu0
      %3888 = vxpose.xlu0.b32.start [1/16] %v546, 128
      %3889 = vxpose.xlu0.b32.cont [2/16] %v552, 128
      %3890 = vxpose.xlu0.b32.cont [3/16] 0.0, 128
      %3891 = vxpose.xlu0.b32.cont [4/16] 0.0, 128
      %3892 = vxpose.xlu0.b32.cont [5/16] 0.0, 128
      %3893 = vxpose.xlu0.b32.cont [6/16] 0.0, 128
      %3894 = vxpose.xlu0.b32.cont [7/16] 0.0, 128
      %3895 = vxpose.xlu0.b32.cont [8/16] 0.0, 128
      %3896 = vxpose.xlu0.b32.cont [9/16] 0.0, 128
      %3897 = vxpose.xlu0.b32.cont [10/16] 0.0, 128
      %3898 = vxpose.xlu0.b32.cont [11/16] 0.0, 128
      %3899 = vxpose.xlu0.b32.cont [12/16] 0.0, 128
      %3900 = vxpose.xlu0.b32.cont [13/16] 0.0, 128
      %3901 = vxpose.xlu0.b32.cont [14/16] 0.0, 128
      %3902 = vxpose.xlu0.b32.cont [15/16] 0.0, 128
      %3903 = vxpose.xlu0.b32.end [16/16] 0.0, 128
      %v3904 = vpop.trf.xlu0
      %v3905 = vpop.trf.xlu0
      %v3906 = vpop.trf.xlu0
      %v3907 = vpop.trf.xlu0
      %v3908 = vpop.trf.xlu0
      %v3909 = vpop.trf.xlu0
      %v3910 = vpop.trf.xlu0
      %v3911 = vpop.trf.xlu0
      %v3912 = vpop.trf.xlu0
      %v3913 = vpop.trf.xlu0
      %v3914 = vpop.trf.xlu0
      %v3915 = vpop.trf.xlu0
      %v3916 = vpop.trf.xlu0
      %v3917 = vpop.trf.xlu0
      %v3918 = vpop.trf.xlu0
      %v3919 = vpop.trf.xlu0
      %3920 = vxpose.xlu0.b32.start [1/16] %v548, 128
      %3921 = vxpose.xlu0.b32.cont [2/16] %v554, 128
      %3922 = vxpose.xlu0.b32.cont [3/16] 0.0, 128
      %3923 = vxpose.xlu0.b32.cont [4/16] 0.0, 128
      %3924 = vxpose.xlu0.b32.cont [5/16] 0.0, 128
      %3925 = vxpose.xlu0.b32.cont [6/16] 0.0, 128
      %3926 = vxpose.xlu0.b32.cont [7/16] 0.0, 128
      %3927 = vxpose.xlu0.b32.cont [8/16] 0.0, 128
      %3928 = vxpose.xlu0.b32.cont [9/16] 0.0, 128
      %3929 = vxpose.xlu0.b32.cont [10/16] 0.0, 128
      %3930 = vxpose.xlu0.b32.cont [11/16] 0.0, 128
      %3931 = vxpose.xlu0.b32.cont [12/16] 0.0, 128
      %3932 = vxpose.xlu0.b32.cont [13/16] 0.0, 128
      %3933 = vxpose.xlu0.b32.cont [14/16] 0.0, 128
      %3934 = vxpose.xlu0.b32.cont [15/16] 0.0, 128
      %3935 = vxpose.xlu0.b32.end [16/16] 0.0, 128
      %v3936 = vpop.trf.xlu0
      %v3937 = vpop.trf.xlu0
      %v3938 = vpop.trf.xlu0
      %v3939 = vpop.trf.xlu0
      %v3940 = vpop.trf.xlu0
      %v3941 = vpop.trf.xlu0
      %v3942 = vpop.trf.xlu0
      %v3943 = vpop.trf.xlu0
      %v3944 = vpop.trf.xlu0
      %v3945 = vpop.trf.xlu0
      %v3946 = vpop.trf.xlu0
      %v3947 = vpop.trf.xlu0
      %v3948 = vpop.trf.xlu0
      %v3949 = vpop.trf.xlu0
      %v3950 = vpop.trf.xlu0
      %v3951 = vpop.trf.xlu0
      %v3953 = vsel %vm744, %v3904, 0
      %v3956 = vsel %vm744, %v3905, 0
      %v3959 = vsel %vm744, %v3906, 0
      %v3962 = vsel %vm744, %v3907, 0
      %v3965 = vsel %vm744, %v3908, 0
      %v3968 = vsel %vm744, %v3909, 0
      %v3971 = vsel %vm744, %v3910, 0
      %v3974 = vsel %vm744, %v3911, 0
      %v3977 = vsel %vm744, %v3912, 0
      %v3980 = vsel %vm744, %v3913, 0
      %v3983 = vsel %vm744, %v3914, 0
      %v3986 = vsel %vm744, %v3915, 0
      %v3989 = vsel %vm744, %v3916, 0
      %v3992 = vsel %vm744, %v3917, 0
      %v3995 = vsel %vm744, %v3918, 0
      %v3998 = vsel %vm744, %v3919, 0
      %v4001 = vsel %vm744, %v3936, 0
      %v4004 = vsel %vm744, %v3937, 0
      %v4007 = vsel %vm744, %v3938, 0
      %v4010 = vsel %vm744, %v3939, 0
      %v4013 = vsel %vm744, %v3940, 0
      %v4016 = vsel %vm744, %v3941, 0
      %v4019 = vsel %vm744, %v3942, 0
      %v4022 = vsel %vm744, %v3943, 0
      %v4025 = vsel %vm744, %v3944, 0
      %v4028 = vsel %vm744, %v3945, 0
      %v4031 = vsel %vm744, %v3946, 0
      %v4034 = vsel %vm744, %v3947, 0
      %v4037 = vsel %vm744, %v3948, 0
      %v4040 = vsel %vm744, %v3949, 0
      %v4043 = vsel %vm744, %v3950, 0
      %v4046 = vsel %vm744, %v3951, 0
      %4048 = vmatprep.subr.mxu0 %v596
      %4049 = vmatpush1.msra.mxu0 %v594
      %4050 = vmatprep.subr.mxu0 %v602
      %4051 = vmatpush1.msra.mxu0 %v600
      %4052 = vmatprep.subr.mxu0 0.0
      %4053 = vmatpush1.msra.mxu0 0.0
      %4054 = vmatprep.subr.mxu0 0.0
      %4055 = vmatpush1.msra.mxu0 0.0
      %4056 = vmatprep.subr.mxu0 0.0
      %4057 = vmatpush1.msra.mxu0 0.0
      %4058 = vmatprep.subr.mxu0 0.0
      %4059 = vmatpush1.msra.mxu0 0.0
      %4060 = vmatprep.subr.mxu0 0.0
      %4061 = vmatpush1.msra.mxu0 0.0
      %4062 = vmatprep.subr.mxu0 0.0
      %4063 = vmatpush1.msra.mxu0 0.0
      %4064 = vmatprep.subr.mxu0 0.0
      %4065 = vmatpush1.msra.mxu0 0.0
      %4066 = vmatprep.subr.mxu0 0.0
      %4067 = vmatpush1.msra.mxu0 0.0
      %4068 = vmatprep.subr.mxu0 0.0
      %4069 = vmatpush1.msra.mxu0 0.0
      %4070 = vmatprep.subr.mxu0 0.0
      %4071 = vmatpush1.msra.mxu0 0.0
      %4072 = vmatprep.subr.mxu0 0.0
      %4073 = vmatpush1.msra.mxu0 0.0
      %4074 = vmatprep.subr.mxu0 0.0
      %4075 = vmatpush1.msra.mxu0 0.0
      %4076 = vmatprep.subr.mxu0 0.0
      %4077 = vmatpush1.msra.mxu0 0.0
      %4078 = vmatprep.subr.mxu0 0.0
      %4079 = vmatpush1.msra.mxu0 0.0
      %4080 = vmatprep.subr.mxu0 0.0
      %4081 = vmatpush1.msra.mxu0 0.0
      %4082 = vmatprep.subr.mxu0 0.0
      %4083 = vmatpush1.msra.mxu0 0.0
      %4084 = vmatprep.subr.mxu0 0.0
      %4085 = vmatpush1.msra.mxu0 0.0
      %4086 = vmatprep.subr.mxu0 0.0
      %4087 = vmatpush1.msra.mxu0 0.0
      %4088 = vmatprep.subr.mxu0 0.0
      %4089 = vmatpush1.msra.mxu0 0.0
      %4090 = vmatprep.subr.mxu0 0.0
      %4091 = vmatpush1.msra.mxu0 0.0
      %4092 = vmatprep.subr.mxu0 0.0
      %4093 = vmatpush1.msra.mxu0 0.0
      %4094 = vmatprep.subr.mxu0 0.0
      %4095 = vmatpush1.msra.mxu0 0.0
      %4096 = vmatprep.subr.mxu0 0.0
      %4097 = vmatpush1.msra.mxu0 0.0
      %4098 = vmatprep.subr.mxu0 0.0
      %4099 = vmatpush1.msra.mxu0 0.0
      %4100 = vmatprep.subr.mxu0 0.0
      %4101 = vmatpush1.msra.mxu0 0.0
      %4102 = vmatprep.subr.mxu0 0.0
      %4103 = vmatpush1.msra.mxu0 0.0
      %4104 = vmatprep.subr.mxu0 0.0
      %4105 = vmatpush1.msra.mxu0 0.0
      %4106 = vmatprep.subr.mxu0 0.0
      %4107 = vmatpush1.msra.mxu0 0.0
      %4108 = vmatprep.subr.mxu0 0.0
      %4109 = vmatpush1.msra.mxu0 0.0
      %4110 = vmatprep.subr.mxu0 0.0
      %4111 = vmatpush1.msra.mxu0 0.0
      %4112 = vmatprep.mubr.f32.mxu0 0.0
      %4113 = vmatmul.mubr.f32.gmra.mrb[0].mxu0 %v3953
      %v4114 = vpop.f32.mrb[0].mxu0
      %v4115 = vadd.f32 %v3698, %v4114
      %v4116 = vpop.f32.mrb[0].mxu0
      %v4117 = vadd.f32 %v3700, %v4116
      %4118 = vmatprep.mubr.f32.mxu0 0.0
      %4119 = vmatmul.mubr.f32.gmra.mrb[0].mxu0 %v3956
      %v4120 = vpop.f32.mrb[0].mxu0
      %v4121 = vadd.f32 %v3704, %v4120
      %v4122 = vpop.f32.mrb[0].mxu0
      %v4123 = vadd.f32 %v3706, %v4122
      %4124 = vmatprep.mubr.f32.mxu0 0.0
      %4125 = vmatmul.mubr.f32.gmra.mrb[0].mxu0 %v3959
      %v4126 = vpop.f32.mrb[0].mxu0
      %v4127 = vadd.f32 %v3710, %v4126
      %v4128 = vpop.f32.mrb[0].mxu0
      %v4129 = vadd.f32 %v3712, %v4128
      %4130 = vmatprep.mubr.f32.mxu0 0.0
      %4131 = vmatmul.mubr.f32.gmra.mrb[0].mxu0 %v3962
      %v4132 = vpop.f32.mrb[0].mxu0
      %v4133 = vadd.f32 %v3716, %v4132
      %v4134 = vpop.f32.mrb[0].mxu0
      %v4135 = vadd.f32 %v3718, %v4134
      %4136 = vmatprep.mubr.f32.mxu0 0.0
      %4137 = vmatmul.mubr.f32.gmra.mrb[0].mxu0 %v3965
      %v4138 = vpop.f32.mrb[0].mxu0
      %v4139 = vadd.f32 %v3722, %v4138
      %v4140 = vpop.f32.mrb[0].mxu0
      %v4141 = vadd.f32 %v3724, %v4140
      %4142 = vmatprep.mubr.f32.mxu0 0.0
      %4143 = vmatmul.mubr.f32.gmra.mrb[0].mxu0 %v3968
      %v4144 = vpop.f32.mrb[0].mxu0
      %v4145 = vadd.f32 %v3728, %v4144
      %v4146 = vpop.f32.mrb[0].mxu0
      %v4147 = vadd.f32 %v3730, %v4146
      %4148 = vmatprep.mubr.f32.mxu0 0.0
      %4149 = vmatmul.mubr.f32.gmra.mrb[0].mxu0 %v3971
      %v4150 = vpop.f32.mrb[0].mxu0
      %v4151 = vadd.f32 %v3734, %v4150
      %v4152 = vpop.f32.mrb[0].mxu0
      %v4153 = vadd.f32 %v3736, %v4152
      %4154 = vmatprep.mubr.f32.mxu0 0.0
      %4155 = vmatmul.mubr.f32.gmra.mrb[0].mxu0 %v3974
      %v4156 = vpop.f32.mrb[0].mxu0
      %v4157 = vadd.f32 %v3740, %v4156
      %v4158 = vpop.f32.mrb[0].mxu0
      %v4159 = vadd.f32 %v3742, %v4158
      %4160 = vmatprep.mubr.f32.mxu0 0.0
      %4161 = vmatmul.mubr.f32.gmra.mrb[0].mxu0 %v3977
      %v4162 = vpop.f32.mrb[0].mxu0
      %v4163 = vadd.f32 %v3746, %v4162
      %v4164 = vpop.f32.mrb[0].mxu0
      %v4165 = vadd.f32 %v3748, %v4164
      %4166 = vmatprep.mubr.f32.mxu0 0.0
      %4167 = vmatmul.mubr.f32.gmra.mrb[0].mxu0 %v3980
      %v4168 = vpop.f32.mrb[0].mxu0
      %v4169 = vadd.f32 %v3752, %v4168
      %v4170 = vpop.f32.mrb[0].mxu0
      %v4171 = vadd.f32 %v3754, %v4170
      %4172 = vmatprep.mubr.f32.mxu0 0.0
      %4173 = vmatmul.mubr.f32.gmra.mrb[0].mxu0 %v3983
      %v4174 = vpop.f32.mrb[0].mxu0
      %v4175 = vadd.f32 %v3758, %v4174
      %v4176 = vpop.f32.mrb[0].mxu0
      %v4177 = vadd.f32 %v3760, %v4176
      %4178 = vmatprep.mubr.f32.mxu0 0.0
      %4179 = vmatmul.mubr.f32.gmra.mrb[0].mxu0 %v3986
      %v4180 = vpop.f32.mrb[0].mxu0
      %v4181 = vadd.f32 %v3764, %v4180
      %v4182 = vpop.f32.mrb[0].mxu0
      %v4183 = vadd.f32 %v3766, %v4182
      %4184 = vmatprep.mubr.f32.mxu0 0.0
      %4185 = vmatmul.mubr.f32.gmra.mrb[0].mxu0 %v3989
      %v4186 = vpop.f32.mrb[0].mxu0
      %v4187 = vadd.f32 %v3770, %v4186
      %v4188 = vpop.f32.mrb[0].mxu0
      %v4189 = vadd.f32 %v3772, %v4188
      %4190 = vmatprep.mubr.f32.mxu0 0.0
      %4191 = vmatmul.mubr.f32.gmra.mrb[0].mxu0 %v3992
      %v4192 = vpop.f32.mrb[0].mxu0
      %v4193 = vadd.f32 %v3776, %v4192
      %v4194 = vpop.f32.mrb[0].mxu0
      %v4195 = vadd.f32 %v3778, %v4194
      %4196 = vmatprep.mubr.f32.mxu0 0.0
      %4197 = vmatmul.mubr.f32.gmra.mrb[0].mxu0 %v3995
      %v4198 = vpop.f32.mrb[0].mxu0
      %v4199 = vadd.f32 %v3782, %v4198
      %v4200 = vpop.f32.mrb[0].mxu0
      %v4201 = vadd.f32 %v3784, %v4200
      %4202 = vmatprep.mubr.f32.mxu0 0.0
      %4203 = vmatmul.mubr.f32.gmra.mrb[0].mxu0 %v3998
      %v4204 = vpop.f32.mrb[0].mxu0
      %v4205 = vadd.f32 %v3788, %v4204
      %v4206 = vpop.f32.mrb[0].mxu0
      %v4207 = vadd.f32 %v3790, %v4206
      %4208 = vmatprep.mubr.f32.mxu0 0.0
      %4209 = vmatmul.mubr.f32.gmra.mrb[0].mxu0 %v4001
      %v4210 = vpop.f32.mrb[0].mxu0
      %v4211 = vadd.f32 %v3794, %v4210
      %v4212 = vpop.f32.mrb[0].mxu0
      %v4213 = vadd.f32 %v3796, %v4212
      %4214 = vmatprep.mubr.f32.mxu0 0.0
      %4215 = vmatmul.mubr.f32.gmra.mrb[0].mxu0 %v4004
      %v4216 = vpop.f32.mrb[0].mxu0
      %v4217 = vadd.f32 %v3800, %v4216
      %v4218 = vpop.f32.mrb[0].mxu0
      %v4219 = vadd.f32 %v3802, %v4218
      %4220 = vmatprep.mubr.f32.mxu0 0.0
      %4221 = vmatmul.mubr.f32.gmra.mrb[0].mxu0 %v4007
      %v4222 = vpop.f32.mrb[0].mxu0
      %v4223 = vadd.f32 %v3806, %v4222
      %v4224 = vpop.f32.mrb[0].mxu0
      %v4225 = vadd.f32 %v3808, %v4224
      %4226 = vmatprep.mubr.f32.mxu0 0.0
      %4227 = vmatmul.mubr.f32.gmra.mrb[0].mxu0 %v4010
      %v4228 = vpop.f32.mrb[0].mxu0
      %v4229 = vadd.f32 %v3812, %v4228
      %v4230 = vpop.f32.mrb[0].mxu0
      %v4231 = vadd.f32 %v3814, %v4230
      %4232 = vmatprep.mubr.f32.mxu0 0.0
      %4233 = vmatmul.mubr.f32.gmra.mrb[0].mxu0 %v4013
      %v4234 = vpop.f32.mrb[0].mxu0
      %v4235 = vadd.f32 %v3818, %v4234
      %v4236 = vpop.f32.mrb[0].mxu0
      %v4237 = vadd.f32 %v3820, %v4236
      %4238 = vmatprep.mubr.f32.mxu0 0.0
      %4239 = vmatmul.mubr.f32.gmra.mrb[0].mxu0 %v4016
      %v4240 = vpop.f32.mrb[0].mxu0
      %v4241 = vadd.f32 %v3824, %v4240
      %v4242 = vpop.f32.mrb[0].mxu0
      %v4243 = vadd.f32 %v3826, %v4242
      %4244 = vmatprep.mubr.f32.mxu0 0.0
      %4245 = vmatmul.mubr.f32.gmra.mrb[0].mxu0 %v4019
      %v4246 = vpop.f32.mrb[0].mxu0
      %v4247 = vadd.f32 %v3830, %v4246
      %v4248 = vpop.f32.mrb[0].mxu0
      %v4249 = vadd.f32 %v3832, %v4248
      %4250 = vmatprep.mubr.f32.mxu0 0.0
      %4251 = vmatmul.mubr.f32.gmra.mrb[0].mxu0 %v4022
      %v4252 = vpop.f32.mrb[0].mxu0
      %v4253 = vadd.f32 %v3836, %v4252
      %v4254 = vpop.f32.mrb[0].mxu0
      %v4255 = vadd.f32 %v3838, %v4254
      %4256 = vmatprep.mubr.f32.mxu0 0.0
      %4257 = vmatmul.mubr.f32.gmra.mrb[0].mxu0 %v4025
      %v4258 = vpop.f32.mrb[0].mxu0
      %v4259 = vadd.f32 %v3842, %v4258
      %v4260 = vpop.f32.mrb[0].mxu0
      %v4261 = vadd.f32 %v3844, %v4260
      %4262 = vmatprep.mubr.f32.mxu0 0.0
      %4263 = vmatmul.mubr.f32.gmra.mrb[0].mxu0 %v4028
      %v4264 = vpop.f32.mrb[0].mxu0
      %v4265 = vadd.f32 %v3848, %v4264
      %v4266 = vpop.f32.mrb[0].mxu0
      %v4267 = vadd.f32 %v3850, %v4266
      %4268 = vmatprep.mubr.f32.mxu0 0.0
      %4269 = vmatmul.mubr.f32.gmra.mrb[0].mxu0 %v4031
      %v4270 = vpop.f32.mrb[0].mxu0
      %v4271 = vadd.f32 %v3854, %v4270
      %v4272 = vpop.f32.mrb[0].mxu0
      %v4273 = vadd.f32 %v3856, %v4272
      %4274 = vmatprep.mubr.f32.mxu0 0.0
      %4275 = vmatmul.mubr.f32.gmra.mrb[0].mxu0 %v4034
      %v4276 = vpop.f32.mrb[0].mxu0
      %v4277 = vadd.f32 %v3860, %v4276
      %v4278 = vpop.f32.mrb[0].mxu0
      %v4279 = vadd.f32 %v3862, %v4278
      %4280 = vmatprep.mubr.f32.mxu0 0.0
      %4281 = vmatmul.mubr.f32.gmra.mrb[0].mxu0 %v4037
      %v4282 = vpop.f32.mrb[0].mxu0
      %v4283 = vadd.f32 %v3866, %v4282
      %v4284 = vpop.f32.mrb[0].mxu0
      %v4285 = vadd.f32 %v3868, %v4284
      %4286 = vmatprep.mubr.f32.mxu0 0.0
      %4287 = vmatmul.mubr.f32.gmra.mrb[0].mxu0 %v4040
      %v4288 = vpop.f32.mrb[0].mxu0
      %v4289 = vadd.f32 %v3872, %v4288
      %v4290 = vpop.f32.mrb[0].mxu0
      %v4291 = vadd.f32 %v3874, %v4290
      %4292 = vmatprep.mubr.f32.mxu0 0.0
      %4293 = vmatmul.mubr.f32.gmra.mrb[0].mxu0 %v4043
      %v4294 = vpop.f32.mrb[0].mxu0
      %v4295 = vadd.f32 %v3878, %v4294
      %v4296 = vpop.f32.mrb[0].mxu0
      %v4297 = vadd.f32 %v3880, %v4296
      %4298 = vmatprep.mubr.f32.mxu0 0.0
      %4299 = vmatmul.mubr.f32.gmra.mrb[0].mxu0 %v4046
      %v4300 = vpop.f32.mrb[0].mxu0
      %v4301 = vadd.f32 %v3884, %v4300
      %v4302 = vpop.f32.mrb[0].mxu0
      %v4303 = vadd.f32 %v3886, %v4302
      %4304 = vdwg.mxu0
      %v4305 = vmax.f32 %v4115, %v4117
      %4306 = vmax.xlane.f32.xlu0 %v4305
      %v4307 = vpop.xlane.xlu0 %4306
      %v4308 = vmax.f32 %v4121, %v4123
      %4309 = vmax.xlane.f32.xlu0 %v4308
      %v4310 = vpop.xlane.xlu0 %4309
      %v4311 = vmax.f32 %v4127, %v4129
      %4312 = vmax.xlane.f32.xlu0 %v4311
      %v4313 = vpop.xlane.xlu0 %4312
      %v4314 = vmax.f32 %v4133, %v4135
      %4315 = vmax.xlane.f32.xlu0 %v4314
      %v4316 = vpop.xlane.xlu0 %4315
      %v4317 = vmax.f32 %v4139, %v4141
      %4318 = vmax.xlane.f32.xlu0 %v4317
      %v4319 = vpop.xlane.xlu0 %4318
      %v4320 = vmax.f32 %v4145, %v4147
      %4321 = vmax.xlane.f32.xlu0 %v4320
      %v4322 = vpop.xlane.xlu0 %4321
      %v4323 = vmax.f32 %v4151, %v4153
      %4324 = vmax.xlane.f32.xlu0 %v4323
      %v4325 = vpop.xlane.xlu0 %4324
      %v4326 = vmax.f32 %v4157, %v4159
      %4327 = vmax.xlane.f32.xlu0 %v4326
      %v4328 = vpop.xlane.xlu0 %4327
      %v4329 = vmax.f32 %v4163, %v4165
      %4330 = vmax.xlane.f32.xlu0 %v4329
      %v4331 = vpop.xlane.xlu0 %4330
      %v4332 = vmax.f32 %v4169, %v4171
      %4333 = vmax.xlane.f32.xlu0 %v4332
      %v4334 = vpop.xlane.xlu0 %4333
      %v4335 = vmax.f32 %v4175, %v4177
      %4336 = vmax.xlane.f32.xlu0 %v4335
      %v4337 = vpop.xlane.xlu0 %4336
      %v4338 = vmax.f32 %v4181, %v4183
      %4339 = vmax.xlane.f32.xlu0 %v4338
      %v4340 = vpop.xlane.xlu0 %4339
      %v4341 = vmax.f32 %v4187, %v4189
      %4342 = vmax.xlane.f32.xlu0 %v4341
      %v4343 = vpop.xlane.xlu0 %4342
      %v4344 = vmax.f32 %v4193, %v4195
      %4345 = vmax.xlane.f32.xlu0 %v4344
      %v4346 = vpop.xlane.xlu0 %4345
      %v4347 = vmax.f32 %v4199, %v4201
      %4348 = vmax.xlane.f32.xlu0 %v4347
      %v4349 = vpop.xlane.xlu0 %4348
      %v4350 = vmax.f32 %v4205, %v4207
      %4351 = vmax.xlane.f32.xlu0 %v4350
      %v4352 = vpop.xlane.xlu0 %4351
      %v4353 = vmax.f32 %v4211, %v4213
      %4354 = vmax.xlane.f32.xlu0 %v4353
      %v4355 = vpop.xlane.xlu0 %4354
      %v4356 = vmax.f32 %v4217, %v4219
      %4357 = vmax.xlane.f32.xlu0 %v4356
      %v4358 = vpop.xlane.xlu0 %4357
      %v4359 = vmax.f32 %v4223, %v4225
      %4360 = vmax.xlane.f32.xlu0 %v4359
      %v4361 = vpop.xlane.xlu0 %4360
      %v4362 = vmax.f32 %v4229, %v4231
      %4363 = vmax.xlane.f32.xlu0 %v4362
      %v4364 = vpop.xlane.xlu0 %4363
      %v4365 = vmax.f32 %v4235, %v4237
      %4366 = vmax.xlane.f32.xlu0 %v4365
      %v4367 = vpop.xlane.xlu0 %4366
      %v4368 = vmax.f32 %v4241, %v4243
      %4369 = vmax.xlane.f32.xlu0 %v4368
      %v4370 = vpop.xlane.xlu0 %4369
      %v4371 = vmax.f32 %v4247, %v4249
      %4372 = vmax.xlane.f32.xlu0 %v4371
      %v4373 = vpop.xlane.xlu0 %4372
      %v4374 = vmax.f32 %v4253, %v4255
      %4375 = vmax.xlane.f32.xlu0 %v4374
      %v4376 = vpop.xlane.xlu0 %4375
      %v4377 = vmax.f32 %v4259, %v4261
      %4378 = vmax.xlane.f32.xlu0 %v4377
      %v4379 = vpop.xlane.xlu0 %4378
      %v4380 = vmax.f32 %v4265, %v4267
      %4381 = vmax.xlane.f32.xlu0 %v4380
      %v4382 = vpop.xlane.xlu0 %4381
      %v4383 = vmax.f32 %v4271, %v4273
      %4384 = vmax.xlane.f32.xlu0 %v4383
      %v4385 = vpop.xlane.xlu0 %4384
      %v4386 = vmax.f32 %v4277, %v4279
      %4387 = vmax.xlane.f32.xlu0 %v4386
      %v4388 = vpop.xlane.xlu0 %4387
      %v4389 = vmax.f32 %v4283, %v4285
      %4390 = vmax.xlane.f32.xlu0 %v4389
      %v4391 = vpop.xlane.xlu0 %4390
      %v4392 = vmax.f32 %v4289, %v4291
      %4393 = vmax.xlane.f32.xlu0 %v4392
      %v4394 = vpop.xlane.xlu0 %4393
      %v4395 = vmax.f32 %v4295, %v4297
      %4396 = vmax.xlane.f32.xlu0 %v4395
      %v4397 = vpop.xlane.xlu0 %4396
      %v4398 = vmax.f32 %v4301, %v4303
      %4399 = vmax.xlane.f32.xlu0 %v4398
      %v4400 = vpop.xlane.xlu0 %4399
      %v4401 = vsub.f32 %v4115, %v4307
      %v4402 = vsub.f32 %v4117, %v4307
      %v4403 = vsub.f32 %v4121, %v4310
      %v4404 = vsub.f32 %v4123, %v4310
      %v4405 = vsub.f32 %v4127, %v4313
      %v4406 = vsub.f32 %v4129, %v4313
      %v4407 = vsub.f32 %v4133, %v4316
      %v4408 = vsub.f32 %v4135, %v4316
      %v4409 = vsub.f32 %v4139, %v4319
      %v4410 = vsub.f32 %v4141, %v4319
      %v4411 = vsub.f32 %v4145, %v4322
      %v4412 = vsub.f32 %v4147, %v4322
      %v4413 = vsub.f32 %v4151, %v4325
      %v4414 = vsub.f32 %v4153, %v4325
      %v4415 = vsub.f32 %v4157, %v4328
      %v4416 = vsub.f32 %v4159, %v4328
      %v4417 = vsub.f32 %v4163, %v4331
      %v4418 = vsub.f32 %v4165, %v4331
      %v4419 = vsub.f32 %v4169, %v4334
      %v4420 = vsub.f32 %v4171, %v4334
      %v4421 = vsub.f32 %v4175, %v4337
      %v4422 = vsub.f32 %v4177, %v4337
      %v4423 = vsub.f32 %v4181, %v4340
      %v4424 = vsub.f32 %v4183, %v4340
      %v4425 = vsub.f32 %v4187, %v4343
      %v4426 = vsub.f32 %v4189, %v4343
      %v4427 = vsub.f32 %v4193, %v4346
      %v4428 = vsub.f32 %v4195, %v4346
      %v4429 = vsub.f32 %v4199, %v4349
      %v4430 = vsub.f32 %v4201, %v4349
      %v4431 = vsub.f32 %v4205, %v4352
      %v4432 = vsub.f32 %v4207, %v4352
      %v4433 = vsub.f32 %v4211, %v4355
      %v4434 = vsub.f32 %v4213, %v4355
      %v4435 = vsub.f32 %v4217, %v4358
      %v4436 = vsub.f32 %v4219, %v4358
      %v4437 = vsub.f32 %v4223, %v4361
      %v4438 = vsub.f32 %v4225, %v4361
      %v4439 = vsub.f32 %v4229, %v4364
      %v4440 = vsub.f32 %v4231, %v4364
      %v4441 = vsub.f32 %v4235, %v4367
      %v4442 = vsub.f32 %v4237, %v4367
      %v4443 = vsub.f32 %v4241, %v4370
      %v4444 = vsub.f32 %v4243, %v4370
      %v4445 = vsub.f32 %v4247, %v4373
      %v4446 = vsub.f32 %v4249, %v4373
      %v4447 = vsub.f32 %v4253, %v4376
      %v4448 = vsub.f32 %v4255, %v4376
      %v4449 = vsub.f32 %v4259, %v4379
      %v4450 = vsub.f32 %v4261, %v4379
      %v4451 = vsub.f32 %v4265, %v4382
      %v4452 = vsub.f32 %v4267, %v4382
      %v4453 = vsub.f32 %v4271, %v4385
      %v4454 = vsub.f32 %v4273, %v4385
      %v4455 = vsub.f32 %v4277, %v4388
      %v4456 = vsub.f32 %v4279, %v4388
      %v4457 = vsub.f32 %v4283, %v4391
      %v4458 = vsub.f32 %v4285, %v4391
      %v4459 = vsub.f32 %v4289, %v4394
      %v4460 = vsub.f32 %v4291, %v4394
      %v4461 = vsub.f32 %v4295, %v4397
      %v4462 = vsub.f32 %v4297, %v4397
      %v4463 = vsub.f32 %v4301, %v4400
      %v4464 = vsub.f32 %v4303, %v4400
      %v4465 = vmul.f32 %v4401, 1.442695
      %v4466 = vpow.pop %v4465
      %v4467 = vmul.f32 %v4402, 1.442695
      %v4468 = vpow.pop %v4467
      %v4469 = vmul.f32 %v4403, 1.442695
      %v4470 = vpow.pop %v4469
      %v4471 = vmul.f32 %v4404, 1.442695
      %v4472 = vpow.pop %v4471
      %v4473 = vmul.f32 %v4405, 1.442695
      %v4474 = vpow.pop %v4473
      %v4475 = vmul.f32 %v4406, 1.442695
      %v4476 = vpow.pop %v4475
      %v4477 = vmul.f32 %v4407, 1.442695
      %v4478 = vpow.pop %v4477
      %v4479 = vmul.f32 %v4408, 1.442695
      %v4480 = vpow.pop %v4479
      %v4481 = vmul.f32 %v4409, 1.442695
      %v4482 = vpow.pop %v4481
      %v4483 = vmul.f32 %v4410, 1.442695
      %v4484 = vpow.pop %v4483
      %v4485 = vmul.f32 %v4411, 1.442695
      %v4486 = vpow.pop %v4485
      %v4487 = vmul.f32 %v4412, 1.442695
      %v4488 = vpow.pop %v4487
      %v4489 = vmul.f32 %v4413, 1.442695
      %v4490 = vpow.pop %v4489
      %v4491 = vmul.f32 %v4414, 1.442695
      %v4492 = vpow.pop %v4491
      %v4493 = vmul.f32 %v4415, 1.442695
      %v4494 = vpow.pop %v4493
      %v4495 = vmul.f32 %v4416, 1.442695
      %v4496 = vpow.pop %v4495
      %v4497 = vmul.f32 %v4417, 1.442695
      %v4498 = vpow.pop %v4497
      %v4499 = vmul.f32 %v4418, 1.442695
      %v4500 = vpow.pop %v4499
      %v4501 = vmul.f32 %v4419, 1.442695
      %v4502 = vpow.pop %v4501
      %v4503 = vmul.f32 %v4420, 1.442695
      %v4504 = vpow.pop %v4503
      %v4505 = vmul.f32 %v4421, 1.442695
      %v4506 = vpow.pop %v4505
      %v4507 = vmul.f32 %v4422, 1.442695
      %v4508 = vpow.pop %v4507
      %v4509 = vmul.f32 %v4423, 1.442695
      %v4510 = vpow.pop %v4509
      %v4511 = vmul.f32 %v4424, 1.442695
      %v4512 = vpow.pop %v4511
      %v4513 = vmul.f32 %v4425, 1.442695
      %v4514 = vpow.pop %v4513
      %v4515 = vmul.f32 %v4426, 1.442695
      %v4516 = vpow.pop %v4515
      %v4517 = vmul.f32 %v4427, 1.442695
      %v4518 = vpow.pop %v4517
      %v4519 = vmul.f32 %v4428, 1.442695
      %v4520 = vpow.pop %v4519
      %v4521 = vmul.f32 %v4429, 1.442695
      %v4522 = vpow.pop %v4521
      %v4523 = vmul.f32 %v4430, 1.442695
      %v4524 = vpow.pop %v4523
      %v4525 = vmul.f32 %v4431, 1.442695
      %v4526 = vpow.pop %v4525
      %v4527 = vmul.f32 %v4432, 1.442695
      %v4528 = vpow.pop %v4527
      %v4529 = vmul.f32 %v4433, 1.442695
      %v4530 = vpow.pop %v4529
      %v4531 = vmul.f32 %v4434, 1.442695
      %v4532 = vpow.pop %v4531
      %v4533 = vmul.f32 %v4435, 1.442695
      %v4534 = vpow.pop %v4533
      %v4535 = vmul.f32 %v4436, 1.442695
      %v4536 = vpow.pop %v4535
      %v4537 = vmul.f32 %v4437, 1.442695
      %v4538 = vpow.pop %v4537
      %v4539 = vmul.f32 %v4438, 1.442695
      %v4540 = vpow.pop %v4539
      %v4541 = vmul.f32 %v4439, 1.442695
      %v4542 = vpow.pop %v4541
      %v4543 = vmul.f32 %v4440, 1.442695
      %v4544 = vpow.pop %v4543
      %v4545 = vmul.f32 %v4441, 1.442695
      %v4546 = vpow.pop %v4545
      %v4547 = vmul.f32 %v4442, 1.442695
      %v4548 = vpow.pop %v4547
      %v4549 = vmul.f32 %v4443, 1.442695
      %v4550 = vpow.pop %v4549
      %v4551 = vmul.f32 %v4444, 1.442695
      %v4552 = vpow.pop %v4551
      %v4553 = vmul.f32 %v4445, 1.442695
      %v4554 = vpow.pop %v4553
      %v4555 = vmul.f32 %v4446, 1.442695
      %v4556 = vpow.pop %v4555
      %v4557 = vmul.f32 %v4447, 1.442695
      %v4558 = vpow.pop %v4557
      %v4559 = vmul.f32 %v4448, 1.442695
      %v4560 = vpow.pop %v4559
      %v4561 = vmul.f32 %v4449, 1.442695
      %v4562 = vpow.pop %v4561
      %v4563 = vmul.f32 %v4450, 1.442695
      %v4564 = vpow.pop %v4563
      %v4565 = vmul.f32 %v4451, 1.442695
      %v4566 = vpow.pop %v4565
      %v4567 = vmul.f32 %v4452, 1.442695
      %v4568 = vpow.pop %v4567
      %v4569 = vmul.f32 %v4453, 1.442695
      %v4570 = vpow.pop %v4569
      %v4571 = vmul.f32 %v4454, 1.442695
      %v4572 = vpow.pop %v4571
      %v4573 = vmul.f32 %v4455, 1.442695
      %v4574 = vpow.pop %v4573
      %v4575 = vmul.f32 %v4456, 1.442695
      %v4576 = vpow.pop %v4575
      %v4577 = vmul.f32 %v4457, 1.442695
      %v4578 = vpow.pop %v4577
      %v4579 = vmul.f32 %v4458, 1.442695
      %v4580 = vpow.pop %v4579
      %v4581 = vmul.f32 %v4459, 1.442695
      %v4582 = vpow.pop %v4581
      %v4583 = vmul.f32 %v4460, 1.442695
      %v4584 = vpow.pop %v4583
      %v4585 = vmul.f32 %v4461, 1.442695
      %v4586 = vpow.pop %v4585
      %v4587 = vmul.f32 %v4462, 1.442695
      %v4588 = vpow.pop %v4587
      %v4589 = vmul.f32 %v4463, 1.442695
      %v4590 = vpow.pop %v4589
      %v4591 = vmul.f32 %v4464, 1.442695
      %v4592 = vpow.pop %v4591
      %v4593 = vadd.f32 %v4466, %v4468
      %4594 = vadd.xlane.f32.xlu0 %v4593
      %v4595 = vpop.xlane.xlu0 %4594
      %v4596 = vadd.f32 %v4470, %v4472
      %4597 = vadd.xlane.f32.xlu0 %v4596
      %v4598 = vpop.xlane.xlu0 %4597
      %v4599 = vadd.f32 %v4474, %v4476
      %4600 = vadd.xlane.f32.xlu0 %v4599
      %v4601 = vpop.xlane.xlu0 %4600
      %v4602 = vadd.f32 %v4478, %v4480
      %4603 = vadd.xlane.f32.xlu0 %v4602
      %v4604 = vpop.xlane.xlu0 %4603
      %v4605 = vadd.f32 %v4482, %v4484
      %4606 = vadd.xlane.f32.xlu0 %v4605
      %v4607 = vpop.xlane.xlu0 %4606
      %v4608 = vadd.f32 %v4486, %v4488
      %4609 = vadd.xlane.f32.xlu0 %v4608
      %v4610 = vpop.xlane.xlu0 %4609
      %v4611 = vadd.f32 %v4490, %v4492
      %4612 = vadd.xlane.f32.xlu0 %v4611
      %v4613 = vpop.xlane.xlu0 %4612
      %v4614 = vadd.f32 %v4494, %v4496
      %4615 = vadd.xlane.f32.xlu0 %v4614
      %v4616 = vpop.xlane.xlu0 %4615
      %v4617 = vadd.f32 %v4498, %v4500
      %4618 = vadd.xlane.f32.xlu0 %v4617
      %v4619 = vpop.xlane.xlu0 %4618
      %v4620 = vadd.f32 %v4502, %v4504
      %4621 = vadd.xlane.f32.xlu0 %v4620
      %v4622 = vpop.xlane.xlu0 %4621
      %v4623 = vadd.f32 %v4506, %v4508
      %4624 = vadd.xlane.f32.xlu0 %v4623
      %v4625 = vpop.xlane.xlu0 %4624
      %v4626 = vadd.f32 %v4510, %v4512
      %4627 = vadd.xlane.f32.xlu0 %v4626
      %v4628 = vpop.xlane.xlu0 %4627
      %v4629 = vadd.f32 %v4514, %v4516
      %4630 = vadd.xlane.f32.xlu0 %v4629
      %v4631 = vpop.xlane.xlu0 %4630
      %v4632 = vadd.f32 %v4518, %v4520
      %4633 = vadd.xlane.f32.xlu0 %v4632
      %v4634 = vpop.xlane.xlu0 %4633
      %v4635 = vadd.f32 %v4522, %v4524
      %4636 = vadd.xlane.f32.xlu0 %v4635
      %v4637 = vpop.xlane.xlu0 %4636
      %v4638 = vadd.f32 %v4526, %v4528
      %4639 = vadd.xlane.f32.xlu0 %v4638
      %v4640 = vpop.xlane.xlu0 %4639
      %v4641 = vadd.f32 %v4530, %v4532
      %4642 = vadd.xlane.f32.xlu0 %v4641
      %v4643 = vpop.xlane.xlu0 %4642
      %v4644 = vadd.f32 %v4534, %v4536
      %4645 = vadd.xlane.f32.xlu0 %v4644
      %v4646 = vpop.xlane.xlu0 %4645
      %v4647 = vadd.f32 %v4538, %v4540
      %4648 = vadd.xlane.f32.xlu0 %v4647
      %v4649 = vpop.xlane.xlu0 %4648
      %v4650 = vadd.f32 %v4542, %v4544
      %4651 = vadd.xlane.f32.xlu0 %v4650
      %v4652 = vpop.xlane.xlu0 %4651
      %v4653 = vadd.f32 %v4546, %v4548
      %4654 = vadd.xlane.f32.xlu0 %v4653
      %v4655 = vpop.xlane.xlu0 %4654
      %v4656 = vadd.f32 %v4550, %v4552
      %4657 = vadd.xlane.f32.xlu0 %v4656
      %v4658 = vpop.xlane.xlu0 %4657
      %v4659 = vadd.f32 %v4554, %v4556
      %4660 = vadd.xlane.f32.xlu0 %v4659
      %v4661 = vpop.xlane.xlu0 %4660
      %v4662 = vadd.f32 %v4558, %v4560
      %4663 = vadd.xlane.f32.xlu0 %v4662
      %v4664 = vpop.xlane.xlu0 %4663
      %v4665 = vadd.f32 %v4562, %v4564
      %4666 = vadd.xlane.f32.xlu0 %v4665
      %v4667 = vpop.xlane.xlu0 %4666
      %v4668 = vadd.f32 %v4566, %v4568
      %4669 = vadd.xlane.f32.xlu0 %v4668
      %v4670 = vpop.xlane.xlu0 %4669
      %v4671 = vadd.f32 %v4570, %v4572
      %4672 = vadd.xlane.f32.xlu0 %v4671
      %v4673 = vpop.xlane.xlu0 %4672
      %v4674 = vadd.f32 %v4574, %v4576
      %4675 = vadd.xlane.f32.xlu0 %v4674
      %v4676 = vpop.xlane.xlu0 %4675
      %v4677 = vadd.f32 %v4578, %v4580
      %4678 = vadd.xlane.f32.xlu0 %v4677
      %v4679 = vpop.xlane.xlu0 %4678
      %v4680 = vadd.f32 %v4582, %v4584
      %4681 = vadd.xlane.f32.xlu0 %v4680
      %v4682 = vpop.xlane.xlu0 %4681
      %v4683 = vadd.f32 %v4586, %v4588
      %4684 = vadd.xlane.f32.xlu0 %v4683
      %v4685 = vpop.xlane.xlu0 %4684
      %v4686 = vadd.f32 %v4590, %v4592
      %4687 = vadd.xlane.f32.xlu0 %v4686
      %v4688 = vpop.xlane.xlu0 %4687
      %v4689 = vrcp.pop %v4595
      %v4690 = vrcp.pop %v4598
      %v4691 = vrcp.pop %v4601
      %v4692 = vrcp.pop %v4604
      %v4693 = vrcp.pop %v4607
      %v4694 = vrcp.pop %v4610
      %v4695 = vrcp.pop %v4613
      %v4696 = vrcp.pop %v4616
      %v4697 = vrcp.pop %v4619
      %v4698 = vrcp.pop %v4622
      %v4699 = vrcp.pop %v4625
      %v4700 = vrcp.pop %v4628
      %v4701 = vrcp.pop %v4631
      %v4702 = vrcp.pop %v4634
      %v4703 = vrcp.pop %v4637
      %v4704 = vrcp.pop %v4640
      %v4705 = vrcp.pop %v4643
      %v4706 = vrcp.pop %v4646
      %v4707 = vrcp.pop %v4649
      %v4708 = vrcp.pop %v4652
      %v4709 = vrcp.pop %v4655
      %v4710 = vrcp.pop %v4658
      %v4711 = vrcp.pop %v4661
      %v4712 = vrcp.pop %v4664
      %v4713 = vrcp.pop %v4667
      %v4714 = vrcp.pop %v4670
      %v4715 = vrcp.pop %v4673
      %v4716 = vrcp.pop %v4676
      %v4717 = vrcp.pop %v4679
      %v4718 = vrcp.pop %v4682
      %v4719 = vrcp.pop %v4685
      %v4720 = vrcp.pop %v4688
      %v4721 = vmul.f32 %v4466, %v4689
      %v4722 = vmul.f32 %v4468, %v4689
      %v4723 = vmul.f32 %v4470, %v4690
      %v4724 = vmul.f32 %v4472, %v4690
      %v4725 = vmul.f32 %v4474, %v4691
      %v4726 = vmul.f32 %v4476, %v4691
      %v4727 = vmul.f32 %v4478, %v4692
      %v4728 = vmul.f32 %v4480, %v4692
      %v4729 = vmul.f32 %v4482, %v4693
      %v4730 = vmul.f32 %v4484, %v4693
      %v4731 = vmul.f32 %v4486, %v4694
      %v4732 = vmul.f32 %v4488, %v4694
      %v4733 = vmul.f32 %v4490, %v4695
      %v4734 = vmul.f32 %v4492, %v4695
      %v4735 = vmul.f32 %v4494, %v4696
      %v4736 = vmul.f32 %v4496, %v4696
      %v4737 = vmul.f32 %v4498, %v4697
      %v4738 = vmul.f32 %v4500, %v4697
      %v4739 = vmul.f32 %v4502, %v4698
      %v4740 = vmul.f32 %v4504, %v4698
      %v4741 = vmul.f32 %v4506, %v4699
      %v4742 = vmul.f32 %v4508, %v4699
      %v4743 = vmul.f32 %v4510, %v4700
      %v4744 = vmul.f32 %v4512, %v4700
      %v4745 = vmul.f32 %v4514, %v4701
      %v4746 = vmul.f32 %v4516, %v4701
      %v4747 = vmul.f32 %v4518, %v4702
      %v4748 = vmul.f32 %v4520, %v4702
      %v4749 = vmul.f32 %v4522, %v4703
      %v4750 = vmul.f32 %v4524, %v4703
      %v4751 = vmul.f32 %v4526, %v4704
      %v4752 = vmul.f32 %v4528, %v4704
      %v4753 = vmul.f32 %v4530, %v4705
      %v4754 = vmul.f32 %v4532, %v4705
      %v4755 = vmul.f32 %v4534, %v4706
      %v4756 = vmul.f32 %v4536, %v4706
      %v4757 = vmul.f32 %v4538, %v4707
      %v4758 = vmul.f32 %v4540, %v4707
      %v4759 = vmul.f32 %v4542, %v4708
      %v4760 = vmul.f32 %v4544, %v4708
      %v4761 = vmul.f32 %v4546, %v4709
      %v4762 = vmul.f32 %v4548, %v4709
      %v4763 = vmul.f32 %v4550, %v4710
      %v4764 = vmul.f32 %v4552, %v4710
      %v4765 = vmul.f32 %v4554, %v4711
      %v4766 = vmul.f32 %v4556, %v4711
      %v4767 = vmul.f32 %v4558, %v4712
      %v4768 = vmul.f32 %v4560, %v4712
      %v4769 = vmul.f32 %v4562, %v4713
      %v4770 = vmul.f32 %v4564, %v4713
      %v4771 = vmul.f32 %v4566, %v4714
      %v4772 = vmul.f32 %v4568, %v4714
      %v4773 = vmul.f32 %v4570, %v4715
      %v4774 = vmul.f32 %v4572, %v4715
      %v4775 = vmul.f32 %v4574, %v4716
      %v4776 = vmul.f32 %v4576, %v4716
      %v4777 = vmul.f32 %v4578, %v4717
      %v4778 = vmul.f32 %v4580, %v4717
      %v4779 = vmul.f32 %v4582, %v4718
      %v4780 = vmul.f32 %v4584, %v4718
      %v4781 = vmul.f32 %v4586, %v4719
      %v4782 = vmul.f32 %v4588, %v4719
      %v4783 = vmul.f32 %v4590, %v4720
      %v4784 = vmul.f32 %v4592, %v4720
      %4785 = vmatprep.subr.mxu0 %v4722
      %4786 = vmatpush1.xpose.msra.mxu0 %v4721
      %4787 = vmatprep.subr.mxu0 %v4724
      %4788 = vmatpush1.xpose.msra.mxu0 %v4723
      %4789 = vmatprep.subr.mxu0 %v4726
      %4790 = vmatpush1.xpose.msra.mxu0 %v4725
      %4791 = vmatprep.subr.mxu0 %v4728
      %4792 = vmatpush1.xpose.msra.mxu0 %v4727
      %4793 = vmatprep.subr.mxu0 %v4730
      %4794 = vmatpush1.xpose.msra.mxu0 %v4729
      %4795 = vmatprep.subr.mxu0 %v4732
      %4796 = vmatpush1.xpose.msra.mxu0 %v4731
      %4797 = vmatprep.subr.mxu0 %v4734
      %4798 = vmatpush1.xpose.msra.mxu0 %v4733
      %4799 = vmatprep.subr.mxu0 %v4736
      %4800 = vmatpush1.xpose.msra.mxu0 %v4735
      %4801 = vmatprep.subr.mxu0 %v4738
      %4802 = vmatpush1.xpose.msra.mxu0 %v4737
      %4803 = vmatprep.subr.mxu0 %v4740
      %4804 = vmatpush1.xpose.msra.mxu0 %v4739
      %4805 = vmatprep.subr.mxu0 %v4742
      %4806 = vmatpush1.xpose.msra.mxu0 %v4741
      %4807 = vmatprep.subr.mxu0 %v4744
      %4808 = vmatpush1.xpose.msra.mxu0 %v4743
      %4809 = vmatprep.subr.mxu0 %v4746
      %4810 = vmatpush1.xpose.msra.mxu0 %v4745
      %4811 = vmatprep.subr.mxu0 %v4748
      %4812 = vmatpush1.xpose.msra.mxu0 %v4747
      %4813 = vmatprep.subr.mxu0 %v4750
      %4814 = vmatpush1.xpose.msra.mxu0 %v4749
      %4815 = vmatprep.subr.mxu0 %v4752
      %4816 = vmatpush1.xpose.msra.mxu0 %v4751
      %4817 = vmatprep.subr.mxu0 %v4754
      %4818 = vmatpush1.xpose.msra.mxu0 %v4753
      %4819 = vmatprep.subr.mxu0 %v4756
      %4820 = vmatpush1.xpose.msra.mxu0 %v4755
      %4821 = vmatprep.subr.mxu0 %v4758
      %4822 = vmatpush1.xpose.msra.mxu0 %v4757
      %4823 = vmatprep.subr.mxu0 %v4760
      %4824 = vmatpush1.xpose.msra.mxu0 %v4759
      %4825 = vmatprep.subr.mxu0 %v4762
      %4826 = vmatpush1.xpose.msra.mxu0 %v4761
      %4827 = vmatprep.subr.mxu0 %v4764
      %4828 = vmatpush1.xpose.msra.mxu0 %v4763
      %4829 = vmatprep.subr.mxu0 %v4766
      %4830 = vmatpush1.xpose.msra.mxu0 %v4765
      %4831 = vmatprep.subr.mxu0 %v4768
      %4832 = vmatpush1.xpose.msra.mxu0 %v4767
      %4833 = vmatprep.subr.mxu0 %v4770
      %4834 = vmatpush1.xpose.msra.mxu0 %v4769
      %4835 = vmatprep.subr.mxu0 %v4772
      %4836 = vmatpush1.xpose.msra.mxu0 %v4771
      %4837 = vmatprep.subr.mxu0 %v4774
      %4838 = vmatpush1.xpose.msra.mxu0 %v4773
      %4839 = vmatprep.subr.mxu0 %v4776
      %4840 = vmatpush1.xpose.msra.mxu0 %v4775
      %4841 = vmatprep.subr.mxu0 %v4778
      %4842 = vmatpush1.xpose.msra.mxu0 %v4777
      %4843 = vmatprep.subr.mxu0 %v4780
      %4844 = vmatpush1.xpose.msra.mxu0 %v4779
      %4845 = vmatprep.subr.mxu0 %v4782
      %4846 = vmatpush1.xpose.msra.mxu0 %v4781
      %4847 = vmatprep.subr.mxu0 %v4784
      %4848 = vmatpush1.xpose.msra.mxu0 %v4783
      %4849 = vmatprep.mubr.f32.mxu0 %v644
      %4850 = vmatmul.mubr.f32.gmra.mrb[0].mxu0 %v642
      %v4851 = vpop.f32.mrb[0].mxu0
      %v4852 = vadd.f32 0.0, %v4851
      %v4853 = vpop.f32.mrb[0].mxu0
      %v4854 = vadd.f32 0.0, %v4853
      %4855 = vmatprep.mubr.f32.mxu0 %v650
      %4856 = vmatmul.mubr.f32.gmra.mrb[0].mxu0 %v648
      %v4857 = vpop.f32.mrb[0].mxu0
      %v4858 = vadd.f32 0.0, %v4857
      %v4859 = vpop.f32.mrb[0].mxu0
      %v4860 = vadd.f32 0.0, %v4859
      %4861 = vdwg.mxu0
      %4862 = vst [vmem:[%s197 + $0x40] sm:$0xff] %v4852
      %4863 = vst [vmem:[%s197 + $0x48] sm:$0xff] %v4854
      %4864 = vst [vmem:[%s197 + $0x50] sm:$0xff] %v4858
      %4865 = vst [vmem:[%s197 + $0x58] sm:$0xff] %v4860
      %4866 = vxpose.xlu0.b32.start [1/16] %v676, 128
      %4867 = vxpose.xlu0.b32.cont [2/16] %v678, 128
      %4868 = vxpose.xlu0.b32.cont [3/16] 0.0, 128
      %4869 = vxpose.xlu0.b32.cont [4/16] 0.0, 128
      %4870 = vxpose.xlu0.b32.cont [5/16] 0.0, 128
      %4871 = vxpose.xlu0.b32.cont [6/16] 0.0, 128
      %4872 = vxpose.xlu0.b32.cont [7/16] 0.0, 128
      %4873 = vxpose.xlu0.b32.cont [8/16] 0.0, 128
      %4874 = vxpose.xlu0.b32.cont [9/16] 0.0, 128
      %4875 = vxpose.xlu0.b32.cont [10/16] 0.0, 128
      %4876 = vxpose.xlu0.b32.cont [11/16] 0.0, 128
      %4877 = vxpose.xlu0.b32.cont [12/16] 0.0, 128
      %4878 = vxpose.xlu0.b32.cont [13/16] 0.0, 128
      %4879 = vxpose.xlu0.b32.cont [14/16] 0.0, 128
      %4880 = vxpose.xlu0.b32.cont [15/16] 0.0, 128
      %4881 = vxpose.xlu0.b32.end [16/16] 0.0, 128
      %v4882 = vpop.trf.xlu0
      %v4883 = vpop.trf.xlu0
      %v4884 = vpop.trf.xlu0
      %v4885 = vpop.trf.xlu0
      %v4886 = vpop.trf.xlu0
      %v4887 = vpop.trf.xlu0
      %v4888 = vpop.trf.xlu0
      %v4889 = vpop.trf.xlu0
      %v4890 = vpop.trf.xlu0
      %v4891 = vpop.trf.xlu0
      %v4892 = vpop.trf.xlu0
      %v4893 = vpop.trf.xlu0
      %v4894 = vpop.trf.xlu0
      %v4895 = vpop.trf.xlu0
      %v4896 = vpop.trf.xlu0
      %v4897 = vpop.trf.xlu0
      %4898 = vxpose.xlu0.b32.start [1/16] %v677, 128
      %4899 = vxpose.xlu0.b32.cont [2/16] %v679, 128
      %4900 = vxpose.xlu0.b32.cont [3/16] 0.0, 128
      %4901 = vxpose.xlu0.b32.cont [4/16] 0.0, 128
      %4902 = vxpose.xlu0.b32.cont [5/16] 0.0, 128
      %4903 = vxpose.xlu0.b32.cont [6/16] 0.0, 128
      %4904 = vxpose.xlu0.b32.cont [7/16] 0.0, 128
      %4905 = vxpose.xlu0.b32.cont [8/16] 0.0, 128
      %4906 = vxpose.xlu0.b32.cont [9/16] 0.0, 128
      %4907 = vxpose.xlu0.b32.cont [10/16] 0.0, 128
      %4908 = vxpose.xlu0.b32.cont [11/16] 0.0, 128
      %4909 = vxpose.xlu0.b32.cont [12/16] 0.0, 128
      %4910 = vxpose.xlu0.b32.cont [13/16] 0.0, 128
      %4911 = vxpose.xlu0.b32.cont [14/16] 0.0, 128
      %4912 = vxpose.xlu0.b32.cont [15/16] 0.0, 128
      %4913 = vxpose.xlu0.b32.end [16/16] 0.0, 128
      %v4914 = vpop.trf.xlu0
      %v4915 = vpop.trf.xlu0
      %v4916 = vpop.trf.xlu0
      %v4917 = vpop.trf.xlu0
      %v4918 = vpop.trf.xlu0
      %v4919 = vpop.trf.xlu0
      %v4920 = vpop.trf.xlu0
      %v4921 = vpop.trf.xlu0
      %v4922 = vpop.trf.xlu0
      %v4923 = vpop.trf.xlu0
      %v4924 = vpop.trf.xlu0
      %v4925 = vpop.trf.xlu0
      %v4926 = vpop.trf.xlu0
      %v4927 = vpop.trf.xlu0
      %v4928 = vpop.trf.xlu0
      %v4929 = vpop.trf.xlu0
      %v4931 = vsel %vm744, %v4882, 0
      %v4934 = vsel %vm744, %v4883, 0
      %v4937 = vsel %vm744, %v4884, 0
      %v4940 = vsel %vm744, %v4885, 0
      %v4943 = vsel %vm744, %v4886, 0
      %v4946 = vsel %vm744, %v4887, 0
      %v4949 = vsel %vm744, %v4888, 0
      %v4952 = vsel %vm744, %v4889, 0
      %v4955 = vsel %vm744, %v4890, 0
      %v4958 = vsel %vm744, %v4891, 0
      %v4961 = vsel %vm744, %v4892, 0
      %v4964 = vsel %vm744, %v4893, 0
      %v4967 = vsel %vm744, %v4894, 0
      %v4970 = vsel %vm744, %v4895, 0
      %v4973 = vsel %vm744, %v4896, 0
      %v4976 = vsel %vm744, %v4897, 0
      %v4979 = vsel %vm744, %v4914, 0
      %v4982 = vsel %vm744, %v4915, 0
      %v4985 = vsel %vm744, %v4916, 0
      %v4988 = vsel %vm744, %v4917, 0
      %v4991 = vsel %vm744, %v4918, 0
      %v4994 = vsel %vm744, %v4919, 0
      %v4997 = vsel %vm744, %v4920, 0
      %v5000 = vsel %vm744, %v4921, 0
      %v5003 = vsel %vm744, %v4922, 0
      %v5006 = vsel %vm744, %v4923, 0
      %v5009 = vsel %vm744, %v4924, 0
      %v5012 = vsel %vm744, %v4925, 0
      %v5015 = vsel %vm744, %v4926, 0
      %v5018 = vsel %vm744, %v4927, 0
      %v5021 = vsel %vm744, %v4928, 0
      %v5024 = vsel %vm744, %v4929, 0
      %5026 = vmatprep.subr.mxu0 %v560
      %5027 = vmatpush1.msra.mxu0 %v558
      %5028 = vmatprep.subr.mxu0 %v566
      %5029 = vmatpush1.msra.mxu0 %v564
      %5030 = vmatprep.subr.mxu0 0.0
      %5031 = vmatpush1.msra.mxu0 0.0
      %5032 = vmatprep.subr.mxu0 0.0
      %5033 = vmatpush1.msra.mxu0 0.0
      %5034 = vmatprep.subr.mxu0 0.0
      %5035 = vmatpush1.msra.mxu0 0.0
      %5036 = vmatprep.subr.mxu0 0.0
      %5037 = vmatpush1.msra.mxu0 0.0
      %5038 = vmatprep.subr.mxu0 0.0
      %5039 = vmatpush1.msra.mxu0 0.0
      %5040 = vmatprep.subr.mxu0 0.0
      %5041 = vmatpush1.msra.mxu0 0.0
      %5042 = vmatprep.subr.mxu0 0.0
      %5043 = vmatpush1.msra.mxu0 0.0
      %5044 = vmatprep.subr.mxu0 0.0
      %5045 = vmatpush1.msra.mxu0 0.0
      %5046 = vmatprep.subr.mxu0 0.0
      %5047 = vmatpush1.msra.mxu0 0.0
      %5048 = vmatprep.subr.mxu0 0.0
      %5049 = vmatpush1.msra.mxu0 0.0
      %5050 = vmatprep.subr.mxu0 0.0
      %5051 = vmatpush1.msra.mxu0 0.0
      %5052 = vmatprep.subr.mxu0 0.0
      %5053 = vmatpush1.msra.mxu0 0.0
      %5054 = vmatprep.subr.mxu0 0.0
      %5055 = vmatpush1.msra.mxu0 0.0
      %5056 = vmatprep.subr.mxu0 0.0
      %5057 = vmatpush1.msra.mxu0 0.0
      %5058 = vmatprep.subr.mxu0 0.0
      %5059 = vmatpush1.msra.mxu0 0.0
      %5060 = vmatprep.subr.mxu0 0.0
      %5061 = vmatpush1.msra.mxu0 0.0
      %5062 = vmatprep.subr.mxu0 0.0
      %5063 = vmatpush1.msra.mxu0 0.0
      %5064 = vmatprep.subr.mxu0 0.0
      %5065 = vmatpush1.msra.mxu0 0.0
      %5066 = vmatprep.subr.mxu0 0.0
      %5067 = vmatpush1.msra.mxu0 0.0
      %5068 = vmatprep.subr.mxu0 0.0
      %5069 = vmatpush1.msra.mxu0 0.0
      %5070 = vmatprep.subr.mxu0 0.0
      %5071 = vmatpush1.msra.mxu0 0.0
      %5072 = vmatprep.subr.mxu0 0.0
      %5073 = vmatpush1.msra.mxu0 0.0
      %5074 = vmatprep.subr.mxu0 0.0
      %5075 = vmatpush1.msra.mxu0 0.0
      %5076 = vmatprep.subr.mxu0 0.0
      %5077 = vmatpush1.msra.mxu0 0.0
      %5078 = vmatprep.subr.mxu0 0.0
      %5079 = vmatpush1.msra.mxu0 0.0
      %5080 = vmatprep.subr.mxu0 0.0
      %5081 = vmatpush1.msra.mxu0 0.0
      %5082 = vmatprep.subr.mxu0 0.0
      %5083 = vmatpush1.msra.mxu0 0.0
      %5084 = vmatprep.subr.mxu0 0.0
      %5085 = vmatpush1.msra.mxu0 0.0
      %5086 = vmatprep.subr.mxu0 0.0
      %5087 = vmatpush1.msra.mxu0 0.0
      %5088 = vmatprep.subr.mxu0 0.0
      %5089 = vmatpush1.msra.mxu0 0.0
      %5090 = vmatprep.mubr.f32.mxu0 0.0
      %5091 = vmatmul.mubr.f32.gmra.mrb[0].mxu0 %v4931
      %v5092 = vpop.f32.mrb[0].mxu0
      %v5093 = vadd.f32 0.0, %v5092
      %v5094 = vpop.f32.mrb[0].mxu0
      %v5095 = vadd.f32 0.0, %v5094
      %5096 = vmatprep.mubr.f32.mxu0 0.0
      %5097 = vmatmul.mubr.f32.gmra.mrb[0].mxu0 %v4934
      %v5098 = vpop.f32.mrb[0].mxu0
      %v5099 = vadd.f32 0.0, %v5098
      %v5100 = vpop.f32.mrb[0].mxu0
      %v5101 = vadd.f32 0.0, %v5100
      %5102 = vmatprep.mubr.f32.mxu0 0.0
      %5103 = vmatmul.mubr.f32.gmra.mrb[0].mxu0 %v4937
      %v5104 = vpop.f32.mrb[0].mxu0
      %v5105 = vadd.f32 0.0, %v5104
      %v5106 = vpop.f32.mrb[0].mxu0
      %v5107 = vadd.f32 0.0, %v5106
      %5108 = vmatprep.mubr.f32.mxu0 0.0
      %5109 = vmatmul.mubr.f32.gmra.mrb[0].mxu0 %v4940
      %v5110 = vpop.f32.mrb[0].mxu0
      %v5111 = vadd.f32 0.0, %v5110
      %v5112 = vpop.f32.mrb[0].mxu0
      %v5113 = vadd.f32 0.0, %v5112
      %5114 = vmatprep.mubr.f32.mxu0 0.0
      %5115 = vmatmul.mubr.f32.gmra.mrb[0].mxu0 %v4943
      %v5116 = vpop.f32.mrb[0].mxu0
      %v5117 = vadd.f32 0.0, %v5116
      %v5118 = vpop.f32.mrb[0].mxu0
      %v5119 = vadd.f32 0.0, %v5118
      %5120 = vmatprep.mubr.f32.mxu0 0.0
      %5121 = vmatmul.mubr.f32.gmra.mrb[0].mxu0 %v4946
      %v5122 = vpop.f32.mrb[0].mxu0
      %v5123 = vadd.f32 0.0, %v5122
      %v5124 = vpop.f32.mrb[0].mxu0
      %v5125 = vadd.f32 0.0, %v5124
      %5126 = vmatprep.mubr.f32.mxu0 0.0
      %5127 = vmatmul.mubr.f32.gmra.mrb[0].mxu0 %v4949
      %v5128 = vpop.f32.mrb[0].mxu0
      %v5129 = vadd.f32 0.0, %v5128
      %v5130 = vpop.f32.mrb[0].mxu0
      %v5131 = vadd.f32 0.0, %v5130
      %5132 = vmatprep.mubr.f32.mxu0 0.0
      %5133 = vmatmul.mubr.f32.gmra.mrb[0].mxu0 %v4952
      %v5134 = vpop.f32.mrb[0].mxu0
      %v5135 = vadd.f32 0.0, %v5134
      %v5136 = vpop.f32.mrb[0].mxu0
      %v5137 = vadd.f32 0.0, %v5136
      %5138 = vmatprep.mubr.f32.mxu0 0.0
      %5139 = vmatmul.mubr.f32.gmra.mrb[0].mxu0 %v4955
      %v5140 = vpop.f32.mrb[0].mxu0
      %v5141 = vadd.f32 0.0, %v5140
      %v5142 = vpop.f32.mrb[0].mxu0
      %v5143 = vadd.f32 0.0, %v5142
      %5144 = vmatprep.mubr.f32.mxu0 0.0
      %5145 = vmatmul.mubr.f32.gmra.mrb[0].mxu0 %v4958
      %v5146 = vpop.f32.mrb[0].mxu0
      %v5147 = vadd.f32 0.0, %v5146
      %v5148 = vpop.f32.mrb[0].mxu0
      %v5149 = vadd.f32 0.0, %v5148
      %5150 = vmatprep.mubr.f32.mxu0 0.0
      %5151 = vmatmul.mubr.f32.gmra.mrb[0].mxu0 %v4961
      %v5152 = vpop.f32.mrb[0].mxu0
      %v5153 = vadd.f32 0.0, %v5152
      %v5154 = vpop.f32.mrb[0].mxu0
      %v5155 = vadd.f32 0.0, %v5154
      %5156 = vmatprep.mubr.f32.mxu0 0.0
      %5157 = vmatmul.mubr.f32.gmra.mrb[0].mxu0 %v4964
      %v5158 = vpop.f32.mrb[0].mxu0
      %v5159 = vadd.f32 0.0, %v5158
      %v5160 = vpop.f32.mrb[0].mxu0
      %v5161 = vadd.f32 0.0, %v5160
      %5162 = vmatprep.mubr.f32.mxu0 0.0
      %5163 = vmatmul.mubr.f32.gmra.mrb[0].mxu0 %v4967
      %v5164 = vpop.f32.mrb[0].mxu0
      %v5165 = vadd.f32 0.0, %v5164
      %v5166 = vpop.f32.mrb[0].mxu0
      %v5167 = vadd.f32 0.0, %v5166
      %5168 = vmatprep.mubr.f32.mxu0 0.0
      %5169 = vmatmul.mubr.f32.gmra.mrb[0].mxu0 %v4970
      %v5170 = vpop.f32.mrb[0].mxu0
      %v5171 = vadd.f32 0.0, %v5170
      %v5172 = vpop.f32.mrb[0].mxu0
      %v5173 = vadd.f32 0.0, %v5172
      %5174 = vmatprep.mubr.f32.mxu0 0.0
      %5175 = vmatmul.mubr.f32.gmra.mrb[0].mxu0 %v4973
      %v5176 = vpop.f32.mrb[0].mxu0
      %v5177 = vadd.f32 0.0, %v5176
      %v5178 = vpop.f32.mrb[0].mxu0
      %v5179 = vadd.f32 0.0, %v5178
      %5180 = vmatprep.mubr.f32.mxu0 0.0
      %5181 = vmatmul.mubr.f32.gmra.mrb[0].mxu0 %v4976
      %v5182 = vpop.f32.mrb[0].mxu0
      %v5183 = vadd.f32 0.0, %v5182
      %v5184 = vpop.f32.mrb[0].mxu0
      %v5185 = vadd.f32 0.0, %v5184
      %5186 = vmatprep.mubr.f32.mxu0 0.0
      %5187 = vmatmul.mubr.f32.gmra.mrb[0].mxu0 %v4979
      %v5188 = vpop.f32.mrb[0].mxu0
      %v5189 = vadd.f32 0.0, %v5188
      %v5190 = vpop.f32.mrb[0].mxu0
      %v5191 = vadd.f32 0.0, %v5190
      %5192 = vmatprep.mubr.f32.mxu0 0.0
      %5193 = vmatmul.mubr.f32.gmra.mrb[0].mxu0 %v4982
      %v5194 = vpop.f32.mrb[0].mxu0
      %v5195 = vadd.f32 0.0, %v5194
      %v5196 = vpop.f32.mrb[0].mxu0
      %v5197 = vadd.f32 0.0, %v5196
      %5198 = vmatprep.mubr.f32.mxu0 0.0
      %5199 = vmatmul.mubr.f32.gmra.mrb[0].mxu0 %v4985
      %v5200 = vpop.f32.mrb[0].mxu0
      %v5201 = vadd.f32 0.0, %v5200
      %v5202 = vpop.f32.mrb[0].mxu0
      %v5203 = vadd.f32 0.0, %v5202
      %5204 = vmatprep.mubr.f32.mxu0 0.0
      %5205 = vmatmul.mubr.f32.gmra.mrb[0].mxu0 %v4988
      %v5206 = vpop.f32.mrb[0].mxu0
      %v5207 = vadd.f32 0.0, %v5206
      %v5208 = vpop.f32.mrb[0].mxu0
      %v5209 = vadd.f32 0.0, %v5208
      %5210 = vmatprep.mubr.f32.mxu0 0.0
      %5211 = vmatmul.mubr.f32.gmra.mrb[0].mxu0 %v4991
      %v5212 = vpop.f32.mrb[0].mxu0
      %v5213 = vadd.f32 0.0, %v5212
      %v5214 = vpop.f32.mrb[0].mxu0
      %v5215 = vadd.f32 0.0, %v5214
      %5216 = vmatprep.mubr.f32.mxu0 0.0
      %5217 = vmatmul.mubr.f32.gmra.mrb[0].mxu0 %v4994
      %v5218 = vpop.f32.mrb[0].mxu0
      %v5219 = vadd.f32 0.0, %v5218
      %v5220 = vpop.f32.mrb[0].mxu0
      %v5221 = vadd.f32 0.0, %v5220
      %5222 = vmatprep.mubr.f32.mxu0 0.0
      %5223 = vmatmul.mubr.f32.gmra.mrb[0].mxu0 %v4997
      %v5224 = vpop.f32.mrb[0].mxu0
      %v5225 = vadd.f32 0.0, %v5224
      %v5226 = vpop.f32.mrb[0].mxu0
      %v5227 = vadd.f32 0.0, %v5226
      %5228 = vmatprep.mubr.f32.mxu0 0.0
      %5229 = vmatmul.mubr.f32.gmra.mrb[0].mxu0 %v5000
      %v5230 = vpop.f32.mrb[0].mxu0
      %v5231 = vadd.f32 0.0, %v5230
      %v5232 = vpop.f32.mrb[0].mxu0
      %v5233 = vadd.f32 0.0, %v5232
      %5234 = vmatprep.mubr.f32.mxu0 0.0
      %5235 = vmatmul.mubr.f32.gmra.mrb[0].mxu0 %v5003
      %v5236 = vpop.f32.mrb[0].mxu0
      %v5237 = vadd.f32 0.0, %v5236
      %v5238 = vpop.f32.mrb[0].mxu0
      %v5239 = vadd.f32 0.0, %v5238
      %5240 = vmatprep.mubr.f32.mxu0 0.0
      %5241 = vmatmul.mubr.f32.gmra.mrb[0].mxu0 %v5006
      %v5242 = vpop.f32.mrb[0].mxu0
      %v5243 = vadd.f32 0.0, %v5242
      %v5244 = vpop.f32.mrb[0].mxu0
      %v5245 = vadd.f32 0.0, %v5244
      %5246 = vmatprep.mubr.f32.mxu0 0.0
      %5247 = vmatmul.mubr.f32.gmra.mrb[0].mxu0 %v5009
      %v5248 = vpop.f32.mrb[0].mxu0
      %v5249 = vadd.f32 0.0, %v5248
      %v5250 = vpop.f32.mrb[0].mxu0
      %v5251 = vadd.f32 0.0, %v5250
      %5252 = vmatprep.mubr.f32.mxu0 0.0
      %5253 = vmatmul.mubr.f32.gmra.mrb[0].mxu0 %v5012
      %v5254 = vpop.f32.mrb[0].mxu0
      %v5255 = vadd.f32 0.0, %v5254
      %v5256 = vpop.f32.mrb[0].mxu0
      %v5257 = vadd.f32 0.0, %v5256
      %5258 = vmatprep.mubr.f32.mxu0 0.0
      %5259 = vmatmul.mubr.f32.gmra.mrb[0].mxu0 %v5015
      %v5260 = vpop.f32.mrb[0].mxu0
      %v5261 = vadd.f32 0.0, %v5260
      %v5262 = vpop.f32.mrb[0].mxu0
      %v5263 = vadd.f32 0.0, %v5262
      %5264 = vmatprep.mubr.f32.mxu0 0.0
      %5265 = vmatmul.mubr.f32.gmra.mrb[0].mxu0 %v5018
      %v5266 = vpop.f32.mrb[0].mxu0
      %v5267 = vadd.f32 0.0, %v5266
      %v5268 = vpop.f32.mrb[0].mxu0
      %v5269 = vadd.f32 0.0, %v5268
      %5270 = vmatprep.mubr.f32.mxu0 0.0
      %5271 = vmatmul.mubr.f32.gmra.mrb[0].mxu0 %v5021
      %v5272 = vpop.f32.mrb[0].mxu0
      %v5273 = vadd.f32 0.0, %v5272
      %v5274 = vpop.f32.mrb[0].mxu0
      %v5275 = vadd.f32 0.0, %v5274
      %5276 = vmatprep.mubr.f32.mxu0 0.0
      %5277 = vmatmul.mubr.f32.gmra.mrb[0].mxu0 %v5024
      %v5278 = vpop.f32.mrb[0].mxu0
      %v5279 = vadd.f32 0.0, %v5278
      %v5280 = vpop.f32.mrb[0].mxu0
      %v5281 = vadd.f32 0.0, %v5280
      %5282 = vdwg.mxu0
      %5283 = vxpose.xlu0.b32.start [1/16] %v558, 128
      %5284 = vxpose.xlu0.b32.cont [2/16] %v564, 128
      %5285 = vxpose.xlu0.b32.cont [3/16] 0.0, 128
      %5286 = vxpose.xlu0.b32.cont [4/16] 0.0, 128
      %5287 = vxpose.xlu0.b32.cont [5/16] 0.0, 128
      %5288 = vxpose.xlu0.b32.cont [6/16] 0.0, 128
      %5289 = vxpose.xlu0.b32.cont [7/16] 0.0, 128
      %5290 = vxpose.xlu0.b32.cont [8/16] 0.0, 128
      %5291 = vxpose.xlu0.b32.cont [9/16] 0.0, 128
      %5292 = vxpose.xlu0.b32.cont [10/16] 0.0, 128
      %5293 = vxpose.xlu0.b32.cont [11/16] 0.0, 128
      %5294 = vxpose.xlu0.b32.cont [12/16] 0.0, 128
      %5295 = vxpose.xlu0.b32.cont [13/16] 0.0, 128
      %5296 = vxpose.xlu0.b32.cont [14/16] 0.0, 128
      %5297 = vxpose.xlu0.b32.cont [15/16] 0.0, 128
      %5298 = vxpose.xlu0.b32.end [16/16] 0.0, 128
      %v5299 = vpop.trf.xlu0
      %v5300 = vpop.trf.xlu0
      %v5301 = vpop.trf.xlu0
      %v5302 = vpop.trf.xlu0
      %v5303 = vpop.trf.xlu0
      %v5304 = vpop.trf.xlu0
      %v5305 = vpop.trf.xlu0
      %v5306 = vpop.trf.xlu0
      %v5307 = vpop.trf.xlu0
      %v5308 = vpop.trf.xlu0
      %v5309 = vpop.trf.xlu0
      %v5310 = vpop.trf.xlu0
      %v5311 = vpop.trf.xlu0
      %v5312 = vpop.trf.xlu0
      %v5313 = vpop.trf.xlu0
      %v5314 = vpop.trf.xlu0
      %5315 = vxpose.xlu0.b32.start [1/16] %v560, 128
      %5316 = vxpose.xlu0.b32.cont [2/16] %v566, 128
      %5317 = vxpose.xlu0.b32.cont [3/16] 0.0, 128
      %5318 = vxpose.xlu0.b32.cont [4/16] 0.0, 128
      %5319 = vxpose.xlu0.b32.cont [5/16] 0.0, 128
      %5320 = vxpose.xlu0.b32.cont [6/16] 0.0, 128
      %5321 = vxpose.xlu0.b32.cont [7/16] 0.0, 128
      %5322 = vxpose.xlu0.b32.cont [8/16] 0.0, 128
      %5323 = vxpose.xlu0.b32.cont [9/16] 0.0, 128
      %5324 = vxpose.xlu0.b32.cont [10/16] 0.0, 128
      %5325 = vxpose.xlu0.b32.cont [11/16] 0.0, 128
      %5326 = vxpose.xlu0.b32.cont [12/16] 0.0, 128
      %5327 = vxpose.xlu0.b32.cont [13/16] 0.0, 128
      %5328 = vxpose.xlu0.b32.cont [14/16] 0.0, 128
      %5329 = vxpose.xlu0.b32.cont [15/16] 0.0, 128
      %5330 = vxpose.xlu0.b32.end [16/16] 0.0, 128
      %v5331 = vpop.trf.xlu0
      %v5332 = vpop.trf.xlu0
      %v5333 = vpop.trf.xlu0
      %v5334 = vpop.trf.xlu0
      %v5335 = vpop.trf.xlu0
      %v5336 = vpop.trf.xlu0
      %v5337 = vpop.trf.xlu0
      %v5338 = vpop.trf.xlu0
      %v5339 = vpop.trf.xlu0
      %v5340 = vpop.trf.xlu0
      %v5341 = vpop.trf.xlu0
      %v5342 = vpop.trf.xlu0
      %v5343 = vpop.trf.xlu0
      %v5344 = vpop.trf.xlu0
      %v5345 = vpop.trf.xlu0
      %v5346 = vpop.trf.xlu0
      %v5348 = vsel %vm744, %v5299, 0
      %v5351 = vsel %vm744, %v5300, 0
      %v5354 = vsel %vm744, %v5301, 0
      %v5357 = vsel %vm744, %v5302, 0
      %v5360 = vsel %vm744, %v5303, 0
      %v5363 = vsel %vm744, %v5304, 0
      %v5366 = vsel %vm744, %v5305, 0
      %v5369 = vsel %vm744, %v5306, 0
      %v5372 = vsel %vm744, %v5307, 0
      %v5375 = vsel %vm744, %v5308, 0
      %v5378 = vsel %vm744, %v5309, 0
      %v5381 = vsel %vm744, %v5310, 0
      %v5384 = vsel %vm744, %v5311, 0
      %v5387 = vsel %vm744, %v5312, 0
      %v5390 = vsel %vm744, %v5313, 0
      %v5393 = vsel %vm744, %v5314, 0
      %v5396 = vsel %vm744, %v5331, 0
      %v5399 = vsel %vm744, %v5332, 0
      %v5402 = vsel %vm744, %v5333, 0
      %v5405 = vsel %vm744, %v5334, 0
      %v5408 = vsel %vm744, %v5335, 0
      %v5411 = vsel %vm744, %v5336, 0
      %v5414 = vsel %vm744, %v5337, 0
      %v5417 = vsel %vm744, %v5338, 0
      %v5420 = vsel %vm744, %v5339, 0
      %v5423 = vsel %vm744, %v5340, 0
      %v5426 = vsel %vm744, %v5341, 0
      %v5429 = vsel %vm744, %v5342, 0
      %v5432 = vsel %vm744, %v5343, 0
      %v5435 = vsel %vm744, %v5344, 0
      %v5438 = vsel %vm744, %v5345, 0
      %v5441 = vsel %vm744, %v5346, 0
      %5443 = vmatprep.subr.mxu0 %v608
      %5444 = vmatpush1.msra.mxu0 %v606
      %5445 = vmatprep.subr.mxu0 %v614
      %5446 = vmatpush1.msra.mxu0 %v612
      %5447 = vmatprep.subr.mxu0 0.0
      %5448 = vmatpush1.msra.mxu0 0.0
      %5449 = vmatprep.subr.mxu0 0.0
      %5450 = vmatpush1.msra.mxu0 0.0
      %5451 = vmatprep.subr.mxu0 0.0
      %5452 = vmatpush1.msra.mxu0 0.0
      %5453 = vmatprep.subr.mxu0 0.0
      %5454 = vmatpush1.msra.mxu0 0.0
      %5455 = vmatprep.subr.mxu0 0.0
      %5456 = vmatpush1.msra.mxu0 0.0
      %5457 = vmatprep.subr.mxu0 0.0
      %5458 = vmatpush1.msra.mxu0 0.0
      %5459 = vmatprep.subr.mxu0 0.0
      %5460 = vmatpush1.msra.mxu0 0.0
      %5461 = vmatprep.subr.mxu0 0.0
      %5462 = vmatpush1.msra.mxu0 0.0
      %5463 = vmatprep.subr.mxu0 0.0
      %5464 = vmatpush1.msra.mxu0 0.0
      %5465 = vmatprep.subr.mxu0 0.0
      %5466 = vmatpush1.msra.mxu0 0.0
      %5467 = vmatprep.subr.mxu0 0.0
      %5468 = vmatpush1.msra.mxu0 0.0
      %5469 = vmatprep.subr.mxu0 0.0
      %5470 = vmatpush1.msra.mxu0 0.0
      %5471 = vmatprep.subr.mxu0 0.0
      %5472 = vmatpush1.msra.mxu0 0.0
      %5473 = vmatprep.subr.mxu0 0.0
      %5474 = vmatpush1.msra.mxu0 0.0
      %5475 = vmatprep.subr.mxu0 0.0
      %5476 = vmatpush1.msra.mxu0 0.0
      %5477 = vmatprep.subr.mxu0 0.0
      %5478 = vmatpush1.msra.mxu0 0.0
      %5479 = vmatprep.subr.mxu0 0.0
      %5480 = vmatpush1.msra.mxu0 0.0
      %5481 = vmatprep.subr.mxu0 0.0
      %5482 = vmatpush1.msra.mxu0 0.0
      %5483 = vmatprep.subr.mxu0 0.0
      %5484 = vmatpush1.msra.mxu0 0.0
      %5485 = vmatprep.subr.mxu0 0.0
      %5486 = vmatpush1.msra.mxu0 0.0
      %5487 = vmatprep.subr.mxu0 0.0
      %5488 = vmatpush1.msra.mxu0 0.0
      %5489 = vmatprep.subr.mxu0 0.0
      %5490 = vmatpush1.msra.mxu0 0.0
      %5491 = vmatprep.subr.mxu0 0.0
      %5492 = vmatpush1.msra.mxu0 0.0
      %5493 = vmatprep.subr.mxu0 0.0
      %5494 = vmatpush1.msra.mxu0 0.0
      %5495 = vmatprep.subr.mxu0 0.0
      %5496 = vmatpush1.msra.mxu0 0.0
      %5497 = vmatprep.subr.mxu0 0.0
      %5498 = vmatpush1.msra.mxu0 0.0
      %5499 = vmatprep.subr.mxu0 0.0
      %5500 = vmatpush1.msra.mxu0 0.0
      %5501 = vmatprep.subr.mxu0 0.0
      %5502 = vmatpush1.msra.mxu0 0.0
      %5503 = vmatprep.subr.mxu0 0.0
      %5504 = vmatpush1.msra.mxu0 0.0
      %5505 = vmatprep.subr.mxu0 0.0
      %5506 = vmatpush1.msra.mxu0 0.0
      %5507 = vmatprep.mubr.f32.mxu0 0.0
      %5508 = vmatmul.mubr.f32.gmra.mrb[0].mxu0 %v5348
      %v5509 = vpop.f32.mrb[0].mxu0
      %v5510 = vadd.f32 %v5093, %v5509
      %v5511 = vpop.f32.mrb[0].mxu0
      %v5512 = vadd.f32 %v5095, %v5511
      %5513 = vmatprep.mubr.f32.mxu0 0.0
      %5514 = vmatmul.mubr.f32.gmra.mrb[0].mxu0 %v5351
      %v5515 = vpop.f32.mrb[0].mxu0
      %v5516 = vadd.f32 %v5099, %v5515
      %v5517 = vpop.f32.mrb[0].mxu0
      %v5518 = vadd.f32 %v5101, %v5517
      %5519 = vmatprep.mubr.f32.mxu0 0.0
      %5520 = vmatmul.mubr.f32.gmra.mrb[0].mxu0 %v5354
      %v5521 = vpop.f32.mrb[0].mxu0
      %v5522 = vadd.f32 %v5105, %v5521
      %v5523 = vpop.f32.mrb[0].mxu0
      %v5524 = vadd.f32 %v5107, %v5523
      %5525 = vmatprep.mubr.f32.mxu0 0.0
      %5526 = vmatmul.mubr.f32.gmra.mrb[0].mxu0 %v5357
      %v5527 = vpop.f32.mrb[0].mxu0
      %v5528 = vadd.f32 %v5111, %v5527
      %v5529 = vpop.f32.mrb[0].mxu0
      %v5530 = vadd.f32 %v5113, %v5529
      %5531 = vmatprep.mubr.f32.mxu0 0.0
      %5532 = vmatmul.mubr.f32.gmra.mrb[0].mxu0 %v5360
      %v5533 = vpop.f32.mrb[0].mxu0
      %v5534 = vadd.f32 %v5117, %v5533
      %v5535 = vpop.f32.mrb[0].mxu0
      %v5536 = vadd.f32 %v5119, %v5535
      %5537 = vmatprep.mubr.f32.mxu0 0.0
      %5538 = vmatmul.mubr.f32.gmra.mrb[0].mxu0 %v5363
      %v5539 = vpop.f32.mrb[0].mxu0
      %v5540 = vadd.f32 %v5123, %v5539
      %v5541 = vpop.f32.mrb[0].mxu0
      %v5542 = vadd.f32 %v5125, %v5541
      %5543 = vmatprep.mubr.f32.mxu0 0.0
      %5544 = vmatmul.mubr.f32.gmra.mrb[0].mxu0 %v5366
      %v5545 = vpop.f32.mrb[0].mxu0
      %v5546 = vadd.f32 %v5129, %v5545
      %v5547 = vpop.f32.mrb[0].mxu0
      %v5548 = vadd.f32 %v5131, %v5547
      %5549 = vmatprep.mubr.f32.mxu0 0.0
      %5550 = vmatmul.mubr.f32.gmra.mrb[0].mxu0 %v5369
      %v5551 = vpop.f32.mrb[0].mxu0
      %v5552 = vadd.f32 %v5135, %v5551
      %v5553 = vpop.f32.mrb[0].mxu0
      %v5554 = vadd.f32 %v5137, %v5553
      %5555 = vmatprep.mubr.f32.mxu0 0.0
      %5556 = vmatmul.mubr.f32.gmra.mrb[0].mxu0 %v5372
      %v5557 = vpop.f32.mrb[0].mxu0
      %v5558 = vadd.f32 %v5141, %v5557
      %v5559 = vpop.f32.mrb[0].mxu0
      %v5560 = vadd.f32 %v5143, %v5559
      %5561 = vmatprep.mubr.f32.mxu0 0.0
      %5562 = vmatmul.mubr.f32.gmra.mrb[0].mxu0 %v5375
      %v5563 = vpop.f32.mrb[0].mxu0
      %v5564 = vadd.f32 %v5147, %v5563
      %v5565 = vpop.f32.mrb[0].mxu0
      %v5566 = vadd.f32 %v5149, %v5565
      %5567 = vmatprep.mubr.f32.mxu0 0.0
      %5568 = vmatmul.mubr.f32.gmra.mrb[0].mxu0 %v5378
      %v5569 = vpop.f32.mrb[0].mxu0
      %v5570 = vadd.f32 %v5153, %v5569
      %v5571 = vpop.f32.mrb[0].mxu0
      %v5572 = vadd.f32 %v5155, %v5571
      %5573 = vmatprep.mubr.f32.mxu0 0.0
      %5574 = vmatmul.mubr.f32.gmra.mrb[0].mxu0 %v5381
      %v5575 = vpop.f32.mrb[0].mxu0
      %v5576 = vadd.f32 %v5159, %v5575
      %v5577 = vpop.f32.mrb[0].mxu0
      %v5578 = vadd.f32 %v5161, %v5577
      %5579 = vmatprep.mubr.f32.mxu0 0.0
      %5580 = vmatmul.mubr.f32.gmra.mrb[0].mxu0 %v5384
      %v5581 = vpop.f32.mrb[0].mxu0
      %v5582 = vadd.f32 %v5165, %v5581
      %v5583 = vpop.f32.mrb[0].mxu0
      %v5584 = vadd.f32 %v5167, %v5583
      %5585 = vmatprep.mubr.f32.mxu0 0.0
      %5586 = vmatmul.mubr.f32.gmra.mrb[0].mxu0 %v5387
      %v5587 = vpop.f32.mrb[0].mxu0
      %v5588 = vadd.f32 %v5171, %v5587
      %v5589 = vpop.f32.mrb[0].mxu0
      %v5590 = vadd.f32 %v5173, %v5589
      %5591 = vmatprep.mubr.f32.mxu0 0.0
      %5592 = vmatmul.mubr.f32.gmra.mrb[0].mxu0 %v5390
      %v5593 = vpop.f32.mrb[0].mxu0
      %v5594 = vadd.f32 %v5177, %v5593
      %v5595 = vpop.f32.mrb[0].mxu0
      %v5596 = vadd.f32 %v5179, %v5595
      %5597 = vmatprep.mubr.f32.mxu0 0.0
      %5598 = vmatmul.mubr.f32.gmra.mrb[0].mxu0 %v5393
      %v5599 = vpop.f32.mrb[0].mxu0
      %v5600 = vadd.f32 %v5183, %v5599
      %v5601 = vpop.f32.mrb[0].mxu0
      %v5602 = vadd.f32 %v5185, %v5601
      %5603 = vmatprep.mubr.f32.mxu0 0.0
      %5604 = vmatmul.mubr.f32.gmra.mrb[0].mxu0 %v5396
      %v5605 = vpop.f32.mrb[0].mxu0
      %v5606 = vadd.f32 %v5189, %v5605
      %v5607 = vpop.f32.mrb[0].mxu0
      %v5608 = vadd.f32 %v5191, %v5607
      %5609 = vmatprep.mubr.f32.mxu0 0.0
      %5610 = vmatmul.mubr.f32.gmra.mrb[0].mxu0 %v5399
      %v5611 = vpop.f32.mrb[0].mxu0
      %v5612 = vadd.f32 %v5195, %v5611
      %v5613 = vpop.f32.mrb[0].mxu0
      %v5614 = vadd.f32 %v5197, %v5613
      %5615 = vmatprep.mubr.f32.mxu0 0.0
      %5616 = vmatmul.mubr.f32.gmra.mrb[0].mxu0 %v5402
      %v5617 = vpop.f32.mrb[0].mxu0
      %v5618 = vadd.f32 %v5201, %v5617
      %v5619 = vpop.f32.mrb[0].mxu0
      %v5620 = vadd.f32 %v5203, %v5619
      %5621 = vmatprep.mubr.f32.mxu0 0.0
      %5622 = vmatmul.mubr.f32.gmra.mrb[0].mxu0 %v5405
      %v5623 = vpop.f32.mrb[0].mxu0
      %v5624 = vadd.f32 %v5207, %v5623
      %v5625 = vpop.f32.mrb[0].mxu0
      %v5626 = vadd.f32 %v5209, %v5625
      %5627 = vmatprep.mubr.f32.mxu0 0.0
      %5628 = vmatmul.mubr.f32.gmra.mrb[0].mxu0 %v5408
      %v5629 = vpop.f32.mrb[0].mxu0
      %v5630 = vadd.f32 %v5213, %v5629
      %v5631 = vpop.f32.mrb[0].mxu0
      %v5632 = vadd.f32 %v5215, %v5631
      %5633 = vmatprep.mubr.f32.mxu0 0.0
      %5634 = vmatmul.mubr.f32.gmra.mrb[0].mxu0 %v5411
      %v5635 = vpop.f32.mrb[0].mxu0
      %v5636 = vadd.f32 %v5219, %v5635
      %v5637 = vpop.f32.mrb[0].mxu0
      %v5638 = vadd.f32 %v5221, %v5637
      %5639 = vmatprep.mubr.f32.mxu0 0.0
      %5640 = vmatmul.mubr.f32.gmra.mrb[0].mxu0 %v5414
      %v5641 = vpop.f32.mrb[0].mxu0
      %v5642 = vadd.f32 %v5225, %v5641
      %v5643 = vpop.f32.mrb[0].mxu0
      %v5644 = vadd.f32 %v5227, %v5643
      %5645 = vmatprep.mubr.f32.mxu0 0.0
      %5646 = vmatmul.mubr.f32.gmra.mrb[0].mxu0 %v5417
      %v5647 = vpop.f32.mrb[0].mxu0
      %v5648 = vadd.f32 %v5231, %v5647
      %v5649 = vpop.f32.mrb[0].mxu0
      %v5650 = vadd.f32 %v5233, %v5649
      %5651 = vmatprep.mubr.f32.mxu0 0.0
      %5652 = vmatmul.mubr.f32.gmra.mrb[0].mxu0 %v5420
      %v5653 = vpop.f32.mrb[0].mxu0
      %v5654 = vadd.f32 %v5237, %v5653
      %v5655 = vpop.f32.mrb[0].mxu0
      %v5656 = vadd.f32 %v5239, %v5655
      %5657 = vmatprep.mubr.f32.mxu0 0.0
      %5658 = vmatmul.mubr.f32.gmra.mrb[0].mxu0 %v5423
      %v5659 = vpop.f32.mrb[0].mxu0
      %v5660 = vadd.f32 %v5243, %v5659
      %v5661 = vpop.f32.mrb[0].mxu0
      %v5662 = vadd.f32 %v5245, %v5661
      %5663 = vmatprep.mubr.f32.mxu0 0.0
      %5664 = vmatmul.mubr.f32.gmra.mrb[0].mxu0 %v5426
      %v5665 = vpop.f32.mrb[0].mxu0
      %v5666 = vadd.f32 %v5249, %v5665
      %v5667 = vpop.f32.mrb[0].mxu0
      %v5668 = vadd.f32 %v5251, %v5667
      %5669 = vmatprep.mubr.f32.mxu0 0.0
      %5670 = vmatmul.mubr.f32.gmra.mrb[0].mxu0 %v5429
      %v5671 = vpop.f32.mrb[0].mxu0
      %v5672 = vadd.f32 %v5255, %v5671
      %v5673 = vpop.f32.mrb[0].mxu0
      %v5674 = vadd.f32 %v5257, %v5673
      %5675 = vmatprep.mubr.f32.mxu0 0.0
      %5676 = vmatmul.mubr.f32.gmra.mrb[0].mxu0 %v5432
      %v5677 = vpop.f32.mrb[0].mxu0
      %v5678 = vadd.f32 %v5261, %v5677
      %v5679 = vpop.f32.mrb[0].mxu0
      %v5680 = vadd.f32 %v5263, %v5679
      %5681 = vmatprep.mubr.f32.mxu0 0.0
      %5682 = vmatmul.mubr.f32.gmra.mrb[0].mxu0 %v5435
      %v5683 = vpop.f32.mrb[0].mxu0
      %v5684 = vadd.f32 %v5267, %v5683
      %v5685 = vpop.f32.mrb[0].mxu0
      %v5686 = vadd.f32 %v5269, %v5685
      %5687 = vmatprep.mubr.f32.mxu0 0.0
      %5688 = vmatmul.mubr.f32.gmra.mrb[0].mxu0 %v5438
      %v5689 = vpop.f32.mrb[0].mxu0
      %v5690 = vadd.f32 %v5273, %v5689
      %v5691 = vpop.f32.mrb[0].mxu0
      %v5692 = vadd.f32 %v5275, %v5691
      %5693 = vmatprep.mubr.f32.mxu0 0.0
      %5694 = vmatmul.mubr.f32.gmra.mrb[0].mxu0 %v5441
      %v5695 = vpop.f32.mrb[0].mxu0
      %v5696 = vadd.f32 %v5279, %v5695
      %v5697 = vpop.f32.mrb[0].mxu0
      %v5698 = vadd.f32 %v5281, %v5697
      %5699 = vdwg.mxu0
      %v5700 = vmax.f32 %v5510, %v5512
      %5701 = vmax.xlane.f32.xlu0 %v5700
      %v5702 = vpop.xlane.xlu0 %5701
      %v5703 = vmax.f32 %v5516, %v5518
      %5704 = vmax.xlane.f32.xlu0 %v5703
      %v5705 = vpop.xlane.xlu0 %5704
      %v5706 = vmax.f32 %v5522, %v5524
      %5707 = vmax.xlane.f32.xlu0 %v5706
      %v5708 = vpop.xlane.xlu0 %5707
      %v5709 = vmax.f32 %v5528, %v5530
      %5710 = vmax.xlane.f32.xlu0 %v5709
      %v5711 = vpop.xlane.xlu0 %5710
      %v5712 = vmax.f32 %v5534, %v5536
      %5713 = vmax.xlane.f32.xlu0 %v5712
      %v5714 = vpop.xlane.xlu0 %5713
      %v5715 = vmax.f32 %v5540, %v5542
      %5716 = vmax.xlane.f32.xlu0 %v5715
      %v5717 = vpop.xlane.xlu0 %5716
      %v5718 = vmax.f32 %v5546, %v5548
      %5719 = vmax.xlane.f32.xlu0 %v5718
      %v5720 = vpop.xlane.xlu0 %5719
      %v5721 = vmax.f32 %v5552, %v5554
      %5722 = vmax.xlane.f32.xlu0 %v5721
      %v5723 = vpop.xlane.xlu0 %5722
      %v5724 = vmax.f32 %v5558, %v5560
      %5725 = vmax.xlane.f32.xlu0 %v5724
      %v5726 = vpop.xlane.xlu0 %5725
      %v5727 = vmax.f32 %v5564, %v5566
      %5728 = vmax.xlane.f32.xlu0 %v5727
      %v5729 = vpop.xlane.xlu0 %5728
      %v5730 = vmax.f32 %v5570, %v5572
      %5731 = vmax.xlane.f32.xlu0 %v5730
      %v5732 = vpop.xlane.xlu0 %5731
      %v5733 = vmax.f32 %v5576, %v5578
      %5734 = vmax.xlane.f32.xlu0 %v5733
      %v5735 = vpop.xlane.xlu0 %5734
      %v5736 = vmax.f32 %v5582, %v5584
      %5737 = vmax.xlane.f32.xlu0 %v5736
      %v5738 = vpop.xlane.xlu0 %5737
      %v5739 = vmax.f32 %v5588, %v5590
      %5740 = vmax.xlane.f32.xlu0 %v5739
      %v5741 = vpop.xlane.xlu0 %5740
      %v5742 = vmax.f32 %v5594, %v5596
      %5743 = vmax.xlane.f32.xlu0 %v5742
      %v5744 = vpop.xlane.xlu0 %5743
      %v5745 = vmax.f32 %v5600, %v5602
      %5746 = vmax.xlane.f32.xlu0 %v5745
      %v5747 = vpop.xlane.xlu0 %5746
      %v5748 = vmax.f32 %v5606, %v5608
      %5749 = vmax.xlane.f32.xlu0 %v5748
      %v5750 = vpop.xlane.xlu0 %5749
      %v5751 = vmax.f32 %v5612, %v5614
      %5752 = vmax.xlane.f32.xlu0 %v5751
      %v5753 = vpop.xlane.xlu0 %5752
      %v5754 = vmax.f32 %v5618, %v5620
      %5755 = vmax.xlane.f32.xlu0 %v5754
      %v5756 = vpop.xlane.xlu0 %5755
      %v5757 = vmax.f32 %v5624, %v5626
      %5758 = vmax.xlane.f32.xlu0 %v5757
      %v5759 = vpop.xlane.xlu0 %5758
      %v5760 = vmax.f32 %v5630, %v5632
      %5761 = vmax.xlane.f32.xlu0 %v5760
      %v5762 = vpop.xlane.xlu0 %5761
      %v5763 = vmax.f32 %v5636, %v5638
      %5764 = vmax.xlane.f32.xlu0 %v5763
      %v5765 = vpop.xlane.xlu0 %5764
      %v5766 = vmax.f32 %v5642, %v5644
      %5767 = vmax.xlane.f32.xlu0 %v5766
      %v5768 = vpop.xlane.xlu0 %5767
      %v5769 = vmax.f32 %v5648, %v5650
      %5770 = vmax.xlane.f32.xlu0 %v5769
      %v5771 = vpop.xlane.xlu0 %5770
      %v5772 = vmax.f32 %v5654, %v5656
      %5773 = vmax.xlane.f32.xlu0 %v5772
      %v5774 = vpop.xlane.xlu0 %5773
      %v5775 = vmax.f32 %v5660, %v5662
      %5776 = vmax.xlane.f32.xlu0 %v5775
      %v5777 = vpop.xlane.xlu0 %5776
      %v5778 = vmax.f32 %v5666, %v5668
      %5779 = vmax.xlane.f32.xlu0 %v5778
      %v5780 = vpop.xlane.xlu0 %5779
      %v5781 = vmax.f32 %v5672, %v5674
      %5782 = vmax.xlane.f32.xlu0 %v5781
      %v5783 = vpop.xlane.xlu0 %5782
      %v5784 = vmax.f32 %v5678, %v5680
      %5785 = vmax.xlane.f32.xlu0 %v5784
      %v5786 = vpop.xlane.xlu0 %5785
      %v5787 = vmax.f32 %v5684, %v5686
      %5788 = vmax.xlane.f32.xlu0 %v5787
      %v5789 = vpop.xlane.xlu0 %5788
      %v5790 = vmax.f32 %v5690, %v5692
      %5791 = vmax.xlane.f32.xlu0 %v5790
      %v5792 = vpop.xlane.xlu0 %5791
      %v5793 = vmax.f32 %v5696, %v5698
      %5794 = vmax.xlane.f32.xlu0 %v5793
      %v5795 = vpop.xlane.xlu0 %5794
      %v5796 = vsub.f32 %v5510, %v5702
      %v5797 = vsub.f32 %v5512, %v5702
      %v5798 = vsub.f32 %v5516, %v5705
      %v5799 = vsub.f32 %v5518, %v5705
      %v5800 = vsub.f32 %v5522, %v5708
      %v5801 = vsub.f32 %v5524, %v5708
      %v5802 = vsub.f32 %v5528, %v5711
      %v5803 = vsub.f32 %v5530, %v5711
      %v5804 = vsub.f32 %v5534, %v5714
      %v5805 = vsub.f32 %v5536, %v5714
      %v5806 = vsub.f32 %v5540, %v5717
      %v5807 = vsub.f32 %v5542, %v5717
      %v5808 = vsub.f32 %v5546, %v5720
      %v5809 = vsub.f32 %v5548, %v5720
      %v5810 = vsub.f32 %v5552, %v5723
      %v5811 = vsub.f32 %v5554, %v5723
      %v5812 = vsub.f32 %v5558, %v5726
      %v5813 = vsub.f32 %v5560, %v5726
      %v5814 = vsub.f32 %v5564, %v5729
      %v5815 = vsub.f32 %v5566, %v5729
      %v5816 = vsub.f32 %v5570, %v5732
      %v5817 = vsub.f32 %v5572, %v5732
      %v5818 = vsub.f32 %v5576, %v5735
      %v5819 = vsub.f32 %v5578, %v5735
      %v5820 = vsub.f32 %v5582, %v5738
      %v5821 = vsub.f32 %v5584, %v5738
      %v5822 = vsub.f32 %v5588, %v5741
      %v5823 = vsub.f32 %v5590, %v5741
      %v5824 = vsub.f32 %v5594, %v5744
      %v5825 = vsub.f32 %v5596, %v5744
      %v5826 = vsub.f32 %v5600, %v5747
      %v5827 = vsub.f32 %v5602, %v5747
      %v5828 = vsub.f32 %v5606, %v5750
      %v5829 = vsub.f32 %v5608, %v5750
      %v5830 = vsub.f32 %v5612, %v5753
      %v5831 = vsub.f32 %v5614, %v5753
      %v5832 = vsub.f32 %v5618, %v5756
      %v5833 = vsub.f32 %v5620, %v5756
      %v5834 = vsub.f32 %v5624, %v5759
      %v5835 = vsub.f32 %v5626, %v5759
      %v5836 = vsub.f32 %v5630, %v5762
      %v5837 = vsub.f32 %v5632, %v5762
      %v5838 = vsub.f32 %v5636, %v5765
      %v5839 = vsub.f32 %v5638, %v5765
      %v5840 = vsub.f32 %v5642, %v5768
      %v5841 = vsub.f32 %v5644, %v5768
      %v5842 = vsub.f32 %v5648, %v5771
      %v5843 = vsub.f32 %v5650, %v5771
      %v5844 = vsub.f32 %v5654, %v5774
      %v5845 = vsub.f32 %v5656, %v5774
      %v5846 = vsub.f32 %v5660, %v5777
      %v5847 = vsub.f32 %v5662, %v5777
      %v5848 = vsub.f32 %v5666, %v5780
      %v5849 = vsub.f32 %v5668, %v5780
      %v5850 = vsub.f32 %v5672, %v5783
      %v5851 = vsub.f32 %v5674, %v5783
      %v5852 = vsub.f32 %v5678, %v5786
      %v5853 = vsub.f32 %v5680, %v5786
      %v5854 = vsub.f32 %v5684, %v5789
      %v5855 = vsub.f32 %v5686, %v5789
      %v5856 = vsub.f32 %v5690, %v5792
      %v5857 = vsub.f32 %v5692, %v5792
      %v5858 = vsub.f32 %v5696, %v5795
      %v5859 = vsub.f32 %v5698, %v5795
      %v5860 = vmul.f32 %v5796, 1.442695
      %v5861 = vpow.pop %v5860
      %v5862 = vmul.f32 %v5797, 1.442695
      %v5863 = vpow.pop %v5862
      %v5864 = vmul.f32 %v5798, 1.442695
      %v5865 = vpow.pop %v5864
      %v5866 = vmul.f32 %v5799, 1.442695
      %v5867 = vpow.pop %v5866
      %v5868 = vmul.f32 %v5800, 1.442695
      %v5869 = vpow.pop %v5868
      %v5870 = vmul.f32 %v5801, 1.442695
      %v5871 = vpow.pop %v5870
      %v5872 = vmul.f32 %v5802, 1.442695
      %v5873 = vpow.pop %v5872
      %v5874 = vmul.f32 %v5803, 1.442695
      %v5875 = vpow.pop %v5874
      %v5876 = vmul.f32 %v5804, 1.442695
      %v5877 = vpow.pop %v5876
      %v5878 = vmul.f32 %v5805, 1.442695
      %v5879 = vpow.pop %v5878
      %v5880 = vmul.f32 %v5806, 1.442695
      %v5881 = vpow.pop %v5880
      %v5882 = vmul.f32 %v5807, 1.442695
      %v5883 = vpow.pop %v5882
      %v5884 = vmul.f32 %v5808, 1.442695
      %v5885 = vpow.pop %v5884
      %v5886 = vmul.f32 %v5809, 1.442695
      %v5887 = vpow.pop %v5886
      %v5888 = vmul.f32 %v5810, 1.442695
      %v5889 = vpow.pop %v5888
      %v5890 = vmul.f32 %v5811, 1.442695
      %v5891 = vpow.pop %v5890
      %v5892 = vmul.f32 %v5812, 1.442695
      %v5893 = vpow.pop %v5892
      %v5894 = vmul.f32 %v5813, 1.442695
      %v5895 = vpow.pop %v5894
      %v5896 = vmul.f32 %v5814, 1.442695
      %v5897 = vpow.pop %v5896
      %v5898 = vmul.f32 %v5815, 1.442695
      %v5899 = vpow.pop %v5898
      %v5900 = vmul.f32 %v5816, 1.442695
      %v5901 = vpow.pop %v5900
      %v5902 = vmul.f32 %v5817, 1.442695
      %v5903 = vpow.pop %v5902
      %v5904 = vmul.f32 %v5818, 1.442695
      %v5905 = vpow.pop %v5904
      %v5906 = vmul.f32 %v5819, 1.442695
      %v5907 = vpow.pop %v5906
      %v5908 = vmul.f32 %v5820, 1.442695
      %v5909 = vpow.pop %v5908
      %v5910 = vmul.f32 %v5821, 1.442695
      %v5911 = vpow.pop %v5910
      %v5912 = vmul.f32 %v5822, 1.442695
      %v5913 = vpow.pop %v5912
      %v5914 = vmul.f32 %v5823, 1.442695
      %v5915 = vpow.pop %v5914
      %v5916 = vmul.f32 %v5824, 1.442695
      %v5917 = vpow.pop %v5916
      %v5918 = vmul.f32 %v5825, 1.442695
      %v5919 = vpow.pop %v5918
      %v5920 = vmul.f32 %v5826, 1.442695
      %v5921 = vpow.pop %v5920
      %v5922 = vmul.f32 %v5827, 1.442695
      %v5923 = vpow.pop %v5922
      %v5924 = vmul.f32 %v5828, 1.442695
      %v5925 = vpow.pop %v5924
      %v5926 = vmul.f32 %v5829, 1.442695
      %v5927 = vpow.pop %v5926
      %v5928 = vmul.f32 %v5830, 1.442695
      %v5929 = vpow.pop %v5928
      %v5930 = vmul.f32 %v5831, 1.442695
      %v5931 = vpow.pop %v5930
      %v5932 = vmul.f32 %v5832, 1.442695
      %v5933 = vpow.pop %v5932
      %v5934 = vmul.f32 %v5833, 1.442695
      %v5935 = vpow.pop %v5934
      %v5936 = vmul.f32 %v5834, 1.442695
      %v5937 = vpow.pop %v5936
      %v5938 = vmul.f32 %v5835, 1.442695
      %v5939 = vpow.pop %v5938
      %v5940 = vmul.f32 %v5836, 1.442695
      %v5941 = vpow.pop %v5940
      %v5942 = vmul.f32 %v5837, 1.442695
      %v5943 = vpow.pop %v5942
      %v5944 = vmul.f32 %v5838, 1.442695
      %v5945 = vpow.pop %v5944
      %v5946 = vmul.f32 %v5839, 1.442695
      %v5947 = vpow.pop %v5946
      %v5948 = vmul.f32 %v5840, 1.442695
      %v5949 = vpow.pop %v5948
      %v5950 = vmul.f32 %v5841, 1.442695
      %v5951 = vpow.pop %v5950
      %v5952 = vmul.f32 %v5842, 1.442695
      %v5953 = vpow.pop %v5952
      %v5954 = vmul.f32 %v5843, 1.442695
      %v5955 = vpow.pop %v5954
      %v5956 = vmul.f32 %v5844, 1.442695
      %v5957 = vpow.pop %v5956
      %v5958 = vmul.f32 %v5845, 1.442695
      %v5959 = vpow.pop %v5958
      %v5960 = vmul.f32 %v5846, 1.442695
      %v5961 = vpow.pop %v5960
      %v5962 = vmul.f32 %v5847, 1.442695
      %v5963 = vpow.pop %v5962
      %v5964 = vmul.f32 %v5848, 1.442695
      %v5965 = vpow.pop %v5964
      %v5966 = vmul.f32 %v5849, 1.442695
      %v5967 = vpow.pop %v5966
      %v5968 = vmul.f32 %v5850, 1.442695
      %v5969 = vpow.pop %v5968
      %v5970 = vmul.f32 %v5851, 1.442695
      %v5971 = vpow.pop %v5970
      %v5972 = vmul.f32 %v5852, 1.442695
      %v5973 = vpow.pop %v5972
      %v5974 = vmul.f32 %v5853, 1.442695
      %v5975 = vpow.pop %v5974
      %v5976 = vmul.f32 %v5854, 1.442695
      %v5977 = vpow.pop %v5976
      %v5978 = vmul.f32 %v5855, 1.442695
      %v5979 = vpow.pop %v5978
      %v5980 = vmul.f32 %v5856, 1.442695
      %v5981 = vpow.pop %v5980
      %v5982 = vmul.f32 %v5857, 1.442695
      %v5983 = vpow.pop %v5982
      %v5984 = vmul.f32 %v5858, 1.442695
      %v5985 = vpow.pop %v5984
      %v5986 = vmul.f32 %v5859, 1.442695
      %v5987 = vpow.pop %v5986
      %v5988 = vadd.f32 %v5861, %v5863
      %5989 = vadd.xlane.f32.xlu0 %v5988
      %v5990 = vpop.xlane.xlu0 %5989
      %v5991 = vadd.f32 %v5865, %v5867
      %5992 = vadd.xlane.f32.xlu0 %v5991
      %v5993 = vpop.xlane.xlu0 %5992
      %v5994 = vadd.f32 %v5869, %v5871
      %5995 = vadd.xlane.f32.xlu0 %v5994
      %v5996 = vpop.xlane.xlu0 %5995
      %v5997 = vadd.f32 %v5873, %v5875
      %5998 = vadd.xlane.f32.xlu0 %v5997
      %v5999 = vpop.xlane.xlu0 %5998
      %v6000 = vadd.f32 %v5877, %v5879
      %6001 = vadd.xlane.f32.xlu0 %v6000
      %v6002 = vpop.xlane.xlu0 %6001
      %v6003 = vadd.f32 %v5881, %v5883
      %6004 = vadd.xlane.f32.xlu0 %v6003
      %v6005 = vpop.xlane.xlu0 %6004
      %v6006 = vadd.f32 %v5885, %v5887
      %6007 = vadd.xlane.f32.xlu0 %v6006
      %v6008 = vpop.xlane.xlu0 %6007
      %v6009 = vadd.f32 %v5889, %v5891
      %6010 = vadd.xlane.f32.xlu0 %v6009
      %v6011 = vpop.xlane.xlu0 %6010
      %v6012 = vadd.f32 %v5893, %v5895
      %6013 = vadd.xlane.f32.xlu0 %v6012
      %v6014 = vpop.xlane.xlu0 %6013
      %v6015 = vadd.f32 %v5897, %v5899
      %6016 = vadd.xlane.f32.xlu0 %v6015
      %v6017 = vpop.xlane.xlu0 %6016
      %v6018 = vadd.f32 %v5901, %v5903
      %6019 = vadd.xlane.f32.xlu0 %v6018
      %v6020 = vpop.xlane.xlu0 %6019
      %v6021 = vadd.f32 %v5905, %v5907
      %6022 = vadd.xlane.f32.xlu0 %v6021
      %v6023 = vpop.xlane.xlu0 %6022
      %v6024 = vadd.f32 %v5909, %v5911
      %6025 = vadd.xlane.f32.xlu0 %v6024
      %v6026 = vpop.xlane.xlu0 %6025
      %v6027 = vadd.f32 %v5913, %v5915
      %6028 = vadd.xlane.f32.xlu0 %v6027
      %v6029 = vpop.xlane.xlu0 %6028
      %v6030 = vadd.f32 %v5917, %v5919
      %6031 = vadd.xlane.f32.xlu0 %v6030
      %v6032 = vpop.xlane.xlu0 %6031
      %v6033 = vadd.f32 %v5921, %v5923
      %6034 = vadd.xlane.f32.xlu0 %v6033
      %v6035 = vpop.xlane.xlu0 %6034
      %v6036 = vadd.f32 %v5925, %v5927
      %6037 = vadd.xlane.f32.xlu0 %v6036
      %v6038 = vpop.xlane.xlu0 %6037
      %v6039 = vadd.f32 %v5929, %v5931
      %6040 = vadd.xlane.f32.xlu0 %v6039
      %v6041 = vpop.xlane.xlu0 %6040
      %v6042 = vadd.f32 %v5933, %v5935
      %6043 = vadd.xlane.f32.xlu0 %v6042
      %v6044 = vpop.xlane.xlu0 %6043
      %v6045 = vadd.f32 %v5937, %v5939
      %6046 = vadd.xlane.f32.xlu0 %v6045
      %v6047 = vpop.xlane.xlu0 %6046
      %v6048 = vadd.f32 %v5941, %v5943
      %6049 = vadd.xlane.f32.xlu0 %v6048
      %v6050 = vpop.xlane.xlu0 %6049
      %v6051 = vadd.f32 %v5945, %v5947
      %6052 = vadd.xlane.f32.xlu0 %v6051
      %v6053 = vpop.xlane.xlu0 %6052
      %v6054 = vadd.f32 %v5949, %v5951
      %6055 = vadd.xlane.f32.xlu0 %v6054
      %v6056 = vpop.xlane.xlu0 %6055
      %v6057 = vadd.f32 %v5953, %v5955
      %6058 = vadd.xlane.f32.xlu0 %v6057
      %v6059 = vpop.xlane.xlu0 %6058
      %v6060 = vadd.f32 %v5957, %v5959
      %6061 = vadd.xlane.f32.xlu0 %v6060
      %v6062 = vpop.xlane.xlu0 %6061
      %v6063 = vadd.f32 %v5961, %v5963
      %6064 = vadd.xlane.f32.xlu0 %v6063
      %v6065 = vpop.xlane.xlu0 %6064
      %v6066 = vadd.f32 %v5965, %v5967
      %6067 = vadd.xlane.f32.xlu0 %v6066
      %v6068 = vpop.xlane.xlu0 %6067
      %v6069 = vadd.f32 %v5969, %v5971
      %6070 = vadd.xlane.f32.xlu0 %v6069
      %v6071 = vpop.xlane.xlu0 %6070
      %v6072 = vadd.f32 %v5973, %v5975
      %6073 = vadd.xlane.f32.xlu0 %v6072
      %v6074 = vpop.xlane.xlu0 %6073
      %v6075 = vadd.f32 %v5977, %v5979
      %6076 = vadd.xlane.f32.xlu0 %v6075
      %v6077 = vpop.xlane.xlu0 %6076
      %v6078 = vadd.f32 %v5981, %v5983
      %6079 = vadd.xlane.f32.xlu0 %v6078
      %v6080 = vpop.xlane.xlu0 %6079
      %v6081 = vadd.f32 %v5985, %v5987
      %6082 = vadd.xlane.f32.xlu0 %v6081
      %v6083 = vpop.xlane.xlu0 %6082
      %v6084 = vrcp.pop %v5990
      %v6085 = vrcp.pop %v5993
      %v6086 = vrcp.pop %v5996
      %v6087 = vrcp.pop %v5999
      %v6088 = vrcp.pop %v6002
      %v6089 = vrcp.pop %v6005
      %v6090 = vrcp.pop %v6008
      %v6091 = vrcp.pop %v6011
      %v6092 = vrcp.pop %v6014
      %v6093 = vrcp.pop %v6017
      %v6094 = vrcp.pop %v6020
      %v6095 = vrcp.pop %v6023
      %v6096 = vrcp.pop %v6026
      %v6097 = vrcp.pop %v6029
      %v6098 = vrcp.pop %v6032
      %v6099 = vrcp.pop %v6035
      %v6100 = vrcp.pop %v6038
      %v6101 = vrcp.pop %v6041
      %v6102 = vrcp.pop %v6044
      %v6103 = vrcp.pop %v6047
      %v6104 = vrcp.pop %v6050
      %v6105 = vrcp.pop %v6053
      %v6106 = vrcp.pop %v6056
      %v6107 = vrcp.pop %v6059
      %v6108 = vrcp.pop %v6062
      %v6109 = vrcp.pop %v6065
      %v6110 = vrcp.pop %v6068
      %v6111 = vrcp.pop %v6071
      %v6112 = vrcp.pop %v6074
      %v6113 = vrcp.pop %v6077
      %v6114 = vrcp.pop %v6080
      %v6115 = vrcp.pop %v6083
      %v6116 = vmul.f32 %v5861, %v6084
      %v6117 = vmul.f32 %v5863, %v6084
      %v6118 = vmul.f32 %v5865, %v6085
      %v6119 = vmul.f32 %v5867, %v6085
      %v6120 = vmul.f32 %v5869, %v6086
      %v6121 = vmul.f32 %v5871, %v6086
      %v6122 = vmul.f32 %v5873, %v6087
      %v6123 = vmul.f32 %v5875, %v6087
      %v6124 = vmul.f32 %v5877, %v6088
      %v6125 = vmul.f32 %v5879, %v6088
      %v6126 = vmul.f32 %v5881, %v6089
      %v6127 = vmul.f32 %v5883, %v6089
      %v6128 = vmul.f32 %v5885, %v6090
      %v6129 = vmul.f32 %v5887, %v6090
      %v6130 = vmul.f32 %v5889, %v6091
      %v6131 = vmul.f32 %v5891, %v6091
      %v6132 = vmul.f32 %v5893, %v6092
      %v6133 = vmul.f32 %v5895, %v6092
      %v6134 = vmul.f32 %v5897, %v6093
      %v6135 = vmul.f32 %v5899, %v6093
      %v6136 = vmul.f32 %v5901, %v6094
      %v6137 = vmul.f32 %v5903, %v6094
      %v6138 = vmul.f32 %v5905, %v6095
      %v6139 = vmul.f32 %v5907, %v6095
      %v6140 = vmul.f32 %v5909, %v6096
      %v6141 = vmul.f32 %v5911, %v6096
      %v6142 = vmul.f32 %v5913, %v6097
      %v6143 = vmul.f32 %v5915, %v6097
      %v6144 = vmul.f32 %v5917, %v6098
      %v6145 = vmul.f32 %v5919, %v6098
      %v6146 = vmul.f32 %v5921, %v6099
      %v6147 = vmul.f32 %v5923, %v6099
      %v6148 = vmul.f32 %v5925, %v6100
      %v6149 = vmul.f32 %v5927, %v6100
      %v6150 = vmul.f32 %v5929, %v6101
      %v6151 = vmul.f32 %v5931, %v6101
      %v6152 = vmul.f32 %v5933, %v6102
      %v6153 = vmul.f32 %v5935, %v6102
      %v6154 = vmul.f32 %v5937, %v6103
      %v6155 = vmul.f32 %v5939, %v6103
      %v6156 = vmul.f32 %v5941, %v6104
      %v6157 = vmul.f32 %v5943, %v6104
      %v6158 = vmul.f32 %v5945, %v6105
      %v6159 = vmul.f32 %v5947, %v6105
      %v6160 = vmul.f32 %v5949, %v6106
      %v6161 = vmul.f32 %v5951, %v6106
      %v6162 = vmul.f32 %v5953, %v6107
      %v6163 = vmul.f32 %v5955, %v6107
      %v6164 = vmul.f32 %v5957, %v6108
      %v6165 = vmul.f32 %v5959, %v6108
      %v6166 = vmul.f32 %v5961, %v6109
      %v6167 = vmul.f32 %v5963, %v6109
      %v6168 = vmul.f32 %v5965, %v6110
      %v6169 = vmul.f32 %v5967, %v6110
      %v6170 = vmul.f32 %v5969, %v6111
      %v6171 = vmul.f32 %v5971, %v6111
      %v6172 = vmul.f32 %v5973, %v6112
      %v6173 = vmul.f32 %v5975, %v6112
      %v6174 = vmul.f32 %v5977, %v6113
      %v6175 = vmul.f32 %v5979, %v6113
      %v6176 = vmul.f32 %v5981, %v6114
      %v6177 = vmul.f32 %v5983, %v6114
      %v6178 = vmul.f32 %v5985, %v6115
      %v6179 = vmul.f32 %v5987, %v6115
      %6180 = vmatprep.subr.mxu0 %v6117
      %6181 = vmatpush1.xpose.msra.mxu0 %v6116
      %6182 = vmatprep.subr.mxu0 %v6119
      %6183 = vmatpush1.xpose.msra.mxu0 %v6118
      %6184 = vmatprep.subr.mxu0 %v6121
      %6185 = vmatpush1.xpose.msra.mxu0 %v6120
      %6186 = vmatprep.subr.mxu0 %v6123
      %6187 = vmatpush1.xpose.msra.mxu0 %v6122
      %6188 = vmatprep.subr.mxu0 %v6125
      %6189 = vmatpush1.xpose.msra.mxu0 %v6124
      %6190 = vmatprep.subr.mxu0 %v6127
      %6191 = vmatpush1.xpose.msra.mxu0 %v6126
      %6192 = vmatprep.subr.mxu0 %v6129
      %6193 = vmatpush1.xpose.msra.mxu0 %v6128
      %6194 = vmatprep.subr.mxu0 %v6131
      %6195 = vmatpush1.xpose.msra.mxu0 %v6130
      %6196 = vmatprep.subr.mxu0 %v6133
      %6197 = vmatpush1.xpose.msra.mxu0 %v6132
      %6198 = vmatprep.subr.mxu0 %v6135
      %6199 = vmatpush1.xpose.msra.mxu0 %v6134
      %6200 = vmatprep.subr.mxu0 %v6137
      %6201 = vmatpush1.xpose.msra.mxu0 %v6136
      %6202 = vmatprep.subr.mxu0 %v6139
      %6203 = vmatpush1.xpose.msra.mxu0 %v6138
      %6204 = vmatprep.subr.mxu0 %v6141
      %6205 = vmatpush1.xpose.msra.mxu0 %v6140
      %6206 = vmatprep.subr.mxu0 %v6143
      %6207 = vmatpush1.xpose.msra.mxu0 %v6142
      %6208 = vmatprep.subr.mxu0 %v6145
      %6209 = vmatpush1.xpose.msra.mxu0 %v6144
      %6210 = vmatprep.subr.mxu0 %v6147
      %6211 = vmatpush1.xpose.msra.mxu0 %v6146
      %6212 = vmatprep.subr.mxu0 %v6149
      %6213 = vmatpush1.xpose.msra.mxu0 %v6148
      %6214 = vmatprep.subr.mxu0 %v6151
      %6215 = vmatpush1.xpose.msra.mxu0 %v6150
      %6216 = vmatprep.subr.mxu0 %v6153
      %6217 = vmatpush1.xpose.msra.mxu0 %v6152
      %6218 = vmatprep.subr.mxu0 %v6155
      %6219 = vmatpush1.xpose.msra.mxu0 %v6154
      %6220 = vmatprep.subr.mxu0 %v6157
      %6221 = vmatpush1.xpose.msra.mxu0 %v6156
      %6222 = vmatprep.subr.mxu0 %v6159
      %6223 = vmatpush1.xpose.msra.mxu0 %v6158
      %6224 = vmatprep.subr.mxu0 %v6161
      %6225 = vmatpush1.xpose.msra.mxu0 %v6160
      %6226 = vmatprep.subr.mxu0 %v6163
      %6227 = vmatpush1.xpose.msra.mxu0 %v6162
      %6228 = vmatprep.subr.mxu0 %v6165
      %6229 = vmatpush1.xpose.msra.mxu0 %v6164
      %6230 = vmatprep.subr.mxu0 %v6167
      %6231 = vmatpush1.xpose.msra.mxu0 %v6166
      %6232 = vmatprep.subr.mxu0 %v6169
      %6233 = vmatpush1.xpose.msra.mxu0 %v6168
      %6234 = vmatprep.subr.mxu0 %v6171
      %6235 = vmatpush1.xpose.msra.mxu0 %v6170
      %6236 = vmatprep.subr.mxu0 %v6173
      %6237 = vmatpush1.xpose.msra.mxu0 %v6172
      %6238 = vmatprep.subr.mxu0 %v6175
      %6239 = vmatpush1.xpose.msra.mxu0 %v6174
      %6240 = vmatprep.subr.mxu0 %v6177
      %6241 = vmatpush1.xpose.msra.mxu0 %v6176
      %6242 = vmatprep.subr.mxu0 %v6179
      %6243 = vmatpush1.xpose.msra.mxu0 %v6178
      %6244 = vmatprep.mubr.f32.mxu0 %v656
      %6245 = vmatmul.mubr.f32.gmra.mrb[0].mxu0 %v654
      %v6246 = vpop.f32.mrb[0].mxu0
      %v6247 = vadd.f32 0.0, %v6246
      %v6248 = vpop.f32.mrb[0].mxu0
      %v6249 = vadd.f32 0.0, %v6248
      %6250 = vmatprep.mubr.f32.mxu0 %v662
      %6251 = vmatmul.mubr.f32.gmra.mrb[0].mxu0 %v660
      %v6252 = vpop.f32.mrb[0].mxu0
      %v6253 = vadd.f32 0.0, %v6252
      %v6254 = vpop.f32.mrb[0].mxu0
      %v6255 = vadd.f32 0.0, %v6254
      %6256 = vdwg.mxu0
      %6257 = vst [vmem:[%s197 + $0x60] sm:$0xff] %v6247
      %6258 = vst [vmem:[%s197 + $0x68] sm:$0xff] %v6249
      %6259 = vst [vmem:[%s197 + $0x70] sm:$0xff] %v6253
      %6260 = vst [vmem:[%s197 + $0x78] sm:$0xff] %v6255
      %p6261 = scmp.lt.s32.totalorder %s15, 1
      %s6262 = scalar_select %p6261, %s15, 1
      %s6263 = smul.addr %s6262, 16
      %s6264 = smul.addr %s6263, 8
      %s6265 = scalar_lea.vmem %s4, %s6264
      // Predicated region
      $region37: #{mhsa_forward.1} parent=35 // pred_check
        %p6266 = pneg %p122
      $region38: #{mhsa_forward.1} parent=35 // pred_check_branch
        %6268 = sbr.rel (%p6266) target = $region40
      $region39: #{mhsa_forward.1} parent=35 // pred_region
        _
      $region40: #{mhsa_forward.1} parent=35 // pred_fallthru
        _
    $region36: #{mhsa_forward.1} parent=5 // pred_fallthru
      _
    %p6269 = scmp.le.s32.totalorder 2, %s10
    // Predicated region
    $region41: #{mhsa_forward.1} parent=5 // pred_check
      %p6270 = pneg %p6269
    $region42: #{mhsa_forward.1} parent=5 // pred_check_branch
      %6272 = sbr.rel (%p6270) target = $region44
    $region43: #{mhsa_forward.1} parent=5 // pred_region
      %s6273 = ssub.s32 %s10, 2
      // Predicated region
      $region45: #{mhsa_forward.1} parent=43 // pred_check
        %p6274 = pneg %p128
      $region46: #{mhsa_forward.1} parent=43 // pred_check_branch
        %6276 = sbr.rel (%p6274) target = $region48
      $region47: #{mhsa_forward.1} parent=43 // pred_region
        %p6277 = scmp.lt.s32.totalorder %s16, 1
        %s6278 = scalar_select %p6277, %s16, 1
        %s6279 = smul.addr %s6278, 16
        %s6280 = smul.addr %s6279, 8
        %s6281 = scalar_lea.vmem %s4, %s6280
      $region48: #{mhsa_forward.1} parent=43 // pred_fallthru
        _
    $region44: #{mhsa_forward.1} parent=5 // pred_fallthru
      _
  $region6: #{mhsa_forward.1} parent=0 // loop_footer
    %s14 = sadd.s32 1, %s10
  $region7: #{mhsa_forward.1} parent=0 // loop_footer_branch
    %9 = sbr.rel target = $region3
  $region8: #{mhsa_forward.1} parent=0 // loop_exit
    _

</llo_original>
